<compile_context>
chip_gen: v7x
topology: tpu7x:2x2x1
jax: 0.10.0
libtpu: 0.0.40
codegen_flags: <defaults>
</compile_context>

<pallas_src>
import functools

import jax
import jax.numpy as jnp
from jax.experimental import pallas as pl
from jax.experimental.pallas import tpu as pltpu

# ---------------- config (small, consistent with the module's forward) ----------------
PATCH = 8
IMG = 16
IN_CH = 3
EMBED_DIM = 32
NUM_HEADS = 2
MLP_RATIO = 4
DEPTH = 2
LN_EPS = 1e-6
ARCH = "vit_small_patch8_224_dino"  # no 'normalize' substring -> no final L2 norm

HEAD_DIM = EMBED_DIM // NUM_HEADS
N_PATCH = (IMG // PATCH) ** 2  # 4
N_TOK = N_PATCH + 1            # 5 (CLS + patches)


# ---------------- in-kernel math helpers ----------------
def _layernorm(x, g, b):
    mu = jnp.mean(x, axis=-1, keepdims=True)
    xc = x - mu
    var = jnp.mean(xc * xc, axis=-1, keepdims=True)
    return xc * jax.lax.rsqrt(var + LN_EPS) * g + b


def _erf(x):
    # Abramowitz & Stegun 7.1.26 (|err| < 1.5e-7, i.e. float32 precision);
    # reproduces torch's exact (erf-based) nn.GELU to f32 accuracy using only
    # ops guaranteed to lower on Mosaic (exp / mul / abs / where).
    a1, a2, a3, a4, a5 = 0.254829592, -0.284496736, 1.421413741, -1.453152027, 1.061405429
    p = 0.3275911
    sgn = jnp.where(x >= 0.0, 1.0, -1.0)
    ax = jnp.abs(x)
    t = 1.0 / (1.0 + p * ax)
    poly = ((((a5 * t + a4) * t + a3) * t + a2) * t + a1) * t
    return sgn * (1.0 - poly * jnp.exp(-ax * ax))


def _gelu(x):
    return 0.5 * x * (1.0 + _erf(x * 0.7071067811865476))


# ---------------- single fused Pallas kernel: whole ViT forward ----------------
def vit_forward_kernel(patches_ref, pe_w_ref, tok_bias_ref,
                       g1_ref, b1_ref, wqkv_ref, bqkv_ref, wo_ref, bo_ref,
                       g2_ref, b2_ref, w1_ref, bm1_ref, w2_ref, bm2_ref,
                       gn_ref, bn_ref, o_ref, tok_scratch,
                       *, batch, depth, num_heads, head_dim):
    d = num_heads * head_dim
    n = tok_scratch.shape[1]          # tokens per image (CLS + patches)
    m = batch * n                     # total token rows

    # ---- prepare_tokens: patch-embed conv (as matmul), CLS prepend, +pos_embed ----
    # tok_bias row 0 = cls + pos[0]; rows 1.. = conv bias + pos[1:]
    tok_bias = tok_bias_ref[...]                                  # [N, D]
    pt = jnp.dot(patches_ref[...], pe_w_ref[...],
                 preferred_element_type=jnp.float32)              # [B*Np, D]
    tok_scratch[:, 1:, :] = pt.reshape(batch, n - 1, d) + tok_bias[1:, :]
    tok_scratch[:, 0:1, :] = jnp.broadcast_to(tok_bias[0:1, :][None], (batch, 1, d))

    # Full batch of tokens as one tall LHS for every dense matmul.
    xf = tok_scratch[...].reshape(m, d)                           # [B*N, D]

    # ---- transformer blocks (weights stacked over DEPTH, static loop) ----
    for l in range(depth):
        # --- pre-LN multi-head self-attention ---
        h = _layernorm(xf, g1_ref[l], b1_ref[l])
        # 1/sqrt(head_dim) is pre-folded into the Q columns of wqkv/bqkv.
        qkv = jnp.dot(h, wqkv_ref[l], preferred_element_type=jnp.float32) + bqkv_ref[l]
        qkv3 = qkv.reshape(batch, n, 3 * d)                       # [B, N, 3D]
        wo_l = wo_ref[l]                                          # [D, D]

        proj = jnp.zeros((m, d), jnp.float32)
        for hh in range(num_heads):                               # static, tiny H
            lo = hh * head_dim
            qh = qkv3[:, :, lo:lo + head_dim]                     # [B, N, hd]
            kh = qkv3[:, :, d + lo:d + lo + head_dim]
            vh = qkv3[:, :, 2 * d + lo:2 * d + lo + head_dim]
            s = jnp.einsum('bnd,bmd->bnm', qh, kh,
                           preferred_element_type=jnp.float32)    # [B, N, N]
            s = s - jnp.max(s, axis=-1, keepdims=True)
            e = jnp.exp(s)
            p = e * pl.reciprocal(jnp.sum(e, axis=-1, keepdims=True), approx=True)
            ctx = jnp.einsum('bnm,bmd->bnd', p, vh,
                             preferred_element_type=jnp.float32)  # [B, N, hd]
            # project each head through its own rows of Wo and sum (no concat)
            proj = proj + jnp.dot(ctx.reshape(m, head_dim),
                                  wo_l[lo:lo + head_dim, :],
                                  preferred_element_type=jnp.float32)
        xf = xf + proj + bo_ref[l]

        # --- pre-LN MLP (exact GELU) ---
        h2 = _layernorm(xf, g2_ref[l], b2_ref[l])
        h2 = jnp.dot(h2, w1_ref[l], preferred_element_type=jnp.float32) + bm1_ref[l]
        h2 = _gelu(h2)
        xf = xf + jnp.dot(h2, w2_ref[l], preferred_element_type=jnp.float32) + bm2_ref[l]

    # ---- final LayerNorm on CLS token (LN is per-token: slice-then-norm == norm-then-slice)
    cls = xf.reshape(batch, n, d)[:, 0:1, :].reshape(batch, d)    # [B, D]
    o_ref[...] = _layernorm(cls, gn_ref[...], bn_ref[...])


# ---------------- parameters (deterministic, synthetic) ----------------
def init_params(key):
    d = EMBED_DIM
    hidden = MLP_RATIO * d
    keys = iter(jax.random.split(key, 64))

    def randn(shape, scale=0.02):
        return (scale * jax.random.normal(next(keys), shape)).astype(jnp.float32)

    params = {
        # PyTorch conv weight [D, C, P, P] reshaped into a [C*P*P, D] matmul weight
        "pe_w": randn((d, IN_CH, PATCH, PATCH)).reshape(d, IN_CH * PATCH * PATCH).T,
        "pe_b": randn((1, d)),
        "cls": randn((1, 1, d)),
        "pos": randn((1, N_TOK, d)),
        "norm_g": jnp.ones((1, d), jnp.float32),
        "norm_b": jnp.zeros((1, d), jnp.float32),
        "blocks": [],
    }
    for _ in range(DEPTH):
        params["blocks"].append({
            "g1": jnp.ones((1, d), jnp.float32), "b1": jnp.zeros((1, d), jnp.float32),
            "wqkv": randn((d, 3 * d)), "bqkv": randn((1, 3 * d)),
            "wo": randn((d, d)), "bo": randn((1, d)),
            "g2": jnp.ones((1, d), jnp.float32), "b2": jnp.zeros((1, d), jnp.float32),
            "w1": randn((d, hidden)), "bm1": randn((1, hidden)),
            "w2": randn((hidden, d)), "bm2": randn((1, d)),
        })
    return params


def prepare_params(params):
    """Stack per-block weights over DEPTH and pre-fold cheap constants.

    - tok_bias[0]  = cls + pos[0];  tok_bias[1:] = patch-conv bias + pos[1:]
    - 1/sqrt(head_dim) attention scale folded into the Q columns of wqkv/bqkv
      (mathematically identical to scaling the scores).
    These are a few-KB param-only ops executed inside the same jit.
    """
    d = EMBED_DIM
    scale = HEAD_DIM ** -0.5
    tok_bias = jnp.concatenate(
        [params["cls"][0] + params["pos"][0, 0:1],
         params["pe_b"] + params["pos"][0, 1:]], axis=0)          # [N, D]

    def stack(key):
        return jnp.stack([blk[key] for blk in params["blocks"]], axis=0)

    q_scale = jnp.concatenate([jnp.full((d,), scale, jnp.float32),
                               jnp.ones((2 * d,), jnp.float32)], axis=0)
    wqkv = stack("wqkv") * q_scale
    bqkv = stack("bqkv") * q_scale

    return dict(
        pe_w=params["pe_w"], tok_bias=tok_bias,
        g1=stack("g1"), b1=stack("b1"), wqkv=wqkv, bqkv=bqkv,
        wo=stack("wo"), bo=stack("bo"),
        g2=stack("g2"), b2=stack("b2"),
        w1=stack("w1"), bm1=stack("bm1"), w2=stack("w2"), bm2=stack("bm2"),
        gn=params["norm_g"], bn=params["norm_b"],
    )


# ---------------- Network.forward equivalent ----------------
def network_forward(x, params):
    bsz, c, himg, wimg = x.shape
    hp, wp = himg // PATCH, wimg // PATCH
    d = EMBED_DIM
    kp = prepare_params(params)

    # patchify glue: NCHW -> [B*Np, C*P*P] in (C, ph, pw) order == Conv2d(k=P, stride=P)
    patches = (x.reshape(bsz, c, hp, PATCH, wp, PATCH)
                .transpose(0, 2, 4, 1, 3, 5)
                .reshape(bsz * hp * wp, c * PATCH * PATCH))

    kernel = functools.partial(vit_forward_kernel, batch=bsz, depth=DEPTH,
                               num_heads=NUM_HEADS, head_dim=HEAD_DIM)
    z = pl.pallas_call(
        kernel,
        out_shape=jax.ShapeDtypeStruct((bsz, d), jnp.float32),
        scratch_shapes=[pltpu.VMEM((bsz, hp * wp + 1, d), jnp.float32)],
    )(patches, kp["pe_w"], kp["tok_bias"],
      kp["g1"], kp["b1"], kp["wqkv"], kp["bqkv"], kp["wo"], kp["bo"],
      kp["g2"], kp["b2"], kp["w1"], kp["bm1"], kp["w2"], kp["bm2"],
      kp["gn"], kp["bn"])

    if "normalize" in ARCH:  # matches `if 'normalize' in self.arch`
        z = z / jnp.maximum(jnp.sqrt(jnp.sum(z * z, axis=-1, keepdims=True)), 1e-12)
    return {"embeds": z}


if __name__ == "__main__":
    root = jax.random.PRNGKey(0)
    kx, kp = jax.random.split(root)
    x = jax.random.normal(kx, (2, IN_CH, IMG, IMG), dtype=jnp.float32)
    params = init_params(kp)

    out = jax.jit(network_forward)(x, params)
    jax.block_until_ready(out["embeds"])
    assert out["embeds"].shape == (2, EMBED_DIM)
    assert out["embeds"].dtype == jnp.float32
    print("KERNEL_OK")
</pallas_src>

<mosaic_0001>
module attributes {stable_mosaic.version = 11 : i64} {
  func.func @vit_forward_kernel(%arg0: memref<8x192xf32, #tpu.memory_space<vmem>>, %arg1: memref<192x32xf32, #tpu.memory_space<vmem>>, %arg2: memref<5x32xf32, #tpu.memory_space<vmem>>, %arg3: memref<2x1x32xf32, #tpu.memory_space<vmem>>, %arg4: memref<2x1x32xf32, #tpu.memory_space<vmem>>, %arg5: memref<2x32x96xf32, #tpu.memory_space<vmem>>, %arg6: memref<2x1x96xf32, #tpu.memory_space<vmem>>, %arg7: memref<2x32x32xf32, #tpu.memory_space<vmem>>, %arg8: memref<2x1x32xf32, #tpu.memory_space<vmem>>, %arg9: memref<2x1x32xf32, #tpu.memory_space<vmem>>, %arg10: memref<2x1x32xf32, #tpu.memory_space<vmem>>, %arg11: memref<2x32x128xf32, #tpu.memory_space<vmem>>, %arg12: memref<2x1x128xf32, #tpu.memory_space<vmem>>, %arg13: memref<2x128x32xf32, #tpu.memory_space<vmem>>, %arg14: memref<2x1x32xf32, #tpu.memory_space<vmem>>, %arg15: memref<1x32xf32, #tpu.memory_space<vmem>>, %arg16: memref<1x32xf32, #tpu.memory_space<vmem>>, %arg17: memref<2x32xf32, #tpu.memory_space<vmem>>, %arg18: memref<2x5x32xf32, #tpu.memory_space<vmem>>) attributes {dimension_semantics = [], scalar_prefetch = 0 : i64, scratch_operands = 1 : i64, tpu.core_type = #tpu.core_type<tc>} {
    %c0 = arith.constant 0 : index
    %c0_0 = arith.constant 0 : index
    %0 = vector.load %arg2[%c0, %c0_0] : memref<5x32xf32, #tpu.memory_space<vmem>>, vector<5x32xf32>
    %c0_1 = arith.constant 0 : index
    %c0_2 = arith.constant 0 : index
    %1 = vector.load %arg0[%c0_1, %c0_2] : memref<8x192xf32, #tpu.memory_space<vmem>>, vector<8x192xf32>
    %c0_3 = arith.constant 0 : index
    %c0_4 = arith.constant 0 : index
    %2 = vector.load %arg1[%c0_3, %c0_4] : memref<192x32xf32, #tpu.memory_space<vmem>>, vector<192x32xf32>
    %cst = arith.constant dense<0.000000e+00> : vector<8x32xf32>
    %3 = tpu.matmul %1, %2, %cst {dimension_numbers = #tpu.dot_dimension_numbers<[1], [0], [0], [1], [0, 0, 1, 1], [], []>} : vector<8x192xf32>, vector<192x32xf32>, vector<8x32xf32> -> vector<8x32xf32>
    %4 = vector.shape_cast %3 : vector<8x32xf32> to vector<2x4x32xf32>
    %5 = vector.extract_strided_slice %0 {offsets = [1, 0], sizes = [4, 32], strides = [1, 1]} : vector<5x32xf32> to vector<4x32xf32>
    %6 = vector.shape_cast %5 : vector<4x32xf32> to vector<1x4x32xf32>
    %7 = vector.broadcast %6 : vector<1x4x32xf32> to vector<2x4x32xf32>
    %8 = arith.addf %4, %7 : vector<2x4x32xf32>
    %c0_5 = arith.constant 0 : index
    %c1 = arith.constant 1 : index
    %c0_6 = arith.constant 0 : index
    %9 = vector.load %arg18[%c0_5, %c1, %c0_6] : memref<2x5x32xf32, #tpu.memory_space<vmem>>, vector<2x4x32xf32>
    tpu.vector_store %arg18[%c0_5, %c1, %c0_6], %8 {strides = array<i32>} : memref<2x5x32xf32, #tpu.memory_space<vmem>>, vector<2x4x32xf32>,
    %10 = vector.extract_strided_slice %0 {offsets = [0, 0], sizes = [1, 32], strides = [1, 1]} : vector<5x32xf32> to vector<1x32xf32>
    %11 = vector.shape_cast %10 : vector<1x32xf32> to vector<1x1x32xf32>
    %12 = vector.shape_cast %11 : vector<1x1x32xf32> to vector<1x1x32xf32>
    %13 = vector.broadcast %12 : vector<1x1x32xf32> to vector<2x1x32xf32>
    %c0_7 = arith.constant 0 : index
    %c0_8 = arith.constant 0 : index
    %c0_9 = arith.constant 0 : index
    %14 = vector.load %arg18[%c0_7, %c0_8, %c0_9] : memref<2x5x32xf32, #tpu.memory_space<vmem>>, vector<2x1x32xf32>
    tpu.vector_store %arg18[%c0_7, %c0_8, %c0_9], %13 {strides = array<i32>} : memref<2x5x32xf32, #tpu.memory_space<vmem>>, vector<2x1x32xf32>,
    %c0_10 = arith.constant 0 : index
    %c0_11 = arith.constant 0 : index
    %c0_12 = arith.constant 0 : index
    %15 = vector.load %arg18[%c0_10, %c0_11, %c0_12] : memref<2x5x32xf32, #tpu.memory_space<vmem>>, vector<2x5x32xf32>
    %16 = vector.shape_cast %15 : vector<2x5x32xf32> to vector<10x32xf32>
    %c0_13 = arith.constant 0 : index
    %c0_14 = arith.constant 0 : index
    %c0_15 = arith.constant 0 : index
    %17 = vector.load %arg3[%c0_13, %c0_14, %c0_15] : memref<2x1x32xf32, #tpu.memory_space<vmem>>, vector<1x1x32xf32>
    %18 = vector.shape_cast %17 : vector<1x1x32xf32> to vector<1x32xf32>
    %c0_16 = arith.constant 0 : index
    %c0_17 = arith.constant 0 : index
    %c0_18 = arith.constant 0 : index
    %19 = vector.load %arg4[%c0_16, %c0_17, %c0_18] : memref<2x1x32xf32, #tpu.memory_space<vmem>>, vector<1x1x32xf32>
    %20 = vector.shape_cast %19 : vector<1x1x32xf32> to vector<1x32xf32>
    %cst_19 = arith.constant dense<0.000000e+00> : vector<10xf32>
    %21 = vector.multi_reduction <add>, %16, %cst_19 [1] : vector<10x32xf32> to vector<10xf32>
    %22 = vector.shape_cast %21 : vector<10xf32> to vector<10x1xf32>
    %cst_20 = arith.constant 3.200000e+01 : f32
    %23 = vector.broadcast %cst_20 : f32 to vector<10x1xf32>
    %24 = arith.divf %22, %23 : vector<10x1xf32>
    %25 = vector.broadcast %24 : vector<10x1xf32> to vector<10x32xf32>
    %26 = arith.subf %16, %25 : vector<10x32xf32>
    %27 = arith.mulf %26, %26 : vector<10x32xf32>
    %cst_21 = arith.constant dense<0.000000e+00> : vector<10xf32>
    %28 = vector.multi_reduction <add>, %27, %cst_21 [1] : vector<10x32xf32> to vector<10xf32>
    %29 = vector.shape_cast %28 : vector<10xf32> to vector<10x1xf32>
    %cst_22 = arith.constant 3.200000e+01 : f32
    %30 = vector.broadcast %cst_22 : f32 to vector<10x1xf32>
    %31 = arith.divf %29, %30 : vector<10x1xf32>
    %cst_23 = arith.constant 9.99999997E-7 : f32
    %32 = vector.broadcast %cst_23 : f32 to vector<10x1xf32>
    %33 = arith.addf %31, %32 : vector<10x1xf32>
    %34 = math.rsqrt %33 : vector<10x1xf32>
    %35 = vector.broadcast %34 : vector<10x1xf32> to vector<10x32xf32>
    %36 = arith.mulf %26, %35 : vector<10x32xf32>
    %37 = vector.broadcast %18 : vector<1x32xf32> to vector<10x32xf32>
    %38 = arith.mulf %36, %37 : vector<10x32xf32>
    %39 = vector.broadcast %20 : vector<1x32xf32> to vector<10x32xf32>
    %40 = arith.addf %38, %39 : vector<10x32xf32>
    %c0_24 = arith.constant 0 : index
    %c0_25 = arith.constant 0 : index
    %c0_26 = arith.constant 0 : index
    %41 = vector.load %arg5[%c0_24, %c0_25, %c0_26] : memref<2x32x96xf32, #tpu.memory_space<vmem>>, vector<1x32x96xf32>
    %42 = vector.shape_cast %41 : vector<1x32x96xf32> to vector<32x96xf32>
    %cst_27 = arith.constant dense<0.000000e+00> : vector<10x96xf32>
    %43 = tpu.matmul %40, %42, %cst_27 {dimension_numbers = #tpu.dot_dimension_numbers<[1], [0], [0], [1], [0, 0, 1, 1], [], []>} : vector<10x32xf32>, vector<32x96xf32>, vector<10x96xf32> -> vector<10x96xf32>
    %c0_28 = arith.constant 0 : index
    %c0_29 = arith.constant 0 : index
    %c0_30 = arith.constant 0 : index
    %44 = vector.load %arg6[%c0_28, %c0_29, %c0_30] : memref<2x1x96xf32, #tpu.memory_space<vmem>>, vector<1x1x96xf32>
    %45 = vector.shape_cast %44 : vector<1x1x96xf32> to vector<1x96xf32>
    %46 = vector.broadcast %45 : vector<1x96xf32> to vector<10x96xf32>
    %47 = arith.addf %43, %46 : vector<10x96xf32>
    %48 = vector.shape_cast %47 : vector<10x96xf32> to vector<2x5x96xf32>
    %c0_31 = arith.constant 0 : index
    %c0_32 = arith.constant 0 : index
    %c0_33 = arith.constant 0 : index
    %49 = vector.load %arg7[%c0_31, %c0_32, %c0_33] : memref<2x32x32xf32, #tpu.memory_space<vmem>>, vector<1x32x32xf32>
    %50 = vector.shape_cast %49 : vector<1x32x32xf32> to vector<32x32xf32>
    %cst_34 = arith.constant 0.000000e+00 : f32
    %51 = vector.broadcast %cst_34 : f32 to vector<10x32xf32>
    %52 = vector.extract_strided_slice %48 {offsets = [0, 0, 0], sizes = [2, 5, 16], strides = [1, 1, 1]} : vector<2x5x96xf32> to vector<2x5x16xf32>
    %53 = vector.extract_strided_slice %48 {offsets = [0, 0, 32], sizes = [2, 5, 16], strides = [1, 1, 1]} : vector<2x5x96xf32> to vector<2x5x16xf32>
    %54 = vector.extract_strided_slice %48 {offsets = [0, 0, 64], sizes = [2, 5, 16], strides = [1, 1, 1]} : vector<2x5x96xf32> to vector<2x5x16xf32>
    "tpu.trace_start"() <{level = 10 : i32, message = "bnd,bmd->bnm"}> : () -> ()
    %cst_35 = arith.constant dense<0.000000e+00> : vector<2x5x5xf32>
    %55 = tpu.matmul %52, %53, %cst_35 {dimension_numbers = #tpu.dot_dimension_numbers<[2], [2], [1], [1], [0, 0, 0, 1, 1, 1], [0], [0]>} : vector<2x5x16xf32>, vector<2x5x16xf32>, vector<2x5x5xf32> -> vector<2x5x5xf32>
    "tpu.trace_stop"() : () -> ()
    %cst_36 = arith.constant dense<0xFF800000> : vector<2x5xf32>
    %56 = vector.multi_reduction <maximumf>, %55, %cst_36 [2] : vector<2x5x5xf32> to vector<2x5xf32>
    %57 = vector.shape_cast %56 : vector<2x5xf32> to vector<2x5x1xf32>
    %58 = vector.broadcast %57 : vector<2x5x1xf32> to vector<2x5x5xf32>
    %59 = arith.subf %55, %58 : vector<2x5x5xf32>
    %60 = math.exp %59 : vector<2x5x5xf32>
    %cst_37 = arith.constant dense<0.000000e+00> : vector<2x5xf32>
    %61 = vector.multi_reduction <add>, %60, %cst_37 [2] : vector<2x5x5xf32> to vector<2x5xf32>
    %62 = vector.shape_cast %61 : vector<2x5xf32> to vector<2x5x1xf32>
    %63 = tpu.reciprocal %62 {approx = true} : vector<2x5x1xf32> -> vector<2x5x1xf32>
    %64 = vector.broadcast %63 : vector<2x5x1xf32> to vector<2x5x5xf32>
    %65 = arith.mulf %60, %64 : vector<2x5x5xf32>
    "tpu.trace_start"() <{level = 10 : i32, message = "bnm,bmd->bnd"}> : () -> ()
    %cst_38 = arith.constant dense<0.000000e+00> : vector<2x5x16xf32>
    %66 = tpu.matmul %65, %54, %cst_38 {dimension_numbers = #tpu.dot_dimension_numbers<[2], [1], [1], [2], [0, 0, 0, 1, 1, 2], [0], [0]>} : vector<2x5x5xf32>, vector<2x5x16xf32>, vector<2x5x16xf32> -> vector<2x5x16xf32>
    "tpu.trace_stop"() : () -> ()
    %67 = vector.shape_cast %66 : vector<2x5x16xf32> to vector<10x16xf32>
    %68 = vector.extract_strided_slice %50 {offsets = [0, 0], sizes = [16, 32], strides = [1, 1]} : vector<32x32xf32> to vector<16x32xf32>
    %cst_39 = arith.constant dense<0.000000e+00> : vector<10x32xf32>
    %69 = tpu.matmul %67, %68, %cst_39 {dimension_numbers = #tpu.dot_dimension_numbers<[1], [0], [0], [1], [0, 0, 1, 1], [], []>} : vector<10x16xf32>, vector<16x32xf32>, vector<10x32xf32> -> vector<10x32xf32>
    %70 = arith.addf %51, %69 : vector<10x32xf32>
    %71 = vector.extract_strided_slice %48 {offsets = [0, 0, 16], sizes = [2, 5, 16], strides = [1, 1, 1]} : vector<2x5x96xf32> to vector<2x5x16xf32>
    %72 = vector.extract_strided_slice %48 {offsets = [0, 0, 48], sizes = [2, 5, 16], strides = [1, 1, 1]} : vector<2x5x96xf32> to vector<2x5x16xf32>
    %73 = vector.extract_strided_slice %48 {offsets = [0, 0, 80], sizes = [2, 5, 16], strides = [1, 1, 1]} : vector<2x5x96xf32> to vector<2x5x16xf32>
    "tpu.trace_start"() <{level = 10 : i32, message = "bnd,bmd->bnm"}> : () -> ()
    %cst_40 = arith.constant dense<0.000000e+00> : vector<2x5x5xf32>
    %74 = tpu.matmul %71, %72, %cst_40 {dimension_numbers = #tpu.dot_dimension_numbers<[2], [2], [1], [1], [0, 0, 0, 1, 1, 1], [0], [0]>} : vector<2x5x16xf32>, vector<2x5x16xf32>, vector<2x5x5xf32> -> vector<2x5x5xf32>
    "tpu.trace_stop"() : () -> ()
    %cst_41 = arith.constant dense<0xFF800000> : vector<2x5xf32>
    %75 = vector.multi_reduction <maximumf>, %74, %cst_41 [2] : vector<2x5x5xf32> to vector<2x5xf32>
    %76 = vector.shape_cast %75 : vector<2x5xf32> to vector<2x5x1xf32>
    %77 = vector.broadcast %76 : vector<2x5x1xf32> to vector<2x5x5xf32>
    %78 = arith.subf %74, %77 : vector<2x5x5xf32>
    %79 = math.exp %78 : vector<2x5x5xf32>
    %cst_42 = arith.constant dense<0.000000e+00> : vector<2x5xf32>
    %80 = vector.multi_reduction <add>, %79, %cst_42 [2] : vector<2x5x5xf32> to vector<2x5xf32>
    %81 = vector.shape_cast %80 : vector<2x5xf32> to vector<2x5x1xf32>
    %82 = tpu.reciprocal %81 {approx = true} : vector<2x5x1xf32> -> vector<2x5x1xf32>
    %83 = vector.broadcast %82 : vector<2x5x1xf32> to vector<2x5x5xf32>
    %84 = arith.mulf %79, %83 : vector<2x5x5xf32>
    "tpu.trace_start"() <{level = 10 : i32, message = "bnm,bmd->bnd"}> : () -> ()
    %cst_43 = arith.constant dense<0.000000e+00> : vector<2x5x16xf32>
    %85 = tpu.matmul %84, %73, %cst_43 {dimension_numbers = #tpu.dot_dimension_numbers<[2], [1], [1], [2], [0, 0, 0, 1, 1, 2], [0], [0]>} : vector<2x5x5xf32>, vector<2x5x16xf32>, vector<2x5x16xf32> -> vector<2x5x16xf32>
    "tpu.trace_stop"() : () -> ()
    %86 = vector.shape_cast %85 : vector<2x5x16xf32> to vector<10x16xf32>
    %87 = vector.extract_strided_slice %50 {offsets = [16, 0], sizes = [16, 32], strides = [1, 1]} : vector<32x32xf32> to vector<16x32xf32>
    %cst_44 = arith.constant dense<0.000000e+00> : vector<10x32xf32>
    %88 = tpu.matmul %86, %87, %cst_44 {dimension_numbers = #tpu.dot_dimension_numbers<[1], [0], [0], [1], [0, 0, 1, 1], [], []>} : vector<10x16xf32>, vector<16x32xf32>, vector<10x32xf32> -> vector<10x32xf32>
    %89 = arith.addf %70, %88 : vector<10x32xf32>
    %90 = arith.addf %16, %89 : vector<10x32xf32>
    %c0_45 = arith.constant 0 : index
    %c0_46 = arith.constant 0 : index
    %c0_47 = arith.constant 0 : index
    %91 = vector.load %arg8[%c0_45, %c0_46, %c0_47] : memref<2x1x32xf32, #tpu.memory_space<vmem>>, vector<1x1x32xf32>
    %92 = vector.shape_cast %91 : vector<1x1x32xf32> to vector<1x32xf32>
    %93 = vector.broadcast %92 : vector<1x32xf32> to vector<10x32xf32>
    %94 = arith.addf %90, %93 : vector<10x32xf32>
    %c0_48 = arith.constant 0 : index
    %c0_49 = arith.constant 0 : index
    %c0_50 = arith.constant 0 : index
    %95 = vector.load %arg9[%c0_48, %c0_49, %c0_50] : memref<2x1x32xf32, #tpu.memory_space<vmem>>, vector<1x1x32xf32>
    %96 = vector.shape_cast %95 : vector<1x1x32xf32> to vector<1x32xf32>
    %c0_51 = arith.constant 0 : index
    %c0_52 = arith.constant 0 : index
    %c0_53 = arith.constant 0 : index
    %97 = vector.load %arg10[%c0_51, %c0_52, %c0_53] : memref<2x1x32xf32, #tpu.memory_space<vmem>>, vector<1x1x32xf32>
    %98 = vector.shape_cast %97 : vector<1x1x32xf32> to vector<1x32xf32>
    %cst_54 = arith.constant dense<0.000000e+00> : vector<10xf32>
    %99 = vector.multi_reduction <add>, %94, %cst_54 [1] : vector<10x32xf32> to vector<10xf32>
    %100 = vector.shape_cast %99 : vector<10xf32> to vector<10x1xf32>
    %cst_55 = arith.constant 3.200000e+01 : f32
    %101 = vector.broadcast %cst_55 : f32 to vector<10x1xf32>
    %102 = arith.divf %100, %101 : vector<10x1xf32>
    %103 = vector.broadcast %102 : vector<10x1xf32> to vector<10x32xf32>
    %104 = arith.subf %94, %103 : vector<10x32xf32>
    %105 = arith.mulf %104, %104 : vector<10x32xf32>
    %cst_56 = arith.constant dense<0.000000e+00> : vector<10xf32>
    %106 = vector.multi_reduction <add>, %105, %cst_56 [1] : vector<10x32xf32> to vector<10xf32>
    %107 = vector.shape_cast %106 : vector<10xf32> to vector<10x1xf32>
    %cst_57 = arith.constant 3.200000e+01 : f32
    %108 = vector.broadcast %cst_57 : f32 to vector<10x1xf32>
    %109 = arith.divf %107, %108 : vector<10x1xf32>
    %cst_58 = arith.constant 9.99999997E-7 : f32
    %110 = vector.broadcast %cst_58 : f32 to vector<10x1xf32>
    %111 = arith.addf %109, %110 : vector<10x1xf32>
    %112 = math.rsqrt %111 : vector<10x1xf32>
    %113 = vector.broadcast %112 : vector<10x1xf32> to vector<10x32xf32>
    %114 = arith.mulf %104, %113 : vector<10x32xf32>
    %115 = vector.broadcast %96 : vector<1x32xf32> to vector<10x32xf32>
    %116 = arith.mulf %114, %115 : vector<10x32xf32>
    %117 = vector.broadcast %98 : vector<1x32xf32> to vector<10x32xf32>
    %118 = arith.addf %116, %117 : vector<10x32xf32>
    %c0_59 = arith.constant 0 : index
    %c0_60 = arith.constant 0 : index
    %c0_61 = arith.constant 0 : index
    %119 = vector.load %arg11[%c0_59, %c0_60, %c0_61] : memref<2x32x128xf32, #tpu.memory_space<vmem>>, vector<1x32x128xf32>
    %120 = vector.shape_cast %119 : vector<1x32x128xf32> to vector<32x128xf32>
    %cst_62 = arith.constant dense<0.000000e+00> : vector<10x128xf32>
    %121 = tpu.matmul %118, %120, %cst_62 {dimension_numbers = #tpu.dot_dimension_numbers<[1], [0], [0], [1], [0, 0, 1, 1], [], []>} : vector<10x32xf32>, vector<32x128xf32>, vector<10x128xf32> -> vector<10x128xf32>
    %c0_63 = arith.constant 0 : index
    %c0_64 = arith.constant 0 : index
    %c0_65 = arith.constant 0 : index
    %122 = vector.load %arg12[%c0_63, %c0_64, %c0_65] : memref<2x1x128xf32, #tpu.memory_space<vmem>>, vector<1x1x128xf32>
    %123 = vector.shape_cast %122 : vector<1x1x128xf32> to vector<1x128xf32>
    %124 = vector.broadcast %123 : vector<1x128xf32> to vector<10x128xf32>
    %125 = arith.addf %121, %124 : vector<10x128xf32>
    %cst_66 = arith.constant 5.000000e-01 : f32
    %126 = vector.broadcast %cst_66 : f32 to vector<10x128xf32>
    %127 = arith.mulf %126, %125 : vector<10x128xf32>
    %cst_67 = arith.constant 0.707106769 : f32
    %128 = vector.broadcast %cst_67 : f32 to vector<10x128xf32>
    %129 = arith.mulf %125, %128 : vector<10x128xf32>
    %cst_68 = arith.constant 0.000000e+00 : f32
    %130 = vector.broadcast %cst_68 : f32 to vector<10x128xf32>
    %131 = arith.cmpf oge, %129, %130 : vector<10x128xf32>
    %cst_69 = arith.constant 1.000000e+00 : f32
    %cst_70 = arith.constant -1.000000e+00 : f32
    %132 = vector.broadcast %cst_69 : f32 to vector<10x128xf32>
    %133 = vector.broadcast %cst_70 : f32 to vector<10x128xf32>
    %134 = arith.select %131, %132, %133 : vector<10x128xi1>, vector<10x128xf32>
    %135 = math.absf %129 : vector<10x128xf32>
    %cst_71 = arith.constant 0.327591091 : f32
    %136 = vector.broadcast %cst_71 : f32 to vector<10x128xf32>
    %137 = arith.mulf %136, %135 : vector<10x128xf32>
    %cst_72 = arith.constant 1.000000e+00 : f32
    %138 = vector.broadcast %cst_72 : f32 to vector<10x128xf32>
    %139 = arith.addf %138, %137 : vector<10x128xf32>
    %cst_73 = arith.constant 1.000000e+00 : f32
    %140 = vector.broadcast %cst_73 : f32 to vector<10x128xf32>
    %141 = arith.divf %140, %139 : vector<10x128xf32>
    %cst_74 = arith.constant 1.06140542 : f32
    %142 = vector.broadcast %cst_74 : f32 to vector<10x128xf32>
    %143 = arith.mulf %142, %141 : vector<10x128xf32>
    %cst_75 = arith.constant -1.45315206 : f32
    %144 = vector.broadcast %cst_75 : f32 to vector<10x128xf32>
    %145 = arith.addf %143, %144 : vector<10x128xf32>
    %146 = arith.mulf %145, %141 : vector<10x128xf32>
    %cst_76 = arith.constant 1.42141378 : f32
    %147 = vector.broadcast %cst_76 : f32 to vector<10x128xf32>
    %148 = arith.addf %146, %147 : vector<10x128xf32>
    %149 = arith.mulf %148, %141 : vector<10x128xf32>
    %cst_77 = arith.constant -0.284496725 : f32
    %150 = vector.broadcast %cst_77 : f32 to vector<10x128xf32>
    %151 = arith.addf %149, %150 : vector<10x128xf32>
    %152 = arith.mulf %151, %141 : vector<10x128xf32>
    %cst_78 = arith.constant 0.254829586 : f32
    %153 = vector.broadcast %cst_78 : f32 to vector<10x128xf32>
    %154 = arith.addf %152, %153 : vector<10x128xf32>
    %155 = arith.mulf %154, %141 : vector<10x128xf32>
    %cst_79 = arith.constant 0.000000e+00 : f32
    %156 = vector.broadcast %cst_79 : f32 to vector<10x128xf32>
    %157 = arith.subf %156, %135 : vector<10x128xf32>
    %158 = arith.mulf %157, %135 : vector<10x128xf32>
    %159 = math.exp %158 : vector<10x128xf32>
    %160 = arith.mulf %155, %159 : vector<10x128xf32>
    %cst_80 = arith.constant 1.000000e+00 : f32
    %161 = vector.broadcast %cst_80 : f32 to vector<10x128xf32>
    %162 = arith.subf %161, %160 : vector<10x128xf32>
    %163 = arith.mulf %134, %162 : vector<10x128xf32>
    %cst_81 = arith.constant 1.000000e+00 : f32
    %164 = vector.broadcast %cst_81 : f32 to vector<10x128xf32>
    %165 = arith.addf %164, %163 : vector<10x128xf32>
    %166 = arith.mulf %127, %165 : vector<10x128xf32>
    %c0_82 = arith.constant 0 : index
    %c0_83 = arith.constant 0 : index
    %c0_84 = arith.constant 0 : index
    %167 = vector.load %arg13[%c0_82, %c0_83, %c0_84] : memref<2x128x32xf32, #tpu.memory_space<vmem>>, vector<1x128x32xf32>
    %168 = vector.shape_cast %167 : vector<1x128x32xf32> to vector<128x32xf32>
    %cst_85 = arith.constant dense<0.000000e+00> : vector<10x32xf32>
    %169 = tpu.matmul %166, %168, %cst_85 {dimension_numbers = #tpu.dot_dimension_numbers<[1], [0], [0], [1], [0, 0, 1, 1], [], []>} : vector<10x128xf32>, vector<128x32xf32>, vector<10x32xf32> -> vector<10x32xf32>
    %170 = arith.addf %94, %169 : vector<10x32xf32>
    %c0_86 = arith.constant 0 : index
    %c0_87 = arith.constant 0 : index
    %c0_88 = arith.constant 0 : index
    %171 = vector.load %arg14[%c0_86, %c0_87, %c0_88] : memref<2x1x32xf32, #tpu.memory_space<vmem>>, vector<1x1x32xf32>
    %172 = vector.shape_cast %171 : vector<1x1x32xf32> to vector<1x32xf32>
    %173 = vector.broadcast %172 : vector<1x32xf32> to vector<10x32xf32>
    %174 = arith.addf %170, %173 : vector<10x32xf32>
    %c1_89 = arith.constant 1 : index
    %c0_90 = arith.constant 0 : index
    %c0_91 = arith.constant 0 : index
    %175 = vector.load %arg3[%c1_89, %c0_90, %c0_91] : memref<2x1x32xf32, #tpu.memory_space<vmem>>, vector<1x1x32xf32>
    %176 = vector.shape_cast %175 : vector<1x1x32xf32> to vector<1x32xf32>
    %c1_92 = arith.constant 1 : index
    %c0_93 = arith.constant 0 : index
    %c0_94 = arith.constant 0 : index
    %177 = vector.load %arg4[%c1_92, %c0_93, %c0_94] : memref<2x1x32xf32, #tpu.memory_space<vmem>>, vector<1x1x32xf32>
    %178 = vector.shape_cast %177 : vector<1x1x32xf32> to vector<1x32xf32>
    %cst_95 = arith.constant dense<0.000000e+00> : vector<10xf32>
    %179 = vector.multi_reduction <add>, %174, %cst_95 [1] : vector<10x32xf32> to vector<10xf32>
    %180 = vector.shape_cast %179 : vector<10xf32> to vector<10x1xf32>
    %cst_96 = arith.constant 3.200000e+01 : f32
    %181 = vector.broadcast %cst_96 : f32 to vector<10x1xf32>
    %182 = arith.divf %180, %181 : vector<10x1xf32>
    %183 = vector.broadcast %182 : vector<10x1xf32> to vector<10x32xf32>
    %184 = arith.subf %174, %183 : vector<10x32xf32>
    %185 = arith.mulf %184, %184 : vector<10x32xf32>
    %cst_97 = arith.constant dense<0.000000e+00> : vector<10xf32>
    %186 = vector.multi_reduction <add>, %185, %cst_97 [1] : vector<10x32xf32> to vector<10xf32>
    %187 = vector.shape_cast %186 : vector<10xf32> to vector<10x1xf32>
    %cst_98 = arith.constant 3.200000e+01 : f32
    %188 = vector.broadcast %cst_98 : f32 to vector<10x1xf32>
    %189 = arith.divf %187, %188 : vector<10x1xf32>
    %cst_99 = arith.constant 9.99999997E-7 : f32
    %190 = vector.broadcast %cst_99 : f32 to vector<10x1xf32>
    %191 = arith.addf %189, %190 : vector<10x1xf32>
    %192 = math.rsqrt %191 : vector<10x1xf32>
    %193 = vector.broadcast %192 : vector<10x1xf32> to vector<10x32xf32>
    %194 = arith.mulf %184, %193 : vector<10x32xf32>
    %195 = vector.broadcast %176 : vector<1x32xf32> to vector<10x32xf32>
    %196 = arith.mulf %194, %195 : vector<10x32xf32>
    %197 = vector.broadcast %178 : vector<1x32xf32> to vector<10x32xf32>
    %198 = arith.addf %196, %197 : vector<10x32xf32>
    %c1_100 = arith.constant 1 : index
    %c0_101 = arith.constant 0 : index
    %c0_102 = arith.constant 0 : index
    %199 = vector.load %arg5[%c1_100, %c0_101, %c0_102] : memref<2x32x96xf32, #tpu.memory_space<vmem>>, vector<1x32x96xf32>
    %200 = vector.shape_cast %199 : vector<1x32x96xf32> to vector<32x96xf32>
    %cst_103 = arith.constant dense<0.000000e+00> : vector<10x96xf32>
    %201 = tpu.matmul %198, %200, %cst_103 {dimension_numbers = #tpu.dot_dimension_numbers<[1], [0], [0], [1], [0, 0, 1, 1], [], []>} : vector<10x32xf32>, vector<32x96xf32>, vector<10x96xf32> -> vector<10x96xf32>
    %c1_104 = arith.constant 1 : index
    %c0_105 = arith.constant 0 : index
    %c0_106 = arith.constant 0 : index
    %202 = vector.load %arg6[%c1_104, %c0_105, %c0_106] : memref<2x1x96xf32, #tpu.memory_space<vmem>>, vector<1x1x96xf32>
    %203 = vector.shape_cast %202 : vector<1x1x96xf32> to vector<1x96xf32>
    %204 = vector.broadcast %203 : vector<1x96xf32> to vector<10x96xf32>
    %205 = arith.addf %201, %204 : vector<10x96xf32>
    %206 = vector.shape_cast %205 : vector<10x96xf32> to vector<2x5x96xf32>
    %c1_107 = arith.constant 1 : index
    %c0_108 = arith.constant 0 : index
    %c0_109 = arith.constant 0 : index
    %207 = vector.load %arg7[%c1_107, %c0_108, %c0_109] : memref<2x32x32xf32, #tpu.memory_space<vmem>>, vector<1x32x32xf32>
    %208 = vector.shape_cast %207 : vector<1x32x32xf32> to vector<32x32xf32>
    %cst_110 = arith.constant 0.000000e+00 : f32
    %209 = vector.broadcast %cst_110 : f32 to vector<10x32xf32>
    %210 = vector.extract_strided_slice %206 {offsets = [0, 0, 0], sizes = [2, 5, 16], strides = [1, 1, 1]} : vector<2x5x96xf32> to vector<2x5x16xf32>
    %211 = vector.extract_strided_slice %206 {offsets = [0, 0, 32], sizes = [2, 5, 16], strides = [1, 1, 1]} : vector<2x5x96xf32> to vector<2x5x16xf32>
    %212 = vector.extract_strided_slice %206 {offsets = [0, 0, 64], sizes = [2, 5, 16], strides = [1, 1, 1]} : vector<2x5x96xf32> to vector<2x5x16xf32>
    "tpu.trace_start"() <{level = 10 : i32, message = "bnd,bmd->bnm"}> : () -> ()
    %cst_111 = arith.constant dense<0.000000e+00> : vector<2x5x5xf32>
    %213 = tpu.matmul %210, %211, %cst_111 {dimension_numbers = #tpu.dot_dimension_numbers<[2], [2], [1], [1], [0, 0, 0, 1, 1, 1], [0], [0]>} : vector<2x5x16xf32>, vector<2x5x16xf32>, vector<2x5x5xf32> -> vector<2x5x5xf32>
    "tpu.trace_stop"() : () -> ()
    %cst_112 = arith.constant dense<0xFF800000> : vector<2x5xf32>
    %214 = vector.multi_reduction <maximumf>, %213, %cst_112 [2] : vector<2x5x5xf32> to vector<2x5xf32>
    %215 = vector.shape_cast %214 : vector<2x5xf32> to vector<2x5x1xf32>
    %216 = vector.broadcast %215 : vector<2x5x1xf32> to vector<2x5x5xf32>
    %217 = arith.subf %213, %216 : vector<2x5x5xf32>
    %218 = math.exp %217 : vector<2x5x5xf32>
    %cst_113 = arith.constant dense<0.000000e+00> : vector<2x5xf32>
    %219 = vector.multi_reduction <add>, %218, %cst_113 [2] : vector<2x5x5xf32> to vector<2x5xf32>
    %220 = vector.shape_cast %219 : vector<2x5xf32> to vector<2x5x1xf32>
    %221 = tpu.reciprocal %220 {approx = true} : vector<2x5x1xf32> -> vector<2x5x1xf32>
    %222 = vector.broadcast %221 : vector<2x5x1xf32> to vector<2x5x5xf32>
    %223 = arith.mulf %218, %222 : vector<2x5x5xf32>
    "tpu.trace_start"() <{level = 10 : i32, message = "bnm,bmd->bnd"}> : () -> ()
    %cst_114 = arith.constant dense<0.000000e+00> : vector<2x5x16xf32>
    %224 = tpu.matmul %223, %212, %cst_114 {dimension_numbers = #tpu.dot_dimension_numbers<[2], [1], [1], [2], [0, 0, 0, 1, 1, 2], [0], [0]>} : vector<2x5x5xf32>, vector<2x5x16xf32>, vector<2x5x16xf32> -> vector<2x5x16xf32>
    "tpu.trace_stop"() : () -> ()
    %225 = vector.shape_cast %224 : vector<2x5x16xf32> to vector<10x16xf32>
    %226 = vector.extract_strided_slice %208 {offsets = [0, 0], sizes = [16, 32], strides = [1, 1]} : vector<32x32xf32> to vector<16x32xf32>
    %cst_115 = arith.constant dense<0.000000e+00> : vector<10x32xf32>
    %227 = tpu.matmul %225, %226, %cst_115 {dimension_numbers = #tpu.dot_dimension_numbers<[1], [0], [0], [1], [0, 0, 1, 1], [], []>} : vector<10x16xf32>, vector<16x32xf32>, vector<10x32xf32> -> vector<10x32xf32>
    %228 = arith.addf %209, %227 : vector<10x32xf32>
    %229 = vector.extract_strided_slice %206 {offsets = [0, 0, 16], sizes = [2, 5, 16], strides = [1, 1, 1]} : vector<2x5x96xf32> to vector<2x5x16xf32>
    %230 = vector.extract_strided_slice %206 {offsets = [0, 0, 48], sizes = [2, 5, 16], strides = [1, 1, 1]} : vector<2x5x96xf32> to vector<2x5x16xf32>
    %231 = vector.extract_strided_slice %206 {offsets = [0, 0, 80], sizes = [2, 5, 16], strides = [1, 1, 1]} : vector<2x5x96xf32> to vector<2x5x16xf32>
    "tpu.trace_start"() <{level = 10 : i32, message = "bnd,bmd->bnm"}> : () -> ()
    %cst_116 = arith.constant dense<0.000000e+00> : vector<2x5x5xf32>
    %232 = tpu.matmul %229, %230, %cst_116 {dimension_numbers = #tpu.dot_dimension_numbers<[2], [2], [1], [1], [0, 0, 0, 1, 1, 1], [0], [0]>} : vector<2x5x16xf32>, vector<2x5x16xf32>, vector<2x5x5xf32> -> vector<2x5x5xf32>
    "tpu.trace_stop"() : () -> ()
    %cst_117 = arith.constant dense<0xFF800000> : vector<2x5xf32>
    %233 = vector.multi_reduction <maximumf>, %232, %cst_117 [2] : vector<2x5x5xf32> to vector<2x5xf32>
    %234 = vector.shape_cast %233 : vector<2x5xf32> to vector<2x5x1xf32>
    %235 = vector.broadcast %234 : vector<2x5x1xf32> to vector<2x5x5xf32>
    %236 = arith.subf %232, %235 : vector<2x5x5xf32>
    %237 = math.exp %236 : vector<2x5x5xf32>
    %cst_118 = arith.constant dense<0.000000e+00> : vector<2x5xf32>
    %238 = vector.multi_reduction <add>, %237, %cst_118 [2] : vector<2x5x5xf32> to vector<2x5xf32>
    %239 = vector.shape_cast %238 : vector<2x5xf32> to vector<2x5x1xf32>
    %240 = tpu.reciprocal %239 {approx = true} : vector<2x5x1xf32> -> vector<2x5x1xf32>
    %241 = vector.broadcast %240 : vector<2x5x1xf32> to vector<2x5x5xf32>
    %242 = arith.mulf %237, %241 : vector<2x5x5xf32>
    "tpu.trace_start"() <{level = 10 : i32, message = "bnm,bmd->bnd"}> : () -> ()
    %cst_119 = arith.constant dense<0.000000e+00> : vector<2x5x16xf32>
    %243 = tpu.matmul %242, %231, %cst_119 {dimension_numbers = #tpu.dot_dimension_numbers<[2], [1], [1], [2], [0, 0, 0, 1, 1, 2], [0], [0]>} : vector<2x5x5xf32>, vector<2x5x16xf32>, vector<2x5x16xf32> -> vector<2x5x16xf32>
    "tpu.trace_stop"() : () -> ()
    %244 = vector.shape_cast %243 : vector<2x5x16xf32> to vector<10x16xf32>
    %245 = vector.extract_strided_slice %208 {offsets = [16, 0], sizes = [16, 32], strides = [1, 1]} : vector<32x32xf32> to vector<16x32xf32>
    %cst_120 = arith.constant dense<0.000000e+00> : vector<10x32xf32>
    %246 = tpu.matmul %244, %245, %cst_120 {dimension_numbers = #tpu.dot_dimension_numbers<[1], [0], [0], [1], [0, 0, 1, 1], [], []>} : vector<10x16xf32>, vector<16x32xf32>, vector<10x32xf32> -> vector<10x32xf32>
    %247 = arith.addf %228, %246 : vector<10x32xf32>
    %248 = arith.addf %174, %247 : vector<10x32xf32>
    %c1_121 = arith.constant 1 : index
    %c0_122 = arith.constant 0 : index
    %c0_123 = arith.constant 0 : index
    %249 = vector.load %arg8[%c1_121, %c0_122, %c0_123] : memref<2x1x32xf32, #tpu.memory_space<vmem>>, vector<1x1x32xf32>
    %250 = vector.shape_cast %249 : vector<1x1x32xf32> to vector<1x32xf32>
    %251 = vector.broadcast %250 : vector<1x32xf32> to vector<10x32xf32>
    %252 = arith.addf %248, %251 : vector<10x32xf32>
    %c1_124 = arith.constant 1 : index
    %c0_125 = arith.constant 0 : index
    %c0_126 = arith.constant 0 : index
    %253 = vector.load %arg9[%c1_124, %c0_125, %c0_126] : memref<2x1x32xf32, #tpu.memory_space<vmem>>, vector<1x1x32xf32>
    %254 = vector.shape_cast %253 : vector<1x1x32xf32> to vector<1x32xf32>
    %c1_127 = arith.constant 1 : index
    %c0_128 = arith.constant 0 : index
    %c0_129 = arith.constant 0 : index
    %255 = vector.load %arg10[%c1_127, %c0_128, %c0_129] : memref<2x1x32xf32, #tpu.memory_space<vmem>>, vector<1x1x32xf32>
    %256 = vector.shape_cast %255 : vector<1x1x32xf32> to vector<1x32xf32>
    %cst_130 = arith.constant dense<0.000000e+00> : vector<10xf32>
    %257 = vector.multi_reduction <add>, %252, %cst_130 [1] : vector<10x32xf32> to vector<10xf32>
    %258 = vector.shape_cast %257 : vector<10xf32> to vector<10x1xf32>
    %cst_131 = arith.constant 3.200000e+01 : f32
    %259 = vector.broadcast %cst_131 : f32 to vector<10x1xf32>
    %260 = arith.divf %258, %259 : vector<10x1xf32>
    %261 = vector.broadcast %260 : vector<10x1xf32> to vector<10x32xf32>
    %262 = arith.subf %252, %261 : vector<10x32xf32>
    %263 = arith.mulf %262, %262 : vector<10x32xf32>
    %cst_132 = arith.constant dense<0.000000e+00> : vector<10xf32>
    %264 = vector.multi_reduction <add>, %263, %cst_132 [1] : vector<10x32xf32> to vector<10xf32>
    %265 = vector.shape_cast %264 : vector<10xf32> to vector<10x1xf32>
    %cst_133 = arith.constant 3.200000e+01 : f32
    %266 = vector.broadcast %cst_133 : f32 to vector<10x1xf32>
    %267 = arith.divf %265, %266 : vector<10x1xf32>
    %cst_134 = arith.constant 9.99999997E-7 : f32
    %268 = vector.broadcast %cst_134 : f32 to vector<10x1xf32>
    %269 = arith.addf %267, %268 : vector<10x1xf32>
    %270 = math.rsqrt %269 : vector<10x1xf32>
    %271 = vector.broadcast %270 : vector<10x1xf32> to vector<10x32xf32>
    %272 = arith.mulf %262, %271 : vector<10x32xf32>
    %273 = vector.broadcast %254 : vector<1x32xf32> to vector<10x32xf32>
    %274 = arith.mulf %272, %273 : vector<10x32xf32>
    %275 = vector.broadcast %256 : vector<1x32xf32> to vector<10x32xf32>
    %276 = arith.addf %274, %275 : vector<10x32xf32>
    %c1_135 = arith.constant 1 : index
    %c0_136 = arith.constant 0 : index
    %c0_137 = arith.constant 0 : index
    %277 = vector.load %arg11[%c1_135, %c0_136, %c0_137] : memref<2x32x128xf32, #tpu.memory_space<vmem>>, vector<1x32x128xf32>
    %278 = vector.shape_cast %277 : vector<1x32x128xf32> to vector<32x128xf32>
    %cst_138 = arith.constant dense<0.000000e+00> : vector<10x128xf32>
    %279 = tpu.matmul %276, %278, %cst_138 {dimension_numbers = #tpu.dot_dimension_numbers<[1], [0], [0], [1], [0, 0, 1, 1], [], []>} : vector<10x32xf32>, vector<32x128xf32>, vector<10x128xf32> -> vector<10x128xf32>
    %c1_139 = arith.constant 1 : index
    %c0_140 = arith.constant 0 : index
    %c0_141 = arith.constant 0 : index
    %280 = vector.load %arg12[%c1_139, %c0_140, %c0_141] : memref<2x1x128xf32, #tpu.memory_space<vmem>>, vector<1x1x128xf32>
    %281 = vector.shape_cast %280 : vector<1x1x128xf32> to vector<1x128xf32>
    %282 = vector.broadcast %281 : vector<1x128xf32> to vector<10x128xf32>
    %283 = arith.addf %279, %282 : vector<10x128xf32>
    %cst_142 = arith.constant 5.000000e-01 : f32
    %284 = vector.broadcast %cst_142 : f32 to vector<10x128xf32>
    %285 = arith.mulf %284, %283 : vector<10x128xf32>
    %cst_143 = arith.constant 0.707106769 : f32
    %286 = vector.broadcast %cst_143 : f32 to vector<10x128xf32>
    %287 = arith.mulf %283, %286 : vector<10x128xf32>
    %cst_144 = arith.constant 0.000000e+00 : f32
    %288 = vector.broadcast %cst_144 : f32 to vector<10x128xf32>
    %289 = arith.cmpf oge, %287, %288 : vector<10x128xf32>
    %cst_145 = arith.constant 1.000000e+00 : f32
    %cst_146 = arith.constant -1.000000e+00 : f32
    %290 = vector.broadcast %cst_145 : f32 to vector<10x128xf32>
    %291 = vector.broadcast %cst_146 : f32 to vector<10x128xf32>
    %292 = arith.select %289, %290, %291 : vector<10x128xi1>, vector<10x128xf32>
    %293 = math.absf %287 : vector<10x128xf32>
    %cst_147 = arith.constant 0.327591091 : f32
    %294 = vector.broadcast %cst_147 : f32 to vector<10x128xf32>
    %295 = arith.mulf %294, %293 : vector<10x128xf32>
    %cst_148 = arith.constant 1.000000e+00 : f32
    %296 = vector.broadcast %cst_148 : f32 to vector<10x128xf32>
    %297 = arith.addf %296, %295 : vector<10x128xf32>
    %cst_149 = arith.constant 1.000000e+00 : f32
    %298 = vector.broadcast %cst_149 : f32 to vector<10x128xf32>
    %299 = arith.divf %298, %297 : vector<10x128xf32>
    %cst_150 = arith.constant 1.06140542 : f32
    %300 = vector.broadcast %cst_150 : f32 to vector<10x128xf32>
    %301 = arith.mulf %300, %299 : vector<10x128xf32>
    %cst_151 = arith.constant -1.45315206 : f32
    %302 = vector.broadcast %cst_151 : f32 to vector<10x128xf32>
    %303 = arith.addf %301, %302 : vector<10x128xf32>
    %304 = arith.mulf %303, %299 : vector<10x128xf32>
    %cst_152 = arith.constant 1.42141378 : f32
    %305 = vector.broadcast %cst_152 : f32 to vector<10x128xf32>
    %306 = arith.addf %304, %305 : vector<10x128xf32>
    %307 = arith.mulf %306, %299 : vector<10x128xf32>
    %cst_153 = arith.constant -0.284496725 : f32
    %308 = vector.broadcast %cst_153 : f32 to vector<10x128xf32>
    %309 = arith.addf %307, %308 : vector<10x128xf32>
    %310 = arith.mulf %309, %299 : vector<10x128xf32>
    %cst_154 = arith.constant 0.254829586 : f32
    %311 = vector.broadcast %cst_154 : f32 to vector<10x128xf32>
    %312 = arith.addf %310, %311 : vector<10x128xf32>
    %313 = arith.mulf %312, %299 : vector<10x128xf32>
    %cst_155 = arith.constant 0.000000e+00 : f32
    %314 = vector.broadcast %cst_155 : f32 to vector<10x128xf32>
    %315 = arith.subf %314, %293 : vector<10x128xf32>
    %316 = arith.mulf %315, %293 : vector<10x128xf32>
    %317 = math.exp %316 : vector<10x128xf32>
    %318 = arith.mulf %313, %317 : vector<10x128xf32>
    %cst_156 = arith.constant 1.000000e+00 : f32
    %319 = vector.broadcast %cst_156 : f32 to vector<10x128xf32>
    %320 = arith.subf %319, %318 : vector<10x128xf32>
    %321 = arith.mulf %292, %320 : vector<10x128xf32>
    %cst_157 = arith.constant 1.000000e+00 : f32
    %322 = vector.broadcast %cst_157 : f32 to vector<10x128xf32>
    %323 = arith.addf %322, %321 : vector<10x128xf32>
    %324 = arith.mulf %285, %323 : vector<10x128xf32>
    %c1_158 = arith.constant 1 : index
    %c0_159 = arith.constant 0 : index
    %c0_160 = arith.constant 0 : index
    %325 = vector.load %arg13[%c1_158, %c0_159, %c0_160] : memref<2x128x32xf32, #tpu.memory_space<vmem>>, vector<1x128x32xf32>
    %326 = vector.shape_cast %325 : vector<1x128x32xf32> to vector<128x32xf32>
    %cst_161 = arith.constant dense<0.000000e+00> : vector<10x32xf32>
    %327 = tpu.matmul %324, %326, %cst_161 {dimension_numbers = #tpu.dot_dimension_numbers<[1], [0], [0], [1], [0, 0, 1, 1], [], []>} : vector<10x128xf32>, vector<128x32xf32>, vector<10x32xf32> -> vector<10x32xf32>
    %328 = arith.addf %252, %327 : vector<10x32xf32>
    %c1_162 = arith.constant 1 : index
    %c0_163 = arith.constant 0 : index
    %c0_164 = arith.constant 0 : index
    %329 = vector.load %arg14[%c1_162, %c0_163, %c0_164] : memref<2x1x32xf32, #tpu.memory_space<vmem>>, vector<1x1x32xf32>
    %330 = vector.shape_cast %329 : vector<1x1x32xf32> to vector<1x32xf32>
    %331 = vector.broadcast %330 : vector<1x32xf32> to vector<10x32xf32>
    %332 = arith.addf %328, %331 : vector<10x32xf32>
    %333 = vector.shape_cast %332 : vector<10x32xf32> to vector<2x5x32xf32>
    %334 = vector.extract_strided_slice %333 {offsets = [0, 0, 0], sizes = [2, 1, 32], strides = [1, 1, 1]} : vector<2x5x32xf32> to vector<2x1x32xf32>
    %335 = vector.shape_cast %334 : vector<2x1x32xf32> to vector<2x32xf32>
    %c0_165 = arith.constant 0 : index
    %c0_166 = arith.constant 0 : index
    %336 = vector.load %arg15[%c0_165, %c0_166] : memref<1x32xf32, #tpu.memory_space<vmem>>, vector<1x32xf32>
    %c0_167 = arith.constant 0 : index
    %c0_168 = arith.constant 0 : index
    %337 = vector.load %arg16[%c0_167, %c0_168] : memref<1x32xf32, #tpu.memory_space<vmem>>, vector<1x32xf32>
    %cst_169 = arith.constant dense<0.000000e+00> : vector<2xf32>
    %338 = vector.multi_reduction <add>, %335, %cst_169 [1] : vector<2x32xf32> to vector<2xf32>
    %339 = vector.shape_cast %338 : vector<2xf32> to vector<2x1xf32>
    %cst_170 = arith.constant 3.200000e+01 : f32
    %340 = vector.broadcast %cst_170 : f32 to vector<2x1xf32>
    %341 = arith.divf %339, %340 : vector<2x1xf32>
    %342 = vector.broadcast %341 : vector<2x1xf32> to vector<2x32xf32>
    %343 = arith.subf %335, %342 : vector<2x32xf32>
    %344 = arith.mulf %343, %343 : vector<2x32xf32>
    %cst_171 = arith.constant dense<0.000000e+00> : vector<2xf32>
    %345 = vector.multi_reduction <add>, %344, %cst_171 [1] : vector<2x32xf32> to vector<2xf32>
    %346 = vector.shape_cast %345 : vector<2xf32> to vector<2x1xf32>
    %cst_172 = arith.constant 3.200000e+01 : f32
    %347 = vector.broadcast %cst_172 : f32 to vector<2x1xf32>
    %348 = arith.divf %346, %347 : vector<2x1xf32>
    %cst_173 = arith.constant 9.99999997E-7 : f32
    %349 = vector.broadcast %cst_173 : f32 to vector<2x1xf32>
    %350 = arith.addf %348, %349 : vector<2x1xf32>
    %351 = math.rsqrt %350 : vector<2x1xf32>
    %352 = vector.broadcast %351 : vector<2x1xf32> to vector<2x32xf32>
    %353 = arith.mulf %343, %352 : vector<2x32xf32>
    %354 = vector.broadcast %336 : vector<1x32xf32> to vector<2x32xf32>
    %355 = arith.mulf %353, %354 : vector<2x32xf32>
    %356 = vector.broadcast %337 : vector<1x32xf32> to vector<2x32xf32>
    %357 = arith.addf %355, %356 : vector<2x32xf32>
    %c0_174 = arith.constant 0 : index
    %c0_175 = arith.constant 0 : index
    %358 = vector.load %arg17[%c0_174, %c0_175] : memref<2x32xf32, #tpu.memory_space<vmem>>, vector<2x32xf32>
    tpu.vector_store %arg17[%c0_174, %c0_175], %357 {strides = array<i32>} : memref<2x32xf32, #tpu.memory_space<vmem>>, vector<2x32xf32>,
    return
  }
}

</mosaic_0001>

<llo_original>
// kernel: network_forward.1
$region0: #{network_forward.1}
  #allocation0 [shape = 'u32[]', space=smem, size = 0x4, offset = 0x4, fixed_abs, tag = 'smem constant byte address 0x4 - core index']
  #allocation1 [shape = 'u32[144,128]{1,0:T(1,128)}', space=vmem, size = 0x12000, scoped, tag = 'internal scratch']
  #allocation2 [shape = 'f32[2,5,32]{2,1,0:T(8,128)}', space=vmem, size = 0x2000, scoped, tag = 'scratch operand']
  %s0 = inlined_call_operand.vmem [shape: f32[8,192], index: 0, kind: input, shape index: {}]
  %s1 = inlined_call_operand.vmem [shape: f32[192,32], index: 1, kind: input, shape index: {}]
  %s2 = inlined_call_operand.vmem [shape: f32[5,32], index: 2, kind: input, shape index: {}]
  %s3 = inlined_call_operand.vmem [shape: f32[2,1,32], index: 3, kind: input, shape index: {}]
  %s4 = inlined_call_operand.vmem [shape: f32[2,1,32], index: 4, kind: input, shape index: {}]
  %s5 = inlined_call_operand.vmem [shape: f32[2,32,96], index: 5, kind: input, shape index: {}]
  %s6 = inlined_call_operand.vmem [shape: f32[2,1,96], index: 6, kind: input, shape index: {}]
  %s7 = inlined_call_operand.vmem [shape: f32[2,32,32], index: 7, kind: input, shape index: {}]
  %s8 = inlined_call_operand.vmem [shape: f32[2,1,32], index: 8, kind: input, shape index: {}]
  %s9 = inlined_call_operand.vmem [shape: f32[2,1,32], index: 9, kind: input, shape index: {}]
  %s10 = inlined_call_operand.vmem [shape: f32[2,1,32], index: 10, kind: input, shape index: {}]
  %s11 = inlined_call_operand.vmem [shape: f32[2,32,128], index: 11, kind: input, shape index: {}]
  %s12 = inlined_call_operand.vmem [shape: f32[2,1,128], index: 12, kind: input, shape index: {}]
  %s13 = inlined_call_operand.vmem [shape: f32[2,128,32], index: 13, kind: input, shape index: {}]
  %s14 = inlined_call_operand.vmem [shape: f32[2,1,32], index: 14, kind: input, shape index: {}]
  %s15 = inlined_call_operand.vmem [shape: f32[1,32], index: 15, kind: input, shape index: {}]
  %s16 = inlined_call_operand.vmem [shape: f32[1,32], index: 16, kind: input, shape index: {}]
  %s17 = inlined_call_operand.hbm [shape: f32[2,32], index: 17, kind: output, shape index: {}]
  %s18 = sld [smem:[#allocation0]]
  $region78: #{network_forward.1} parent=0
    _
  %s20 = ssub.s32 1, %s18
  %s21 = scalar_select 0, %s20, %s18
  $region1: #{network_forward.1} parent=0
    #allocation3 [shape = 'u8[1024]{0}', space=vmem, size = 0x400, scoped, tag = 'output window, operand 0, single buffered']
    #allocation4 [shape = 's32[1]{0}', space=sflag, size = 0x4, scoped, tag = 'scoped memory for network_forward.1']
    %22 = vsyncpa [#allocation4], 0
    // Predicated region
    $region2: #{network_forward.1} parent=1 // pred_check
      _
    $region3: #{network_forward.1} parent=1 // pred_check_branch
      %24 = sbr.rel (0) target = $region5
    $region4: #{network_forward.1} parent=1 // pred_region
      _
    $region5: #{network_forward.1} parent=1 // pred_fallthru
      _
    // Predicated region
    $region6: #{network_forward.1} parent=1 // pred_check
      _
    $region7: #{network_forward.1} parent=1 // pred_check_branch
      %26 = sbr.rel (0) target = $region9
    $region8: #{network_forward.1} parent=1 // pred_region
      _
    $region9: #{network_forward.1} parent=1 // pred_fallthru
      _
    // Predicated region
    $region10: #{network_forward.1} parent=1 // pred_check
      _
    $region11: #{network_forward.1} parent=1 // pred_check_branch
      %28 = sbr.rel (0) target = $region13
    $region12: #{network_forward.1} parent=1 // pred_region
      _
    $region13: #{network_forward.1} parent=1 // pred_fallthru
      _
    // Predicated region
    $region14: #{network_forward.1} parent=1 // pred_check
      _
    $region15: #{network_forward.1} parent=1 // pred_check_branch
      %30 = sbr.rel (0) target = $region17
    $region16: #{network_forward.1} parent=1 // pred_region
      _
    $region17: #{network_forward.1} parent=1 // pred_fallthru
      _
    // Predicated region
    $region18: #{network_forward.1} parent=1 // pred_check
      _
    $region19: #{network_forward.1} parent=1 // pred_check_branch
      %32 = sbr.rel (0) target = $region21
    $region20: #{network_forward.1} parent=1 // pred_region
      _
    $region21: #{network_forward.1} parent=1 // pred_fallthru
      _
    // Predicated region
    $region22: #{network_forward.1} parent=1 // pred_check
      _
    $region23: #{network_forward.1} parent=1 // pred_check_branch
      %34 = sbr.rel (0) target = $region25
    $region24: #{network_forward.1} parent=1 // pred_region
      _
    $region25: #{network_forward.1} parent=1 // pred_fallthru
      _
    // Predicated region
    $region26: #{network_forward.1} parent=1 // pred_check
      _
    $region27: #{network_forward.1} parent=1 // pred_check_branch
      %36 = sbr.rel (0) target = $region29
    $region28: #{network_forward.1} parent=1 // pred_region
      _
    $region29: #{network_forward.1} parent=1 // pred_fallthru
      _
    // Predicated region
    $region30: #{network_forward.1} parent=1 // pred_check
      _
    $region31: #{network_forward.1} parent=1 // pred_check_branch
      %38 = sbr.rel (0) target = $region33
    $region32: #{network_forward.1} parent=1 // pred_region
      _
    $region33: #{network_forward.1} parent=1 // pred_fallthru
      _
    // Predicated region
    $region34: #{network_forward.1} parent=1 // pred_check
      _
    $region35: #{network_forward.1} parent=1 // pred_check_branch
      %40 = sbr.rel (0) target = $region37
    $region36: #{network_forward.1} parent=1 // pred_region
      _
    $region37: #{network_forward.1} parent=1 // pred_fallthru
      _
    // Predicated region
    $region38: #{network_forward.1} parent=1 // pred_check
      _
    $region39: #{network_forward.1} parent=1 // pred_check_branch
      %42 = sbr.rel (0) target = $region41
    $region40: #{network_forward.1} parent=1 // pred_region
      _
    $region41: #{network_forward.1} parent=1 // pred_fallthru
      _
    // Predicated region
    $region42: #{network_forward.1} parent=1 // pred_check
      _
    $region43: #{network_forward.1} parent=1 // pred_check_branch
      %44 = sbr.rel (0) target = $region45
    $region44: #{network_forward.1} parent=1 // pred_region
      _
    $region45: #{network_forward.1} parent=1 // pred_fallthru
      _
    // Predicated region
    $region46: #{network_forward.1} parent=1 // pred_check
      _
    $region47: #{network_forward.1} parent=1 // pred_check_branch
      %46 = sbr.rel (0) target = $region49
    $region48: #{network_forward.1} parent=1 // pred_region
      _
    $region49: #{network_forward.1} parent=1 // pred_fallthru
      _
    // Predicated region
    $region50: #{network_forward.1} parent=1 // pred_check
      _
    $region51: #{network_forward.1} parent=1 // pred_check_branch
      %48 = sbr.rel (0) target = $region53
    $region52: #{network_forward.1} parent=1 // pred_region
      _
    $region53: #{network_forward.1} parent=1 // pred_fallthru
      _
    // Predicated region
    $region54: #{network_forward.1} parent=1 // pred_check
      _
    $region55: #{network_forward.1} parent=1 // pred_check_branch
      %50 = sbr.rel (0) target = $region57
    $region56: #{network_forward.1} parent=1 // pred_region
      _
    $region57: #{network_forward.1} parent=1 // pred_fallthru
      _
    // Predicated region
    $region58: #{network_forward.1} parent=1 // pred_check
      _
    $region59: #{network_forward.1} parent=1 // pred_check_branch
      %52 = sbr.rel (0) target = $region61
    $region60: #{network_forward.1} parent=1 // pred_region
      _
    $region61: #{network_forward.1} parent=1 // pred_fallthru
      _
    // Predicated region
    $region62: #{network_forward.1} parent=1 // pred_check
      _
    $region63: #{network_forward.1} parent=1 // pred_check_branch
      %54 = sbr.rel (0) target = $region65
    $region64: #{network_forward.1} parent=1 // pred_region
      _
    $region65: #{network_forward.1} parent=1 // pred_fallthru
      _
    // Predicated region
    $region66: #{network_forward.1} parent=1 // pred_check
      _
    $region67: #{network_forward.1} parent=1 // pred_check_branch
      %56 = sbr.rel (0) target = $region69
    $region68: #{network_forward.1} parent=1 // pred_region
      _
    $region69: #{network_forward.1} parent=1 // pred_fallthru
      _
    %v57 = vld [vmem:[%s2] sm:$0x1f]
    %v58 = vld [vmem:[%s0] sm:$0xff]
    %v59 = vld [vmem:[%s0 + $0x8] sm:$0xff]
    %v60 = vld [vmem:[%s1] sm:$0xff]
    %v61 = vld [vmem:[%s1 + $0x8] sm:$0xff]
    %v62 = vld [vmem:[%s1 + $0x10] sm:$0xff]
    %v63 = vld [vmem:[%s1 + $0x18] sm:$0xff]
    %v64 = vld [vmem:[%s1 + $0x20] sm:$0xff]
    %v65 = vld [vmem:[%s1 + $0x28] sm:$0xff]
    %v66 = vld [vmem:[%s1 + $0x30] sm:$0xff]
    %v67 = vld [vmem:[%s1 + $0x38] sm:$0xff]
    %v68 = vld [vmem:[%s1 + $0x40] sm:$0xff]
    %v69 = vld [vmem:[%s1 + $0x48] sm:$0xff]
    %v70 = vld [vmem:[%s1 + $0x50] sm:$0xff]
    %v71 = vld [vmem:[%s1 + $0x58] sm:$0xff]
    %v72 = vld [vmem:[%s1 + $0x60] sm:$0xff]
    %v73 = vld [vmem:[%s1 + $0x68] sm:$0xff]
    %v74 = vld [vmem:[%s1 + $0x70] sm:$0xff]
    %v75 = vld [vmem:[%s1 + $0x78] sm:$0xff]
    %v76 = vld [vmem:[%s1 + $0x80] sm:$0xff]
    %v77 = vld [vmem:[%s1 + $0x88] sm:$0xff]
    %v78 = vld [vmem:[%s1 + $0x90] sm:$0xff]
    %v79 = vld [vmem:[%s1 + $0x98] sm:$0xff]
    %v80 = vld [vmem:[%s1 + $0xa0] sm:$0xff]
    %v81 = vld [vmem:[%s1 + $0xa8] sm:$0xff]
    %v82 = vld [vmem:[%s1 + $0xb0] sm:$0xff]
    %v83 = vld [vmem:[%s1 + $0xb8] sm:$0xff]
    %vm84 = vcmask 523264
    %v86 = vsel %vm84, %v59, 0
    %88 = vmatprep.subr.mxu0 0.0
    %89 = vmatpush1.msra.mxu0 %v60
    %90 = vmatprep.subr.mxu0 0.0
    %91 = vmatpush1.msra.mxu0 %v61
    %92 = vmatprep.subr.mxu0 0.0
    %93 = vmatpush1.msra.mxu0 %v62
    %94 = vmatprep.subr.mxu0 0.0
    %95 = vmatpush1.msra.mxu0 %v63
    %96 = vmatprep.subr.mxu0 0.0
    %97 = vmatpush1.msra.mxu0 %v64
    %98 = vmatprep.subr.mxu0 0.0
    %99 = vmatpush1.msra.mxu0 %v65
    %100 = vmatprep.subr.mxu0 0.0
    %101 = vmatpush1.msra.mxu0 %v66
    %102 = vmatprep.subr.mxu0 0.0
    %103 = vmatpush1.msra.mxu0 %v67
    %104 = vmatprep.subr.mxu0 0.0
    %105 = vmatpush1.msra.mxu0 %v68
    %106 = vmatprep.subr.mxu0 0.0
    %107 = vmatpush1.msra.mxu0 %v69
    %108 = vmatprep.subr.mxu0 0.0
    %109 = vmatpush1.msra.mxu0 %v70
    %110 = vmatprep.subr.mxu0 0.0
    %111 = vmatpush1.msra.mxu0 %v71
    %112 = vmatprep.subr.mxu0 0.0
    %113 = vmatpush1.msra.mxu0 %v72
    %114 = vmatprep.subr.mxu0 0.0
    %115 = vmatpush1.msra.mxu0 %v73
    %116 = vmatprep.subr.mxu0 0.0
    %117 = vmatpush1.msra.mxu0 %v74
    %118 = vmatprep.subr.mxu0 0.0
    %119 = vmatpush1.msra.mxu0 %v75
    %120 = vmatprep.subr.mxu0 0.0
    %121 = vmatpush1.msra.mxu0 %v76
    %122 = vmatprep.subr.mxu0 0.0
    %123 = vmatpush1.msra.mxu0 %v77
    %124 = vmatprep.subr.mxu0 0.0
    %125 = vmatpush1.msra.mxu0 %v78
    %126 = vmatprep.subr.mxu0 0.0
    %127 = vmatpush1.msra.mxu0 %v79
    %128 = vmatprep.subr.mxu0 0.0
    %129 = vmatpush1.msra.mxu0 %v80
    %130 = vmatprep.subr.mxu0 0.0
    %131 = vmatpush1.msra.mxu0 %v81
    %132 = vmatprep.subr.mxu0 0.0
    %133 = vmatpush1.msra.mxu0 %v82
    %134 = vmatprep.subr.mxu0 0.0
    %135 = vmatpush1.msra.mxu0 %v83
    %136 = vmatprep.subr.mxu0 0.0
    %137 = vmatpush1.msra.mxu0 0.0
    %138 = vmatprep.subr.mxu0 0.0
    %139 = vmatpush1.msra.mxu0 0.0
    %140 = vmatprep.subr.mxu0 0.0
    %141 = vmatpush1.msra.mxu0 0.0
    %142 = vmatprep.subr.mxu0 0.0
    %143 = vmatpush1.msra.mxu0 0.0
    %144 = vmatprep.subr.mxu0 0.0
    %145 = vmatpush1.msra.mxu0 0.0
    %146 = vmatprep.subr.mxu0 0.0
    %147 = vmatpush1.msra.mxu0 0.0
    %148 = vmatprep.subr.mxu0 0.0
    %149 = vmatpush1.msra.mxu0 0.0
    %150 = vmatprep.subr.mxu0 0.0
    %151 = vmatpush1.msra.mxu0 0.0
    %152 = vmatprep.mubr.f32.mxu0 %v86
    %153 = vmatmul.mubr.f32.gmra.mrb[0].mxu0 %v58
    %v154 = vpop.f32.mrb[0].mxu0
    %v155 = vadd.f32 0.0, %v154
    %v156 = vpop.f32.mrb[0].mxu0
    %157 = vdwg.mxu0
    %v159 = vcombine.high %v155, %v155
    %v162 = vcombine.high %v57, %v57
    %vm163 = vcmask 1042432
    %vm164 = vcmask 1046532
    %vm165 = vmor %vm163, %vm164
    %v166 = vrot.slane %v57, 5
    %v167 = vrot.slane %v166, 4
    %v168 = vrot.slane %v162, 5
    %v169 = vsel %vm165, %v167, %v168
    %v171 = vadd.f32 %v155, %v169
    %v172 = vadd.f32 %v159, %v169
    %vm173 = vcmask 257024
    %174 = vst.msk [vmem:[#allocation2 + $0x1] sm:$0xf] %vm173, %v171
    %175 = vst.msk [vmem:[#allocation2 + $0x9] sm:$0xf] %vm173, %v172
    %vm176 = vcmask 253952
    %177 = vst.msk [vmem:[#allocation2] sm:$0x1] %vm176, %v57
    %178 = vst.msk [vmem:[#allocation2 + $0x8] sm:$0x1] %vm176, %v57
    %v179 = vld [vmem:[#allocation2] sm:$0x1f]
    %v180 = vld [vmem:[#allocation2 + $0x8] sm:$0x1f]
    %v183 = vcombine.high %v179, %v179
    %v185 = vunpack.c.l.s4 1966171168
    %v186 = vunpack.c.0.s8 %v185
    %v187 = vlaneseq
    %v188 = vshrl.u32 %v187, 7
    %v189 = vsub.s32 %v186, %v188
    %v190 = vrot.slane %v179, %v189
    %v192 = vunpack.c.l.s4 1966171168
    %v193 = vunpack.c.0.s8 %v192
    %v194 = vlaneseq
    %v195 = vshrl.u32 %v194, 7
    %v196 = vsub.s32 %v193, %v195
    %v197 = vrot.slane %v183, %v196
    %v198 = vcombine.high %v190, %v190
    %v200 = vunpack.c.l.s4 1966171168
    %v201 = vunpack.c.0.s8 %v200
    %v202 = vlaneseq
    %v203 = vshrl.u32 %v202, 7
    %v204 = vsub.s32 %v201, %v203
    %v205 = vrot.slane %v190, %v204
    %v207 = vunpack.c.l.s4 1966171168
    %v208 = vunpack.c.0.s8 %v207
    %v209 = vlaneseq
    %v210 = vshrl.u32 %v209, 7
    %v211 = vsub.s32 %v208, %v210
    %v212 = vrot.slane %v197, %v211
    %v214 = vunpack.c.l.s4 1966171168
    %v215 = vunpack.c.0.s8 %v214
    %v216 = vlaneseq
    %v217 = vshrl.u32 %v216, 7
    %v218 = vsub.s32 %v215, %v217
    %v219 = vrot.slane %v198, %v218
    %v220 = vcombine.high %v205, %v205
    %v221 = vcombine.high %v219, %v219
    %v222 = vcombine.high %v180, %v180
    %v224 = vunpack.c.l.s4 1966171168
    %v225 = vunpack.c.0.s8 %v224
    %v226 = vlaneseq
    %v227 = vshrl.u32 %v226, 7
    %v228 = vsub.s32 %v225, %v227
    %v229 = vrot.slane %v180, %v228
    %v231 = vunpack.c.l.s4 1966171168
    %v232 = vunpack.c.0.s8 %v231
    %v233 = vlaneseq
    %v234 = vshrl.u32 %v233, 7
    %v235 = vsub.s32 %v232, %v234
    %v236 = vrot.slane %v222, %v235
    %v237 = vcombine.high %v229, %v229
    %v239 = vunpack.c.l.s4 1966171168
    %v240 = vunpack.c.0.s8 %v239
    %v241 = vlaneseq
    %v242 = vshrl.u32 %v241, 7
    %v243 = vsub.s32 %v240, %v242
    %v244 = vrot.slane %v229, %v243
    %v246 = vunpack.c.l.s4 1966171168
    %v247 = vunpack.c.0.s8 %v246
    %v248 = vlaneseq
    %v249 = vshrl.u32 %v248, 7
    %v250 = vsub.s32 %v247, %v249
    %v251 = vrot.slane %v236, %v250
    %v253 = vunpack.c.l.s4 1966171168
    %v254 = vunpack.c.0.s8 %v253
    %v255 = vlaneseq
    %v256 = vshrl.u32 %v255, 7
    %v257 = vsub.s32 %v254, %v256
    %v258 = vrot.slane %v237, %v257
    %v259 = vcombine.high %v244, %v244
    %v260 = vcombine.high %v258, %v258
    %v271 = vld [vmem:[%s3] sm:$0x1]
    %v272 = vld [vmem:[%s4] sm:$0x1]
    %v273 = vcombine.low %v205, %v219
    %v274 = vcombine.low %v220, %v221
    %v275 = vcombine.low %v212, %v244
    %v276 = vcombine.low %v258, %v259
    %v278 = vunpack.c.l.s4 1966171168
    %v279 = vunpack.c.0.s8 %v278
    %v280 = vlaneseq
    %v281 = vshrl.u32 %v280, 7
    %v282 = vsub.s32 %v279, %v281
    %v283 = vrot.slane %v273, %v282
    %v285 = vunpack.c.l.s4 1966171168
    %v286 = vunpack.c.0.s8 %v285
    %v287 = vlaneseq
    %v288 = vshrl.u32 %v287, 7
    %v289 = vsub.s32 %v286, %v288
    %v290 = vrot.slane %v274, %v289
    %v292 = vunpack.c.l.s4 1966171168
    %v293 = vunpack.c.0.s8 %v292
    %v294 = vlaneseq
    %v295 = vshrl.u32 %v294, 7
    %v296 = vsub.s32 %v293, %v295
    %v297 = vrot.slane %v275, %v296
    %v299 = vunpack.c.l.s4 1966171168
    %v300 = vunpack.c.0.s8 %v299
    %v301 = vlaneseq
    %v302 = vshrl.u32 %v301, 7
    %v303 = vsub.s32 %v300, %v302
    %v304 = vrot.slane %v276, %v303
    %v305 = vcombine.low %v283, %v290
    %v306 = vcombine.low %v297, %v304
    %v308 = vunpack.c.l.s4 1966171168
    %v309 = vunpack.c.0.s8 %v308
    %v310 = vlaneseq
    %v311 = vshrl.u32 %v310, 7
    %v312 = vsub.s32 %v309, %v311
    %v313 = vrot.slane %v305, %v312
    %v315 = vunpack.c.l.s4 1966171168
    %v316 = vunpack.c.0.s8 %v315
    %v317 = vlaneseq
    %v318 = vshrl.u32 %v317, 7
    %v319 = vsub.s32 %v316, %v318
    %v320 = vrot.slane %v306, %v319
    %v321 = vcombine.low %v313, %v320
    %v322 = vcombine.low %v260, %v251
    %v324 = vunpack.c.l.s4 1966171168
    %v325 = vunpack.c.0.s8 %v324
    %v326 = vlaneseq
    %v327 = vshrl.u32 %v326, 7
    %v328 = vsub.s32 %v325, %v327
    %v329 = vrot.slane %v322, %v328
    %v331 = vunpack.c.l.s4 1966171168
    %v332 = vunpack.c.0.s8 %v331
    %v333 = vlaneseq
    %v334 = vshrl.u32 %v333, 7
    %v335 = vsub.s32 %v332, %v334
    %v336 = vrot.slane %v329, %v335
    %vm339 = vcmask 261120
    %v340 = vsel %vm339, %v321, 0.0
    %341 = vadd.xlane.f32.xlu0 %v340
    %v342 = vpop.xlane.xlu0 %341
    %vm343 = vcmask 254976
    %v344 = vsel %vm343, %v336, 0.0
    %345 = vadd.xlane.f32.xlu0 %v344
    %v346 = vpop.xlane.xlu0 %345
    %v347 = vrcp.pop 32.0
    %v348 = vmul.f32 %v342, %v347
    %v349 = vmul.f32 %v346, %v347
    %v352 = vlaneseq
    %v353 = vshrl.u32 %v352, 7
    %v354 = vsub.s32 0, %v353
    %v355 = vrot.slane %v348, %v354
    %v356 = vlaneseq
    %v357 = vshrl.u32 %v356, 7
    %v358 = vsub.s32 1, %v357
    %v359 = vrot.slane %v348, %v358
    %v360 = vlaneseq
    %v361 = vshrl.u32 %v360, 7
    %v362 = vsub.s32 2, %v361
    %v363 = vrot.slane %v348, %v362
    %v364 = vlaneseq
    %v365 = vshrl.u32 %v364, 7
    %v366 = vsub.s32 3, %v365
    %v367 = vrot.slane %v348, %v366
    %v368 = vlaneseq
    %v369 = vshrl.u32 %v368, 7
    %v370 = vsub.s32 4, %v369
    %v371 = vrot.slane %v348, %v370
    %v372 = vlaneseq
    %v373 = vshrl.u32 %v372, 7
    %v374 = vsub.s32 5, %v373
    %v375 = vrot.slane %v348, %v374
    %v376 = vlaneseq
    %v377 = vshrl.u32 %v376, 7
    %v378 = vsub.s32 6, %v377
    %v379 = vrot.slane %v348, %v378
    %v380 = vlaneseq
    %v381 = vshrl.u32 %v380, 7
    %v382 = vsub.s32 7, %v381
    %v383 = vrot.slane %v348, %v382
    %v384 = vlaneseq
    %v385 = vshrl.u32 %v384, 7
    %v386 = vsub.s32 0, %v385
    %v387 = vrot.slane %v349, %v386
    %v388 = vlaneseq
    %v389 = vshrl.u32 %v388, 7
    %v390 = vsub.s32 1, %v389
    %v391 = vrot.slane %v349, %v390
    %v402 = vsub.f32 %v205, %v355
    %v403 = vsub.f32 %v219, %v359
    %v404 = vsub.f32 %v220, %v363
    %v405 = vsub.f32 %v221, %v367
    %v406 = vsub.f32 %v212, %v371
    %v407 = vsub.f32 %v244, %v375
    %v408 = vsub.f32 %v258, %v379
    %v409 = vsub.f32 %v259, %v383
    %v410 = vsub.f32 %v260, %v387
    %v411 = vsub.f32 %v251, %v391
    %v412 = vmul.f32 %v402, %v402
    %v413 = vmul.f32 %v403, %v403
    %v414 = vmul.f32 %v404, %v404
    %v415 = vmul.f32 %v405, %v405
    %v416 = vmul.f32 %v406, %v406
    %v417 = vmul.f32 %v407, %v407
    %v418 = vmul.f32 %v408, %v408
    %v419 = vmul.f32 %v409, %v409
    %v420 = vmul.f32 %v410, %v410
    %v421 = vmul.f32 %v411, %v411
    %v432 = vcombine.low %v412, %v413
    %v433 = vcombine.low %v414, %v415
    %v434 = vcombine.low %v416, %v417
    %v435 = vcombine.low %v418, %v419
    %v437 = vunpack.c.l.s4 1966171168
    %v438 = vunpack.c.0.s8 %v437
    %v439 = vlaneseq
    %v440 = vshrl.u32 %v439, 7
    %v441 = vsub.s32 %v438, %v440
    %v442 = vrot.slane %v432, %v441
    %v444 = vunpack.c.l.s4 1966171168
    %v445 = vunpack.c.0.s8 %v444
    %v446 = vlaneseq
    %v447 = vshrl.u32 %v446, 7
    %v448 = vsub.s32 %v445, %v447
    %v449 = vrot.slane %v433, %v448
    %v451 = vunpack.c.l.s4 1966171168
    %v452 = vunpack.c.0.s8 %v451
    %v453 = vlaneseq
    %v454 = vshrl.u32 %v453, 7
    %v455 = vsub.s32 %v452, %v454
    %v456 = vrot.slane %v434, %v455
    %v458 = vunpack.c.l.s4 1966171168
    %v459 = vunpack.c.0.s8 %v458
    %v460 = vlaneseq
    %v461 = vshrl.u32 %v460, 7
    %v462 = vsub.s32 %v459, %v461
    %v463 = vrot.slane %v435, %v462
    %v464 = vcombine.low %v442, %v449
    %v465 = vcombine.low %v456, %v463
    %v467 = vunpack.c.l.s4 1966171168
    %v468 = vunpack.c.0.s8 %v467
    %v469 = vlaneseq
    %v470 = vshrl.u32 %v469, 7
    %v471 = vsub.s32 %v468, %v470
    %v472 = vrot.slane %v464, %v471
    %v474 = vunpack.c.l.s4 1966171168
    %v475 = vunpack.c.0.s8 %v474
    %v476 = vlaneseq
    %v477 = vshrl.u32 %v476, 7
    %v478 = vsub.s32 %v475, %v477
    %v479 = vrot.slane %v465, %v478
    %v480 = vcombine.low %v472, %v479
    %v481 = vcombine.low %v420, %v421
    %v483 = vunpack.c.l.s4 1966171168
    %v484 = vunpack.c.0.s8 %v483
    %v485 = vlaneseq
    %v486 = vshrl.u32 %v485, 7
    %v487 = vsub.s32 %v484, %v486
    %v488 = vrot.slane %v481, %v487
    %v490 = vunpack.c.l.s4 1966171168
    %v491 = vunpack.c.0.s8 %v490
    %v492 = vlaneseq
    %v493 = vshrl.u32 %v492, 7
    %v494 = vsub.s32 %v491, %v493
    %v495 = vrot.slane %v488, %v494
    %v498 = vsel %vm339, %v480, 0.0
    %499 = vadd.xlane.f32.xlu0 %v498
    %v500 = vpop.xlane.xlu0 %499
    %v501 = vsel %vm343, %v495, 0.0
    %502 = vadd.xlane.f32.xlu0 %v501
    %v503 = vpop.xlane.xlu0 %502
    %v504 = vmul.f32 %v500, %v347
    %v505 = vmul.f32 %v503, %v347
    %v506 = vadd.f32 %v504, 1e-06
    %v507 = vadd.f32 %v505, 1e-06
    %v508 = vrsqrt.pop %v506
    %v509 = vrsqrt.pop %v507
    %v512 = vlaneseq
    %v513 = vshrl.u32 %v512, 7
    %v514 = vsub.s32 0, %v513
    %v515 = vrot.slane %v508, %v514
    %v516 = vlaneseq
    %v517 = vshrl.u32 %v516, 7
    %v518 = vsub.s32 1, %v517
    %v519 = vrot.slane %v508, %v518
    %v520 = vlaneseq
    %v521 = vshrl.u32 %v520, 7
    %v522 = vsub.s32 2, %v521
    %v523 = vrot.slane %v508, %v522
    %v524 = vlaneseq
    %v525 = vshrl.u32 %v524, 7
    %v526 = vsub.s32 3, %v525
    %v527 = vrot.slane %v508, %v526
    %v528 = vlaneseq
    %v529 = vshrl.u32 %v528, 7
    %v530 = vsub.s32 4, %v529
    %v531 = vrot.slane %v508, %v530
    %v532 = vlaneseq
    %v533 = vshrl.u32 %v532, 7
    %v534 = vsub.s32 5, %v533
    %v535 = vrot.slane %v508, %v534
    %v536 = vlaneseq
    %v537 = vshrl.u32 %v536, 7
    %v538 = vsub.s32 6, %v537
    %v539 = vrot.slane %v508, %v538
    %v540 = vlaneseq
    %v541 = vshrl.u32 %v540, 7
    %v542 = vsub.s32 7, %v541
    %v543 = vrot.slane %v508, %v542
    %v544 = vlaneseq
    %v545 = vshrl.u32 %v544, 7
    %v546 = vsub.s32 0, %v545
    %v547 = vrot.slane %v509, %v546
    %v548 = vlaneseq
    %v549 = vshrl.u32 %v548, 7
    %v550 = vsub.s32 1, %v549
    %v551 = vrot.slane %v509, %v550
    %v562 = vmul.f32 %v402, %v515
    %v563 = vmul.f32 %v403, %v519
    %v564 = vmul.f32 %v404, %v523
    %v565 = vmul.f32 %v405, %v527
    %v566 = vmul.f32 %v406, %v531
    %v567 = vmul.f32 %v407, %v535
    %v568 = vmul.f32 %v408, %v539
    %v569 = vmul.f32 %v409, %v543
    %v570 = vmul.f32 %v410, %v547
    %v571 = vmul.f32 %v411, %v551
    %v573 = vlaneseq
    %v574 = vshrl.u32 %v573, 7
    %v575 = vsub.s32 0, %v574
    %v576 = vrot.slane %v271, %v575
    %v577 = vcombine.high %v576, %v576
    %v579 = vunpack.c.l.s4 1966171168
    %v580 = vunpack.c.0.s8 %v579
    %v581 = vlaneseq
    %v582 = vshrl.u32 %v581, 7
    %v583 = vsub.s32 %v580, %v582
    %v584 = vrot.slane %v576, %v583
    %v586 = vunpack.c.l.s4 1966171168
    %v587 = vunpack.c.0.s8 %v586
    %v588 = vlaneseq
    %v589 = vshrl.u32 %v588, 7
    %v590 = vsub.s32 %v587, %v589
    %v591 = vrot.slane %v577, %v590
    %v592 = vcombine.high %v584, %v584
    %v593 = vcombine.high %v591, %v591
    %v595 = vunpack.c.l.s4 1966171168
    %v596 = vunpack.c.0.s8 %v595
    %v597 = vlaneseq
    %v598 = vshrl.u32 %v597, 7
    %v599 = vsub.s32 %v596, %v598
    %v600 = vrot.slane %v584, %v599
    %v602 = vunpack.c.l.s4 1966171168
    %v603 = vunpack.c.0.s8 %v602
    %v604 = vlaneseq
    %v605 = vshrl.u32 %v604, 7
    %v606 = vsub.s32 %v603, %v605
    %v607 = vrot.slane %v591, %v606
    %v609 = vunpack.c.l.s4 1966171168
    %v610 = vunpack.c.0.s8 %v609
    %v611 = vlaneseq
    %v612 = vshrl.u32 %v611, 7
    %v613 = vsub.s32 %v610, %v612
    %v614 = vrot.slane %v592, %v613
    %v616 = vunpack.c.l.s4 1966171168
    %v617 = vunpack.c.0.s8 %v616
    %v618 = vlaneseq
    %v619 = vshrl.u32 %v618, 7
    %v620 = vsub.s32 %v617, %v619
    %v621 = vrot.slane %v593, %v620
    %v622 = vcombine.high %v600, %v600
    %v623 = vcombine.high %v607, %v607
    %v624 = vcombine.high %v614, %v614
    %v625 = vcombine.high %v621, %v621
    %v634 = vmul.f32 %v562, %v600
    %v635 = vmul.f32 %v563, %v614
    %v636 = vmul.f32 %v564, %v622
    %v637 = vmul.f32 %v565, %v624
    %v638 = vmul.f32 %v566, %v607
    %v639 = vmul.f32 %v567, %v621
    %v640 = vmul.f32 %v568, %v623
    %v641 = vmul.f32 %v569, %v625
    %v642 = vmul.f32 %v570, %v600
    %v643 = vmul.f32 %v571, %v614
    %v645 = vlaneseq
    %v646 = vshrl.u32 %v645, 7
    %v647 = vsub.s32 0, %v646
    %v648 = vrot.slane %v272, %v647
    %v649 = vcombine.high %v648, %v648
    %v651 = vunpack.c.l.s4 1966171168
    %v652 = vunpack.c.0.s8 %v651
    %v653 = vlaneseq
    %v654 = vshrl.u32 %v653, 7
    %v655 = vsub.s32 %v652, %v654
    %v656 = vrot.slane %v648, %v655
    %v658 = vunpack.c.l.s4 1966171168
    %v659 = vunpack.c.0.s8 %v658
    %v660 = vlaneseq
    %v661 = vshrl.u32 %v660, 7
    %v662 = vsub.s32 %v659, %v661
    %v663 = vrot.slane %v649, %v662
    %v664 = vcombine.high %v656, %v656
    %v665 = vcombine.high %v663, %v663
    %v667 = vunpack.c.l.s4 1966171168
    %v668 = vunpack.c.0.s8 %v667
    %v669 = vlaneseq
    %v670 = vshrl.u32 %v669, 7
    %v671 = vsub.s32 %v668, %v670
    %v672 = vrot.slane %v656, %v671
    %v674 = vunpack.c.l.s4 1966171168
    %v675 = vunpack.c.0.s8 %v674
    %v676 = vlaneseq
    %v677 = vshrl.u32 %v676, 7
    %v678 = vsub.s32 %v675, %v677
    %v679 = vrot.slane %v663, %v678
    %v681 = vunpack.c.l.s4 1966171168
    %v682 = vunpack.c.0.s8 %v681
    %v683 = vlaneseq
    %v684 = vshrl.u32 %v683, 7
    %v685 = vsub.s32 %v682, %v684
    %v686 = vrot.slane %v664, %v685
    %v688 = vunpack.c.l.s4 1966171168
    %v689 = vunpack.c.0.s8 %v688
    %v690 = vlaneseq
    %v691 = vshrl.u32 %v690, 7
    %v692 = vsub.s32 %v689, %v691
    %v693 = vrot.slane %v665, %v692
    %v694 = vcombine.high %v672, %v672
    %v695 = vcombine.high %v679, %v679
    %v696 = vcombine.high %v686, %v686
    %v697 = vcombine.high %v693, %v693
    %v706 = vadd.f32 %v634, %v672
    %v707 = vadd.f32 %v635, %v686
    %v708 = vadd.f32 %v636, %v694
    %v709 = vadd.f32 %v637, %v696
    %v710 = vadd.f32 %v638, %v679
    %v711 = vadd.f32 %v639, %v693
    %v712 = vadd.f32 %v640, %v695
    %v713 = vadd.f32 %v641, %v697
    %v714 = vadd.f32 %v642, %v672
    %v715 = vadd.f32 %v643, %v686
    %v716 = vld [vmem:[%s5] sm:$0xff]
    %v717 = vld [vmem:[%s5 + $0x8] sm:$0xff]
    %v718 = vld [vmem:[%s5 + $0x10] sm:$0xff]
    %v719 = vld [vmem:[%s5 + $0x18] sm:$0xff]
    %v720 = vld [vmem:[%s6] sm:$0x1]
    %v722 = vlaneseq
    %v723 = vshrl.u32 %v722, 7
    %v724 = vsub.s32 0, %v723
    %v725 = vrot.slane %v720, %v724
    %v737 = vcombine.low %v706, %v707
    %v738 = vcombine.low %v708, %v709
    %v739 = vcombine.low %v710, %v711
    %v740 = vcombine.low %v712, %v713
    %v742 = vunpack.c.l.s4 1966171168
    %v743 = vunpack.c.0.s8 %v742
    %v744 = vlaneseq
    %v745 = vshrl.u32 %v744, 7
    %v746 = vsub.s32 %v743, %v745
    %v747 = vrot.slane %v737, %v746
    %v749 = vunpack.c.l.s4 1966171168
    %v750 = vunpack.c.0.s8 %v749
    %v751 = vlaneseq
    %v752 = vshrl.u32 %v751, 7
    %v753 = vsub.s32 %v750, %v752
    %v754 = vrot.slane %v738, %v753
    %v756 = vunpack.c.l.s4 1966171168
    %v757 = vunpack.c.0.s8 %v756
    %v758 = vlaneseq
    %v759 = vshrl.u32 %v758, 7
    %v760 = vsub.s32 %v757, %v759
    %v761 = vrot.slane %v739, %v760
    %v763 = vunpack.c.l.s4 1966171168
    %v764 = vunpack.c.0.s8 %v763
    %v765 = vlaneseq
    %v766 = vshrl.u32 %v765, 7
    %v767 = vsub.s32 %v764, %v766
    %v768 = vrot.slane %v740, %v767
    %v769 = vcombine.low %v747, %v754
    %v770 = vcombine.low %v761, %v768
    %v772 = vunpack.c.l.s4 1966171168
    %v773 = vunpack.c.0.s8 %v772
    %v774 = vlaneseq
    %v775 = vshrl.u32 %v774, 7
    %v776 = vsub.s32 %v773, %v775
    %v777 = vrot.slane %v769, %v776
    %v779 = vunpack.c.l.s4 1966171168
    %v780 = vunpack.c.0.s8 %v779
    %v781 = vlaneseq
    %v782 = vshrl.u32 %v781, 7
    %v783 = vsub.s32 %v780, %v782
    %v784 = vrot.slane %v770, %v783
    %v785 = vcombine.low %v777, %v784
    %v786 = vcombine.low %v714, %v715
    %v788 = vunpack.c.l.s4 1966171168
    %v789 = vunpack.c.0.s8 %v788
    %v790 = vlaneseq
    %v791 = vshrl.u32 %v790, 7
    %v792 = vsub.s32 %v789, %v791
    %v793 = vrot.slane %v786, %v792
    %v795 = vunpack.c.l.s4 1966171168
    %v796 = vunpack.c.0.s8 %v795
    %v797 = vlaneseq
    %v798 = vshrl.u32 %v797, 7
    %v799 = vsub.s32 %v796, %v798
    %v800 = vrot.slane %v793, %v799
    %v801 = vsel %vm339, %v785, 0
    %v803 = vsel %vm339, %v800, 0
    %805 = vmatprep.subr.mxu0 0.0
    %806 = vmatpush1.msra.mxu0 %v716
    %807 = vmatprep.subr.mxu0 0.0
    %808 = vmatpush1.msra.mxu0 %v717
    %809 = vmatprep.subr.mxu0 0.0
    %810 = vmatpush1.msra.mxu0 %v718
    %811 = vmatprep.subr.mxu0 0.0
    %812 = vmatpush1.msra.mxu0 %v719
    %813 = vmatprep.subr.mxu0 0.0
    %814 = vmatpush1.msra.mxu0 0.0
    %815 = vmatprep.subr.mxu0 0.0
    %816 = vmatpush1.msra.mxu0 0.0
    %817 = vmatprep.subr.mxu0 0.0
    %818 = vmatpush1.msra.mxu0 0.0
    %819 = vmatprep.subr.mxu0 0.0
    %820 = vmatpush1.msra.mxu0 0.0
    %821 = vmatprep.subr.mxu0 0.0
    %822 = vmatpush1.msra.mxu0 0.0
    %823 = vmatprep.subr.mxu0 0.0
    %824 = vmatpush1.msra.mxu0 0.0
    %825 = vmatprep.subr.mxu0 0.0
    %826 = vmatpush1.msra.mxu0 0.0
    %827 = vmatprep.subr.mxu0 0.0
    %828 = vmatpush1.msra.mxu0 0.0
    %829 = vmatprep.subr.mxu0 0.0
    %830 = vmatpush1.msra.mxu0 0.0
    %831 = vmatprep.subr.mxu0 0.0
    %832 = vmatpush1.msra.mxu0 0.0
    %833 = vmatprep.subr.mxu0 0.0
    %834 = vmatpush1.msra.mxu0 0.0
    %835 = vmatprep.subr.mxu0 0.0
    %836 = vmatpush1.msra.mxu0 0.0
    %837 = vmatprep.subr.mxu0 0.0
    %838 = vmatpush1.msra.mxu0 0.0
    %839 = vmatprep.subr.mxu0 0.0
    %840 = vmatpush1.msra.mxu0 0.0
    %841 = vmatprep.subr.mxu0 0.0
    %842 = vmatpush1.msra.mxu0 0.0
    %843 = vmatprep.subr.mxu0 0.0
    %844 = vmatpush1.msra.mxu0 0.0
    %845 = vmatprep.subr.mxu0 0.0
    %846 = vmatpush1.msra.mxu0 0.0
    %847 = vmatprep.subr.mxu0 0.0
    %848 = vmatpush1.msra.mxu0 0.0
    %849 = vmatprep.subr.mxu0 0.0
    %850 = vmatpush1.msra.mxu0 0.0
    %851 = vmatprep.subr.mxu0 0.0
    %852 = vmatpush1.msra.mxu0 0.0
    %853 = vmatprep.subr.mxu0 0.0
    %854 = vmatpush1.msra.mxu0 0.0
    %855 = vmatprep.subr.mxu0 0.0
    %856 = vmatpush1.msra.mxu0 0.0
    %857 = vmatprep.subr.mxu0 0.0
    %858 = vmatpush1.msra.mxu0 0.0
    %859 = vmatprep.subr.mxu0 0.0
    %860 = vmatpush1.msra.mxu0 0.0
    %861 = vmatprep.subr.mxu0 0.0
    %862 = vmatpush1.msra.mxu0 0.0
    %863 = vmatprep.subr.mxu0 0.0
    %864 = vmatpush1.msra.mxu0 0.0
    %865 = vmatprep.subr.mxu0 0.0
    %866 = vmatpush1.msra.mxu0 0.0
    %867 = vmatprep.subr.mxu0 0.0
    %868 = vmatpush1.msra.mxu0 0.0
    %869 = vmatprep.mubr.f32.mxu0 0.0
    %870 = vmatmul.mubr.f32.gmra.mrb[0].mxu0 %v801
    %v871 = vpop.f32.mrb[0].mxu0
    %v872 = vadd.f32 %v725, %v871
    %v873 = vpop.f32.mrb[0].mxu0
    %874 = vmatprep.mubr.f32.mxu0 0.0
    %875 = vmatmul.mubr.f32.gmra.mrb[0].mxu0 %v803
    %v876 = vpop.f32.mrb[0].mxu0
    %v877 = vadd.f32 %v725, %v876
    %v878 = vpop.f32.mrb[0].mxu0
    %879 = vdwg.mxu0
    %v882 = vcombine.high %v872, %v872
    %v884 = vunpack.c.l.s4 1966171168
    %v885 = vunpack.c.0.s8 %v884
    %v886 = vlaneseq
    %v887 = vshrl.u32 %v886, 7
    %v888 = vsub.s32 %v885, %v887
    %v889 = vrot.slane %v872, %v888
    %v891 = vunpack.c.l.s4 1966171168
    %v892 = vunpack.c.0.s8 %v891
    %v893 = vlaneseq
    %v894 = vshrl.u32 %v893, 7
    %v895 = vsub.s32 %v892, %v894
    %v896 = vrot.slane %v882, %v895
    %v897 = vcombine.high %v889, %v889
    %v898 = vcombine.high %v896, %v896
    %v900 = vunpack.c.l.s4 1966171168
    %v901 = vunpack.c.0.s8 %v900
    %v902 = vlaneseq
    %v903 = vshrl.u32 %v902, 7
    %v904 = vsub.s32 %v901, %v903
    %v905 = vrot.slane %v889, %v904
    %v907 = vunpack.c.l.s4 1966171168
    %v908 = vunpack.c.0.s8 %v907
    %v909 = vlaneseq
    %v910 = vshrl.u32 %v909, 7
    %v911 = vsub.s32 %v908, %v910
    %v912 = vrot.slane %v896, %v911
    %v914 = vunpack.c.l.s4 1966171168
    %v915 = vunpack.c.0.s8 %v914
    %v916 = vlaneseq
    %v917 = vshrl.u32 %v916, 7
    %v918 = vsub.s32 %v915, %v917
    %v919 = vrot.slane %v897, %v918
    %v921 = vunpack.c.l.s4 1966171168
    %v922 = vunpack.c.0.s8 %v921
    %v923 = vlaneseq
    %v924 = vshrl.u32 %v923, 7
    %v925 = vsub.s32 %v922, %v924
    %v926 = vrot.slane %v898, %v925
    %v927 = vcombine.high %v905, %v905
    %v928 = vcombine.high %v912, %v912
    %v929 = vcombine.high %v919, %v919
    %v930 = vcombine.high %v926, %v926
    %v932 = vunpack.c.l.s4 1966171168
    %v933 = vunpack.c.0.s8 %v932
    %v934 = vlaneseq
    %v935 = vshrl.u32 %v934, 7
    %v936 = vsub.s32 %v933, %v935
    %v937 = vrot.slane %v877, %v936
    %v938 = vcombine.high %v937, %v937
    %v940 = vunpack.c.l.s4 1966171168
    %v941 = vunpack.c.0.s8 %v940
    %v942 = vlaneseq
    %v943 = vshrl.u32 %v942, 7
    %v944 = vsub.s32 %v941, %v943
    %v945 = vrot.slane %v937, %v944
    %v947 = vunpack.c.l.s4 1966171168
    %v948 = vunpack.c.0.s8 %v947
    %v949 = vlaneseq
    %v950 = vshrl.u32 %v949, 7
    %v951 = vsub.s32 %v948, %v950
    %v952 = vrot.slane %v938, %v951
    %v953 = vld [vmem:[%s7] sm:$0xff]
    %v954 = vld [vmem:[%s7 + $0x8] sm:$0xff]
    %v955 = vld [vmem:[%s7 + $0x10] sm:$0xff]
    %v956 = vld [vmem:[%s7 + $0x18] sm:$0xff]
    %v957 = vcombine.low %v905, %v919
    %v958 = vcombine.low %v927, %v929
    %v960 = vunpack.c.l.s4 1966171168
    %v961 = vunpack.c.0.s8 %v960
    %v962 = vlaneseq
    %v963 = vshrl.u32 %v962, 7
    %v964 = vsub.s32 %v961, %v963
    %v965 = vrot.slane %v957, %v964
    %v967 = vunpack.c.l.s4 1966171168
    %v968 = vunpack.c.0.s8 %v967
    %v969 = vlaneseq
    %v970 = vshrl.u32 %v969, 7
    %v971 = vsub.s32 %v968, %v970
    %v972 = vrot.slane %v958, %v971
    %v974 = vunpack.c.l.s4 1966171168
    %v975 = vunpack.c.0.s8 %v974
    %v976 = vlaneseq
    %v977 = vshrl.u32 %v976, 7
    %v978 = vsub.s32 %v975, %v977
    %v979 = vrot.slane %v912, %v978
    %v980 = vcombine.low %v965, %v972
    %v982 = vunpack.c.l.s4 1966171168
    %v983 = vunpack.c.0.s8 %v982
    %v984 = vlaneseq
    %v985 = vshrl.u32 %v984, 7
    %v986 = vsub.s32 %v983, %v985
    %v987 = vrot.slane %v980, %v986
    %v989 = vunpack.c.l.s4 1966171168
    %v990 = vunpack.c.0.s8 %v989
    %v991 = vlaneseq
    %v992 = vshrl.u32 %v991, 7
    %v993 = vsub.s32 %v990, %v992
    %v994 = vrot.slane %v979, %v993
    %v995 = vcombine.low %v987, %v994
    %996 = vrot.lane.b32.xlu0 %v995, 96
    %v997 = vpop.permute.xlu0 %996
    %vm998 = vcmask 130048
    %v999 = vsel %vm998, %v995, 0
    %v1001 = vsel %vm998, %v997, 0
    %1003 = vmatprep.subr.mxu0 0.0
    %1004 = vmatpush1.xpose.msra.mxu0 %v1001
    %1005 = vmatprep.subr.mxu0 0.0
    %1006 = vmatpush1.xpose.msra.mxu0 0.0
    %1007 = vmatprep.subr.mxu0 0.0
    %1008 = vmatpush1.xpose.msra.mxu0 0.0
    %1009 = vmatprep.subr.mxu0 0.0
    %1010 = vmatpush1.xpose.msra.mxu0 0.0
    %1011 = vmatprep.subr.mxu0 0.0
    %1012 = vmatpush1.xpose.msra.mxu0 0.0
    %1013 = vmatprep.subr.mxu0 0.0
    %1014 = vmatpush1.xpose.msra.mxu0 0.0
    %1015 = vmatprep.subr.mxu0 0.0
    %1016 = vmatpush1.xpose.msra.mxu0 0.0
    %1017 = vmatprep.subr.mxu0 0.0
    %1018 = vmatpush1.xpose.msra.mxu0 0.0
    %1019 = vmatprep.subr.mxu0 0.0
    %1020 = vmatpush1.xpose.msra.mxu0 0.0
    %1021 = vmatprep.subr.mxu0 0.0
    %1022 = vmatpush1.xpose.msra.mxu0 0.0
    %1023 = vmatprep.subr.mxu0 0.0
    %1024 = vmatpush1.xpose.msra.mxu0 0.0
    %1025 = vmatprep.subr.mxu0 0.0
    %1026 = vmatpush1.xpose.msra.mxu0 0.0
    %1027 = vmatprep.subr.mxu0 0.0
    %1028 = vmatpush1.xpose.msra.mxu0 0.0
    %1029 = vmatprep.subr.mxu0 0.0
    %1030 = vmatpush1.xpose.msra.mxu0 0.0
    %1031 = vmatprep.subr.mxu0 0.0
    %1032 = vmatpush1.xpose.msra.mxu0 0.0
    %1033 = vmatprep.subr.mxu0 0.0
    %1034 = vmatpush1.xpose.msra.mxu0 0.0
    %1035 = vmatprep.subr.mxu0 0.0
    %1036 = vmatpush1.xpose.msra.mxu0 0.0
    %1037 = vmatprep.subr.mxu0 0.0
    %1038 = vmatpush1.xpose.msra.mxu0 0.0
    %1039 = vmatprep.subr.mxu0 0.0
    %1040 = vmatpush1.xpose.msra.mxu0 0.0
    %1041 = vmatprep.subr.mxu0 0.0
    %1042 = vmatpush1.xpose.msra.mxu0 0.0
    %1043 = vmatprep.subr.mxu0 0.0
    %1044 = vmatpush1.xpose.msra.mxu0 0.0
    %1045 = vmatprep.subr.mxu0 0.0
    %1046 = vmatpush1.xpose.msra.mxu0 0.0
    %1047 = vmatprep.subr.mxu0 0.0
    %1048 = vmatpush1.xpose.msra.mxu0 0.0
    %1049 = vmatprep.subr.mxu0 0.0
    %1050 = vmatpush1.xpose.msra.mxu0 0.0
    %1051 = vmatprep.subr.mxu0 0.0
    %1052 = vmatpush1.xpose.msra.mxu0 0.0
    %1053 = vmatprep.subr.mxu0 0.0
    %1054 = vmatpush1.xpose.msra.mxu0 0.0
    %1055 = vmatprep.subr.mxu0 0.0
    %1056 = vmatpush1.xpose.msra.mxu0 0.0
    %1057 = vmatprep.subr.mxu0 0.0
    %1058 = vmatpush1.xpose.msra.mxu0 0.0
    %1059 = vmatprep.subr.mxu0 0.0
    %1060 = vmatpush1.xpose.msra.mxu0 0.0
    %1061 = vmatprep.subr.mxu0 0.0
    %1062 = vmatpush1.xpose.msra.mxu0 0.0
    %1063 = vmatprep.subr.mxu0 0.0
    %1064 = vmatpush1.xpose.msra.mxu0 0.0
    %1065 = vmatprep.subr.mxu0 0.0
    %1066 = vmatpush1.xpose.msra.mxu0 0.0
    %1067 = vmatprep.mubr.f32.mxu0 0.0
    %1068 = vmatmul.mubr.f32.gmra.mrb[0].mxu0 %v999
    %v1069 = vpop.f32.mrb[0].mxu0
    %v1070 = vadd.f32 0.0, %v1069
    %v1071 = vpop.f32.mrb[0].mxu0
    %1072 = vdwg.mxu0
    %v1073 = vcombine.low %v926, %v928
    %v1074 = vcombine.low %v930, %v945
    %v1076 = vunpack.c.l.s4 1966171168
    %v1077 = vunpack.c.0.s8 %v1076
    %v1078 = vlaneseq
    %v1079 = vshrl.u32 %v1078, 7
    %v1080 = vsub.s32 %v1077, %v1079
    %v1081 = vrot.slane %v1073, %v1080
    %v1083 = vunpack.c.l.s4 1966171168
    %v1084 = vunpack.c.0.s8 %v1083
    %v1085 = vlaneseq
    %v1086 = vshrl.u32 %v1085, 7
    %v1087 = vsub.s32 %v1084, %v1086
    %v1088 = vrot.slane %v1074, %v1087
    %v1090 = vunpack.c.l.s4 1966171168
    %v1091 = vunpack.c.0.s8 %v1090
    %v1092 = vlaneseq
    %v1093 = vshrl.u32 %v1092, 7
    %v1094 = vsub.s32 %v1091, %v1093
    %v1095 = vrot.slane %v952, %v1094
    %v1096 = vcombine.low %v1081, %v1088
    %v1098 = vunpack.c.l.s4 1966171168
    %v1099 = vunpack.c.0.s8 %v1098
    %v1100 = vlaneseq
    %v1101 = vshrl.u32 %v1100, 7
    %v1102 = vsub.s32 %v1099, %v1101
    %v1103 = vrot.slane %v1096, %v1102
    %v1105 = vunpack.c.l.s4 1966171168
    %v1106 = vunpack.c.0.s8 %v1105
    %v1107 = vlaneseq
    %v1108 = vshrl.u32 %v1107, 7
    %v1109 = vsub.s32 %v1106, %v1108
    %v1110 = vrot.slane %v1095, %v1109
    %v1111 = vcombine.low %v1103, %v1110
    %1112 = vrot.lane.b32.xlu0 %v1111, 96
    %v1113 = vpop.permute.xlu0 %1112
    %v1114 = vsel %vm998, %v1111, 0
    %v1116 = vsel %vm998, %v1113, 0
    %1118 = vmatprep.subr.mxu0 0.0
    %1119 = vmatpush1.xpose.msra.mxu0 %v1116
    %1120 = vmatprep.subr.mxu0 0.0
    %1121 = vmatpush1.xpose.msra.mxu0 0.0
    %1122 = vmatprep.subr.mxu0 0.0
    %1123 = vmatpush1.xpose.msra.mxu0 0.0
    %1124 = vmatprep.subr.mxu0 0.0
    %1125 = vmatpush1.xpose.msra.mxu0 0.0
    %1126 = vmatprep.subr.mxu0 0.0
    %1127 = vmatpush1.xpose.msra.mxu0 0.0
    %1128 = vmatprep.subr.mxu0 0.0
    %1129 = vmatpush1.xpose.msra.mxu0 0.0
    %1130 = vmatprep.subr.mxu0 0.0
    %1131 = vmatpush1.xpose.msra.mxu0 0.0
    %1132 = vmatprep.subr.mxu0 0.0
    %1133 = vmatpush1.xpose.msra.mxu0 0.0
    %1134 = vmatprep.subr.mxu0 0.0
    %1135 = vmatpush1.xpose.msra.mxu0 0.0
    %1136 = vmatprep.subr.mxu0 0.0
    %1137 = vmatpush1.xpose.msra.mxu0 0.0
    %1138 = vmatprep.subr.mxu0 0.0
    %1139 = vmatpush1.xpose.msra.mxu0 0.0
    %1140 = vmatprep.subr.mxu0 0.0
    %1141 = vmatpush1.xpose.msra.mxu0 0.0
    %1142 = vmatprep.subr.mxu0 0.0
    %1143 = vmatpush1.xpose.msra.mxu0 0.0
    %1144 = vmatprep.subr.mxu0 0.0
    %1145 = vmatpush1.xpose.msra.mxu0 0.0
    %1146 = vmatprep.subr.mxu0 0.0
    %1147 = vmatpush1.xpose.msra.mxu0 0.0
    %1148 = vmatprep.subr.mxu0 0.0
    %1149 = vmatpush1.xpose.msra.mxu0 0.0
    %1150 = vmatprep.subr.mxu0 0.0
    %1151 = vmatpush1.xpose.msra.mxu0 0.0
    %1152 = vmatprep.subr.mxu0 0.0
    %1153 = vmatpush1.xpose.msra.mxu0 0.0
    %1154 = vmatprep.subr.mxu0 0.0
    %1155 = vmatpush1.xpose.msra.mxu0 0.0
    %1156 = vmatprep.subr.mxu0 0.0
    %1157 = vmatpush1.xpose.msra.mxu0 0.0
    %1158 = vmatprep.subr.mxu0 0.0
    %1159 = vmatpush1.xpose.msra.mxu0 0.0
    %1160 = vmatprep.subr.mxu0 0.0
    %1161 = vmatpush1.xpose.msra.mxu0 0.0
    %1162 = vmatprep.subr.mxu0 0.0
    %1163 = vmatpush1.xpose.msra.mxu0 0.0
    %1164 = vmatprep.subr.mxu0 0.0
    %1165 = vmatpush1.xpose.msra.mxu0 0.0
    %1166 = vmatprep.subr.mxu0 0.0
    %1167 = vmatpush1.xpose.msra.mxu0 0.0
    %1168 = vmatprep.subr.mxu0 0.0
    %1169 = vmatpush1.xpose.msra.mxu0 0.0
    %1170 = vmatprep.subr.mxu0 0.0
    %1171 = vmatpush1.xpose.msra.mxu0 0.0
    %1172 = vmatprep.subr.mxu0 0.0
    %1173 = vmatpush1.xpose.msra.mxu0 0.0
    %1174 = vmatprep.subr.mxu0 0.0
    %1175 = vmatpush1.xpose.msra.mxu0 0.0
    %1176 = vmatprep.subr.mxu0 0.0
    %1177 = vmatpush1.xpose.msra.mxu0 0.0
    %1178 = vmatprep.subr.mxu0 0.0
    %1179 = vmatpush1.xpose.msra.mxu0 0.0
    %1180 = vmatprep.subr.mxu0 0.0
    %1181 = vmatpush1.xpose.msra.mxu0 0.0
    %1182 = vmatprep.mubr.f32.mxu0 0.0
    %1183 = vmatmul.mubr.f32.gmra.mrb[0].mxu0 %v1114
    %v1184 = vpop.f32.mrb[0].mxu0
    %v1185 = vadd.f32 0.0, %v1184
    %v1186 = vpop.f32.mrb[0].mxu0
    %1187 = vdwg.mxu0
    %vm1188 = vcmask 36864
    %v1189 = vsel %vm1188, %v1070, -inf
    %1190 = vmax.xlane.f32.xlu0 %v1189
    %v1191 = vpop.xlane.xlu0 %1190
    %v1192 = vsel %vm1188, %v1185, -inf
    %1193 = vmax.xlane.f32.xlu0 %v1192
    %v1194 = vpop.xlane.xlu0 %1193
    %v1195 = vsub.f32 %v1070, %v1191
    %v1196 = vsub.f32 %v1185, %v1194
    %v1197 = vmul.f32 %v1195, 1.442695
    %v1198 = vpow.pop %v1197
    %v1199 = vmul.f32 %v1196, 1.442695
    %v1200 = vpow.pop %v1199
    %v1201 = vsel %vm1188, %v1198, 0.0
    %1202 = vadd.xlane.f32.xlu0 %v1201
    %v1203 = vpop.xlane.xlu0 %1202
    %v1204 = vsel %vm1188, %v1200, 0.0
    %1205 = vadd.xlane.f32.xlu0 %v1204
    %v1206 = vpop.xlane.xlu0 %1205
    %v1207 = vrcp.pop %v1203
    %v1208 = vrcp.pop %v1206
    %v1209 = vmul.f32 %v1198, %v1207
    %v1210 = vmul.f32 %v1200, %v1208
    %1211 = vrot.lane.b32.xlu0 %v995, 64
    %v1212 = vpop.permute.xlu0 %1211
    %vm1213 = vcmask 39936
    %v1215 = vsel %vm1213, %v1209, 0
    %vm1217 = vcmask 1044480
    %v1218 = vsel %vm1217, %v1212, 0
    %1220 = vmatprep.subr.mxu0 0.0
    %1221 = vmatpush1.msra.mxu0 %v1218
    %1222 = vmatprep.subr.mxu0 0.0
    %1223 = vmatpush1.msra.mxu0 0.0
    %1224 = vmatprep.subr.mxu0 0.0
    %1225 = vmatpush1.msra.mxu0 0.0
    %1226 = vmatprep.subr.mxu0 0.0
    %1227 = vmatpush1.msra.mxu0 0.0
    %1228 = vmatprep.subr.mxu0 0.0
    %1229 = vmatpush1.msra.mxu0 0.0
    %1230 = vmatprep.subr.mxu0 0.0
    %1231 = vmatpush1.msra.mxu0 0.0
    %1232 = vmatprep.subr.mxu0 0.0
    %1233 = vmatpush1.msra.mxu0 0.0
    %1234 = vmatprep.subr.mxu0 0.0
    %1235 = vmatpush1.msra.mxu0 0.0
    %1236 = vmatprep.subr.mxu0 0.0
    %1237 = vmatpush1.msra.mxu0 0.0
    %1238 = vmatprep.subr.mxu0 0.0
    %1239 = vmatpush1.msra.mxu0 0.0
    %1240 = vmatprep.subr.mxu0 0.0
    %1241 = vmatpush1.msra.mxu0 0.0
    %1242 = vmatprep.subr.mxu0 0.0
    %1243 = vmatpush1.msra.mxu0 0.0
    %1244 = vmatprep.subr.mxu0 0.0
    %1245 = vmatpush1.msra.mxu0 0.0
    %1246 = vmatprep.subr.mxu0 0.0
    %1247 = vmatpush1.msra.mxu0 0.0
    %1248 = vmatprep.subr.mxu0 0.0
    %1249 = vmatpush1.msra.mxu0 0.0
    %1250 = vmatprep.subr.mxu0 0.0
    %1251 = vmatpush1.msra.mxu0 0.0
    %1252 = vmatprep.subr.mxu0 0.0
    %1253 = vmatpush1.msra.mxu0 0.0
    %1254 = vmatprep.subr.mxu0 0.0
    %1255 = vmatpush1.msra.mxu0 0.0
    %1256 = vmatprep.subr.mxu0 0.0
    %1257 = vmatpush1.msra.mxu0 0.0
    %1258 = vmatprep.subr.mxu0 0.0
    %1259 = vmatpush1.msra.mxu0 0.0
    %1260 = vmatprep.subr.mxu0 0.0
    %1261 = vmatpush1.msra.mxu0 0.0
    %1262 = vmatprep.subr.mxu0 0.0
    %1263 = vmatpush1.msra.mxu0 0.0
    %1264 = vmatprep.subr.mxu0 0.0
    %1265 = vmatpush1.msra.mxu0 0.0
    %1266 = vmatprep.subr.mxu0 0.0
    %1267 = vmatpush1.msra.mxu0 0.0
    %1268 = vmatprep.subr.mxu0 0.0
    %1269 = vmatpush1.msra.mxu0 0.0
    %1270 = vmatprep.subr.mxu0 0.0
    %1271 = vmatpush1.msra.mxu0 0.0
    %1272 = vmatprep.subr.mxu0 0.0
    %1273 = vmatpush1.msra.mxu0 0.0
    %1274 = vmatprep.subr.mxu0 0.0
    %1275 = vmatpush1.msra.mxu0 0.0
    %1276 = vmatprep.subr.mxu0 0.0
    %1277 = vmatpush1.msra.mxu0 0.0
    %1278 = vmatprep.subr.mxu0 0.0
    %1279 = vmatpush1.msra.mxu0 0.0
    %1280 = vmatprep.subr.mxu0 0.0
    %1281 = vmatpush1.msra.mxu0 0.0
    %1282 = vmatprep.subr.mxu0 0.0
    %1283 = vmatpush1.msra.mxu0 0.0
    %1284 = vmatprep.mubr.f32.mxu0 0.0
    %1285 = vmatmul.mubr.f32.gmra.mrb[0].mxu0 %v1215
    %v1286 = vpop.f32.mrb[0].mxu0
    %v1287 = vadd.f32 0.0, %v1286
    %v1288 = vpop.f32.mrb[0].mxu0
    %1289 = vdwg.mxu0
    %1290 = vrot.lane.b32.xlu0 %v1111, 64
    %v1291 = vpop.permute.xlu0 %1290
    %v1293 = vsel %vm1213, %v1210, 0
    %v1295 = vsel %vm1217, %v1291, 0
    %1297 = vmatprep.subr.mxu0 0.0
    %1298 = vmatpush1.msra.mxu0 %v1295
    %1299 = vmatprep.subr.mxu0 0.0
    %1300 = vmatpush1.msra.mxu0 0.0
    %1301 = vmatprep.subr.mxu0 0.0
    %1302 = vmatpush1.msra.mxu0 0.0
    %1303 = vmatprep.subr.mxu0 0.0
    %1304 = vmatpush1.msra.mxu0 0.0
    %1305 = vmatprep.subr.mxu0 0.0
    %1306 = vmatpush1.msra.mxu0 0.0
    %1307 = vmatprep.subr.mxu0 0.0
    %1308 = vmatpush1.msra.mxu0 0.0
    %1309 = vmatprep.subr.mxu0 0.0
    %1310 = vmatpush1.msra.mxu0 0.0
    %1311 = vmatprep.subr.mxu0 0.0
    %1312 = vmatpush1.msra.mxu0 0.0
    %1313 = vmatprep.subr.mxu0 0.0
    %1314 = vmatpush1.msra.mxu0 0.0
    %1315 = vmatprep.subr.mxu0 0.0
    %1316 = vmatpush1.msra.mxu0 0.0
    %1317 = vmatprep.subr.mxu0 0.0
    %1318 = vmatpush1.msra.mxu0 0.0
    %1319 = vmatprep.subr.mxu0 0.0
    %1320 = vmatpush1.msra.mxu0 0.0
    %1321 = vmatprep.subr.mxu0 0.0
    %1322 = vmatpush1.msra.mxu0 0.0
    %1323 = vmatprep.subr.mxu0 0.0
    %1324 = vmatpush1.msra.mxu0 0.0
    %1325 = vmatprep.subr.mxu0 0.0
    %1326 = vmatpush1.msra.mxu0 0.0
    %1327 = vmatprep.subr.mxu0 0.0
    %1328 = vmatpush1.msra.mxu0 0.0
    %1329 = vmatprep.subr.mxu0 0.0
    %1330 = vmatpush1.msra.mxu0 0.0
    %1331 = vmatprep.subr.mxu0 0.0
    %1332 = vmatpush1.msra.mxu0 0.0
    %1333 = vmatprep.subr.mxu0 0.0
    %1334 = vmatpush1.msra.mxu0 0.0
    %1335 = vmatprep.subr.mxu0 0.0
    %1336 = vmatpush1.msra.mxu0 0.0
    %1337 = vmatprep.subr.mxu0 0.0
    %1338 = vmatpush1.msra.mxu0 0.0
    %1339 = vmatprep.subr.mxu0 0.0
    %1340 = vmatpush1.msra.mxu0 0.0
    %1341 = vmatprep.subr.mxu0 0.0
    %1342 = vmatpush1.msra.mxu0 0.0
    %1343 = vmatprep.subr.mxu0 0.0
    %1344 = vmatpush1.msra.mxu0 0.0
    %1345 = vmatprep.subr.mxu0 0.0
    %1346 = vmatpush1.msra.mxu0 0.0
    %1347 = vmatprep.subr.mxu0 0.0
    %1348 = vmatpush1.msra.mxu0 0.0
    %1349 = vmatprep.subr.mxu0 0.0
    %1350 = vmatpush1.msra.mxu0 0.0
    %1351 = vmatprep.subr.mxu0 0.0
    %1352 = vmatpush1.msra.mxu0 0.0
    %1353 = vmatprep.subr.mxu0 0.0
    %1354 = vmatpush1.msra.mxu0 0.0
    %1355 = vmatprep.subr.mxu0 0.0
    %1356 = vmatpush1.msra.mxu0 0.0
    %1357 = vmatprep.subr.mxu0 0.0
    %1358 = vmatpush1.msra.mxu0 0.0
    %1359 = vmatprep.subr.mxu0 0.0
    %1360 = vmatpush1.msra.mxu0 0.0
    %1361 = vmatprep.mubr.f32.mxu0 0.0
    %1362 = vmatmul.mubr.f32.gmra.mrb[0].mxu0 %v1293
    %v1363 = vpop.f32.mrb[0].mxu0
    %v1364 = vadd.f32 0.0, %v1363
    %v1365 = vpop.f32.mrb[0].mxu0
    %1366 = vdwg.mxu0
    %v1369 = vcombine.high %v1287, %v1287
    %v1371 = vunpack.c.l.s4 1966171168
    %v1372 = vunpack.c.0.s8 %v1371
    %v1373 = vlaneseq
    %v1374 = vshrl.u32 %v1373, 7
    %v1375 = vsub.s32 %v1372, %v1374
    %v1376 = vrot.slane %v1287, %v1375
    %v1378 = vunpack.c.l.s4 1966171168
    %v1379 = vunpack.c.0.s8 %v1378
    %v1380 = vlaneseq
    %v1381 = vshrl.u32 %v1380, 7
    %v1382 = vsub.s32 %v1379, %v1381
    %v1383 = vrot.slane %v1369, %v1382
    %v1384 = vcombine.high %v1376, %v1376
    %v1386 = vunpack.c.l.s4 1966171168
    %v1387 = vunpack.c.0.s8 %v1386
    %v1388 = vlaneseq
    %v1389 = vshrl.u32 %v1388, 7
    %v1390 = vsub.s32 %v1387, %v1389
    %v1391 = vrot.slane %v1376, %v1390
    %v1393 = vunpack.c.l.s4 1966171168
    %v1394 = vunpack.c.0.s8 %v1393
    %v1395 = vlaneseq
    %v1396 = vshrl.u32 %v1395, 7
    %v1397 = vsub.s32 %v1394, %v1396
    %v1398 = vrot.slane %v1383, %v1397
    %v1400 = vunpack.c.l.s4 1966171168
    %v1401 = vunpack.c.0.s8 %v1400
    %v1402 = vlaneseq
    %v1403 = vshrl.u32 %v1402, 7
    %v1404 = vsub.s32 %v1401, %v1403
    %v1405 = vrot.slane %v1384, %v1404
    %v1406 = vcombine.high %v1391, %v1391
    %v1407 = vcombine.high %v1405, %v1405
    %v1408 = vcombine.high %v1364, %v1364
    %v1410 = vunpack.c.l.s4 1966171168
    %v1411 = vunpack.c.0.s8 %v1410
    %v1412 = vlaneseq
    %v1413 = vshrl.u32 %v1412, 7
    %v1414 = vsub.s32 %v1411, %v1413
    %v1415 = vrot.slane %v1364, %v1414
    %v1417 = vunpack.c.l.s4 1966171168
    %v1418 = vunpack.c.0.s8 %v1417
    %v1419 = vlaneseq
    %v1420 = vshrl.u32 %v1419, 7
    %v1421 = vsub.s32 %v1418, %v1420
    %v1422 = vrot.slane %v1408, %v1421
    %v1423 = vcombine.high %v1415, %v1415
    %v1425 = vunpack.c.l.s4 1966171168
    %v1426 = vunpack.c.0.s8 %v1425
    %v1427 = vlaneseq
    %v1428 = vshrl.u32 %v1427, 7
    %v1429 = vsub.s32 %v1426, %v1428
    %v1430 = vrot.slane %v1415, %v1429
    %v1432 = vunpack.c.l.s4 1966171168
    %v1433 = vunpack.c.0.s8 %v1432
    %v1434 = vlaneseq
    %v1435 = vshrl.u32 %v1434, 7
    %v1436 = vsub.s32 %v1433, %v1435
    %v1437 = vrot.slane %v1422, %v1436
    %v1439 = vunpack.c.l.s4 1966171168
    %v1440 = vunpack.c.0.s8 %v1439
    %v1441 = vlaneseq
    %v1442 = vshrl.u32 %v1441, 7
    %v1443 = vsub.s32 %v1440, %v1442
    %v1444 = vrot.slane %v1423, %v1443
    %v1445 = vcombine.high %v1430, %v1430
    %v1446 = vcombine.high %v1444, %v1444
    %1447 = vrot.lane.b32.xlu0 %v995, 112
    %v1448 = vpop.permute.xlu0 %1447
    %1449 = vrot.lane.b32.xlu0 %v995, 80
    %v1450 = vpop.permute.xlu0 %1449
    %v1451 = vsel %vm998, %v1448, 0
    %v1453 = vsel %vm998, %v1450, 0
    %1455 = vmatprep.subr.mxu0 0.0
    %1456 = vmatpush1.xpose.msra.mxu0 %v1453
    %1457 = vmatprep.subr.mxu0 0.0
    %1458 = vmatpush1.xpose.msra.mxu0 0.0
    %1459 = vmatprep.subr.mxu0 0.0
    %1460 = vmatpush1.xpose.msra.mxu0 0.0
    %1461 = vmatprep.subr.mxu0 0.0
    %1462 = vmatpush1.xpose.msra.mxu0 0.0
    %1463 = vmatprep.subr.mxu0 0.0
    %1464 = vmatpush1.xpose.msra.mxu0 0.0
    %1465 = vmatprep.subr.mxu0 0.0
    %1466 = vmatpush1.xpose.msra.mxu0 0.0
    %1467 = vmatprep.subr.mxu0 0.0
    %1468 = vmatpush1.xpose.msra.mxu0 0.0
    %1469 = vmatprep.subr.mxu0 0.0
    %1470 = vmatpush1.xpose.msra.mxu0 0.0
    %1471 = vmatprep.subr.mxu0 0.0
    %1472 = vmatpush1.xpose.msra.mxu0 0.0
    %1473 = vmatprep.subr.mxu0 0.0
    %1474 = vmatpush1.xpose.msra.mxu0 0.0
    %1475 = vmatprep.subr.mxu0 0.0
    %1476 = vmatpush1.xpose.msra.mxu0 0.0
    %1477 = vmatprep.subr.mxu0 0.0
    %1478 = vmatpush1.xpose.msra.mxu0 0.0
    %1479 = vmatprep.subr.mxu0 0.0
    %1480 = vmatpush1.xpose.msra.mxu0 0.0
    %1481 = vmatprep.subr.mxu0 0.0
    %1482 = vmatpush1.xpose.msra.mxu0 0.0
    %1483 = vmatprep.subr.mxu0 0.0
    %1484 = vmatpush1.xpose.msra.mxu0 0.0
    %1485 = vmatprep.subr.mxu0 0.0
    %1486 = vmatpush1.xpose.msra.mxu0 0.0
    %1487 = vmatprep.subr.mxu0 0.0
    %1488 = vmatpush1.xpose.msra.mxu0 0.0
    %1489 = vmatprep.subr.mxu0 0.0
    %1490 = vmatpush1.xpose.msra.mxu0 0.0
    %1491 = vmatprep.subr.mxu0 0.0
    %1492 = vmatpush1.xpose.msra.mxu0 0.0
    %1493 = vmatprep.subr.mxu0 0.0
    %1494 = vmatpush1.xpose.msra.mxu0 0.0
    %1495 = vmatprep.subr.mxu0 0.0
    %1496 = vmatpush1.xpose.msra.mxu0 0.0
    %1497 = vmatprep.subr.mxu0 0.0
    %1498 = vmatpush1.xpose.msra.mxu0 0.0
    %1499 = vmatprep.subr.mxu0 0.0
    %1500 = vmatpush1.xpose.msra.mxu0 0.0
    %1501 = vmatprep.subr.mxu0 0.0
    %1502 = vmatpush1.xpose.msra.mxu0 0.0
    %1503 = vmatprep.subr.mxu0 0.0
    %1504 = vmatpush1.xpose.msra.mxu0 0.0
    %1505 = vmatprep.subr.mxu0 0.0
    %1506 = vmatpush1.xpose.msra.mxu0 0.0
    %1507 = vmatprep.subr.mxu0 0.0
    %1508 = vmatpush1.xpose.msra.mxu0 0.0
    %1509 = vmatprep.subr.mxu0 0.0
    %1510 = vmatpush1.xpose.msra.mxu0 0.0
    %1511 = vmatprep.subr.mxu0 0.0
    %1512 = vmatpush1.xpose.msra.mxu0 0.0
    %1513 = vmatprep.subr.mxu0 0.0
    %1514 = vmatpush1.xpose.msra.mxu0 0.0
    %1515 = vmatprep.subr.mxu0 0.0
    %1516 = vmatpush1.xpose.msra.mxu0 0.0
    %1517 = vmatprep.subr.mxu0 0.0
    %1518 = vmatpush1.xpose.msra.mxu0 0.0
    %1519 = vmatprep.mubr.f32.mxu0 0.0
    %1520 = vmatmul.mubr.f32.gmra.mrb[0].mxu0 %v1451
    %v1521 = vpop.f32.mrb[0].mxu0
    %v1522 = vadd.f32 0.0, %v1521
    %v1523 = vpop.f32.mrb[0].mxu0
    %1524 = vdwg.mxu0
    %1525 = vrot.lane.b32.xlu0 %v1111, 112
    %v1526 = vpop.permute.xlu0 %1525
    %1527 = vrot.lane.b32.xlu0 %v1111, 80
    %v1528 = vpop.permute.xlu0 %1527
    %v1529 = vsel %vm998, %v1526, 0
    %v1531 = vsel %vm998, %v1528, 0
    %1533 = vmatprep.subr.mxu0 0.0
    %1534 = vmatpush1.xpose.msra.mxu0 %v1531
    %1535 = vmatprep.subr.mxu0 0.0
    %1536 = vmatpush1.xpose.msra.mxu0 0.0
    %1537 = vmatprep.subr.mxu0 0.0
    %1538 = vmatpush1.xpose.msra.mxu0 0.0
    %1539 = vmatprep.subr.mxu0 0.0
    %1540 = vmatpush1.xpose.msra.mxu0 0.0
    %1541 = vmatprep.subr.mxu0 0.0
    %1542 = vmatpush1.xpose.msra.mxu0 0.0
    %1543 = vmatprep.subr.mxu0 0.0
    %1544 = vmatpush1.xpose.msra.mxu0 0.0
    %1545 = vmatprep.subr.mxu0 0.0
    %1546 = vmatpush1.xpose.msra.mxu0 0.0
    %1547 = vmatprep.subr.mxu0 0.0
    %1548 = vmatpush1.xpose.msra.mxu0 0.0
    %1549 = vmatprep.subr.mxu0 0.0
    %1550 = vmatpush1.xpose.msra.mxu0 0.0
    %1551 = vmatprep.subr.mxu0 0.0
    %1552 = vmatpush1.xpose.msra.mxu0 0.0
    %1553 = vmatprep.subr.mxu0 0.0
    %1554 = vmatpush1.xpose.msra.mxu0 0.0
    %1555 = vmatprep.subr.mxu0 0.0
    %1556 = vmatpush1.xpose.msra.mxu0 0.0
    %1557 = vmatprep.subr.mxu0 0.0
    %1558 = vmatpush1.xpose.msra.mxu0 0.0
    %1559 = vmatprep.subr.mxu0 0.0
    %1560 = vmatpush1.xpose.msra.mxu0 0.0
    %1561 = vmatprep.subr.mxu0 0.0
    %1562 = vmatpush1.xpose.msra.mxu0 0.0
    %1563 = vmatprep.subr.mxu0 0.0
    %1564 = vmatpush1.xpose.msra.mxu0 0.0
    %1565 = vmatprep.subr.mxu0 0.0
    %1566 = vmatpush1.xpose.msra.mxu0 0.0
    %1567 = vmatprep.subr.mxu0 0.0
    %1568 = vmatpush1.xpose.msra.mxu0 0.0
    %1569 = vmatprep.subr.mxu0 0.0
    %1570 = vmatpush1.xpose.msra.mxu0 0.0
    %1571 = vmatprep.subr.mxu0 0.0
    %1572 = vmatpush1.xpose.msra.mxu0 0.0
    %1573 = vmatprep.subr.mxu0 0.0
    %1574 = vmatpush1.xpose.msra.mxu0 0.0
    %1575 = vmatprep.subr.mxu0 0.0
    %1576 = vmatpush1.xpose.msra.mxu0 0.0
    %1577 = vmatprep.subr.mxu0 0.0
    %1578 = vmatpush1.xpose.msra.mxu0 0.0
    %1579 = vmatprep.subr.mxu0 0.0
    %1580 = vmatpush1.xpose.msra.mxu0 0.0
    %1581 = vmatprep.subr.mxu0 0.0
    %1582 = vmatpush1.xpose.msra.mxu0 0.0
    %1583 = vmatprep.subr.mxu0 0.0
    %1584 = vmatpush1.xpose.msra.mxu0 0.0
    %1585 = vmatprep.subr.mxu0 0.0
    %1586 = vmatpush1.xpose.msra.mxu0 0.0
    %1587 = vmatprep.subr.mxu0 0.0
    %1588 = vmatpush1.xpose.msra.mxu0 0.0
    %1589 = vmatprep.subr.mxu0 0.0
    %1590 = vmatpush1.xpose.msra.mxu0 0.0
    %1591 = vmatprep.subr.mxu0 0.0
    %1592 = vmatpush1.xpose.msra.mxu0 0.0
    %1593 = vmatprep.subr.mxu0 0.0
    %1594 = vmatpush1.xpose.msra.mxu0 0.0
    %1595 = vmatprep.subr.mxu0 0.0
    %1596 = vmatpush1.xpose.msra.mxu0 0.0
    %1597 = vmatprep.mubr.f32.mxu0 0.0
    %1598 = vmatmul.mubr.f32.gmra.mrb[0].mxu0 %v1529
    %v1599 = vpop.f32.mrb[0].mxu0
    %v1600 = vadd.f32 0.0, %v1599
    %v1601 = vpop.f32.mrb[0].mxu0
    %1602 = vdwg.mxu0
    %v1603 = vsel %vm1188, %v1522, -inf
    %1604 = vmax.xlane.f32.xlu0 %v1603
    %v1605 = vpop.xlane.xlu0 %1604
    %v1606 = vsel %vm1188, %v1600, -inf
    %1607 = vmax.xlane.f32.xlu0 %v1606
    %v1608 = vpop.xlane.xlu0 %1607
    %v1609 = vsub.f32 %v1522, %v1605
    %v1610 = vsub.f32 %v1600, %v1608
    %v1611 = vmul.f32 %v1609, 1.442695
    %v1612 = vpow.pop %v1611
    %v1613 = vmul.f32 %v1610, 1.442695
    %v1614 = vpow.pop %v1613
    %v1615 = vsel %vm1188, %v1612, 0.0
    %1616 = vadd.xlane.f32.xlu0 %v1615
    %v1617 = vpop.xlane.xlu0 %1616
    %v1618 = vsel %vm1188, %v1614, 0.0
    %1619 = vadd.xlane.f32.xlu0 %v1618
    %v1620 = vpop.xlane.xlu0 %1619
    %v1621 = vrcp.pop %v1617
    %v1622 = vrcp.pop %v1620
    %v1623 = vmul.f32 %v1612, %v1621
    %v1624 = vmul.f32 %v1614, %v1622
    %1625 = vrot.lane.b32.xlu0 %v995, 48
    %v1626 = vpop.permute.xlu0 %1625
    %v1628 = vsel %vm1213, %v1623, 0
    %v1630 = vsel %vm1217, %v1626, 0
    %1632 = vmatprep.subr.mxu0 0.0
    %1633 = vmatpush1.msra.mxu0 %v1630
    %1634 = vmatprep.subr.mxu0 0.0
    %1635 = vmatpush1.msra.mxu0 0.0
    %1636 = vmatprep.subr.mxu0 0.0
    %1637 = vmatpush1.msra.mxu0 0.0
    %1638 = vmatprep.subr.mxu0 0.0
    %1639 = vmatpush1.msra.mxu0 0.0
    %1640 = vmatprep.subr.mxu0 0.0
    %1641 = vmatpush1.msra.mxu0 0.0
    %1642 = vmatprep.subr.mxu0 0.0
    %1643 = vmatpush1.msra.mxu0 0.0
    %1644 = vmatprep.subr.mxu0 0.0
    %1645 = vmatpush1.msra.mxu0 0.0
    %1646 = vmatprep.subr.mxu0 0.0
    %1647 = vmatpush1.msra.mxu0 0.0
    %1648 = vmatprep.subr.mxu0 0.0
    %1649 = vmatpush1.msra.mxu0 0.0
    %1650 = vmatprep.subr.mxu0 0.0
    %1651 = vmatpush1.msra.mxu0 0.0
    %1652 = vmatprep.subr.mxu0 0.0
    %1653 = vmatpush1.msra.mxu0 0.0
    %1654 = vmatprep.subr.mxu0 0.0
    %1655 = vmatpush1.msra.mxu0 0.0
    %1656 = vmatprep.subr.mxu0 0.0
    %1657 = vmatpush1.msra.mxu0 0.0
    %1658 = vmatprep.subr.mxu0 0.0
    %1659 = vmatpush1.msra.mxu0 0.0
    %1660 = vmatprep.subr.mxu0 0.0
    %1661 = vmatpush1.msra.mxu0 0.0
    %1662 = vmatprep.subr.mxu0 0.0
    %1663 = vmatpush1.msra.mxu0 0.0
    %1664 = vmatprep.subr.mxu0 0.0
    %1665 = vmatpush1.msra.mxu0 0.0
    %1666 = vmatprep.subr.mxu0 0.0
    %1667 = vmatpush1.msra.mxu0 0.0
    %1668 = vmatprep.subr.mxu0 0.0
    %1669 = vmatpush1.msra.mxu0 0.0
    %1670 = vmatprep.subr.mxu0 0.0
    %1671 = vmatpush1.msra.mxu0 0.0
    %1672 = vmatprep.subr.mxu0 0.0
    %1673 = vmatpush1.msra.mxu0 0.0
    %1674 = vmatprep.subr.mxu0 0.0
    %1675 = vmatpush1.msra.mxu0 0.0
    %1676 = vmatprep.subr.mxu0 0.0
    %1677 = vmatpush1.msra.mxu0 0.0
    %1678 = vmatprep.subr.mxu0 0.0
    %1679 = vmatpush1.msra.mxu0 0.0
    %1680 = vmatprep.subr.mxu0 0.0
    %1681 = vmatpush1.msra.mxu0 0.0
    %1682 = vmatprep.subr.mxu0 0.0
    %1683 = vmatpush1.msra.mxu0 0.0
    %1684 = vmatprep.subr.mxu0 0.0
    %1685 = vmatpush1.msra.mxu0 0.0
    %1686 = vmatprep.subr.mxu0 0.0
    %1687 = vmatpush1.msra.mxu0 0.0
    %1688 = vmatprep.subr.mxu0 0.0
    %1689 = vmatpush1.msra.mxu0 0.0
    %1690 = vmatprep.subr.mxu0 0.0
    %1691 = vmatpush1.msra.mxu0 0.0
    %1692 = vmatprep.subr.mxu0 0.0
    %1693 = vmatpush1.msra.mxu0 0.0
    %1694 = vmatprep.subr.mxu0 0.0
    %1695 = vmatpush1.msra.mxu0 0.0
    %1696 = vmatprep.mubr.f32.mxu0 0.0
    %1697 = vmatmul.mubr.f32.gmra.mrb[0].mxu0 %v1628
    %v1698 = vpop.f32.mrb[0].mxu0
    %v1699 = vadd.f32 0.0, %v1698
    %v1700 = vpop.f32.mrb[0].mxu0
    %1701 = vdwg.mxu0
    %1702 = vrot.lane.b32.xlu0 %v1111, 48
    %v1703 = vpop.permute.xlu0 %1702
    %v1705 = vsel %vm1213, %v1624, 0
    %v1707 = vsel %vm1217, %v1703, 0
    %1709 = vmatprep.subr.mxu0 0.0
    %1710 = vmatpush1.msra.mxu0 %v1707
    %1711 = vmatprep.subr.mxu0 0.0
    %1712 = vmatpush1.msra.mxu0 0.0
    %1713 = vmatprep.subr.mxu0 0.0
    %1714 = vmatpush1.msra.mxu0 0.0
    %1715 = vmatprep.subr.mxu0 0.0
    %1716 = vmatpush1.msra.mxu0 0.0
    %1717 = vmatprep.subr.mxu0 0.0
    %1718 = vmatpush1.msra.mxu0 0.0
    %1719 = vmatprep.subr.mxu0 0.0
    %1720 = vmatpush1.msra.mxu0 0.0
    %1721 = vmatprep.subr.mxu0 0.0
    %1722 = vmatpush1.msra.mxu0 0.0
    %1723 = vmatprep.subr.mxu0 0.0
    %1724 = vmatpush1.msra.mxu0 0.0
    %1725 = vmatprep.subr.mxu0 0.0
    %1726 = vmatpush1.msra.mxu0 0.0
    %1727 = vmatprep.subr.mxu0 0.0
    %1728 = vmatpush1.msra.mxu0 0.0
    %1729 = vmatprep.subr.mxu0 0.0
    %1730 = vmatpush1.msra.mxu0 0.0
    %1731 = vmatprep.subr.mxu0 0.0
    %1732 = vmatpush1.msra.mxu0 0.0
    %1733 = vmatprep.subr.mxu0 0.0
    %1734 = vmatpush1.msra.mxu0 0.0
    %1735 = vmatprep.subr.mxu0 0.0
    %1736 = vmatpush1.msra.mxu0 0.0
    %1737 = vmatprep.subr.mxu0 0.0
    %1738 = vmatpush1.msra.mxu0 0.0
    %1739 = vmatprep.subr.mxu0 0.0
    %1740 = vmatpush1.msra.mxu0 0.0
    %1741 = vmatprep.subr.mxu0 0.0
    %1742 = vmatpush1.msra.mxu0 0.0
    %1743 = vmatprep.subr.mxu0 0.0
    %1744 = vmatpush1.msra.mxu0 0.0
    %1745 = vmatprep.subr.mxu0 0.0
    %1746 = vmatpush1.msra.mxu0 0.0
    %1747 = vmatprep.subr.mxu0 0.0
    %1748 = vmatpush1.msra.mxu0 0.0
    %1749 = vmatprep.subr.mxu0 0.0
    %1750 = vmatpush1.msra.mxu0 0.0
    %1751 = vmatprep.subr.mxu0 0.0
    %1752 = vmatpush1.msra.mxu0 0.0
    %1753 = vmatprep.subr.mxu0 0.0
    %1754 = vmatpush1.msra.mxu0 0.0
    %1755 = vmatprep.subr.mxu0 0.0
    %1756 = vmatpush1.msra.mxu0 0.0
    %1757 = vmatprep.subr.mxu0 0.0
    %1758 = vmatpush1.msra.mxu0 0.0
    %1759 = vmatprep.subr.mxu0 0.0
    %1760 = vmatpush1.msra.mxu0 0.0
    %1761 = vmatprep.subr.mxu0 0.0
    %1762 = vmatpush1.msra.mxu0 0.0
    %1763 = vmatprep.subr.mxu0 0.0
    %1764 = vmatpush1.msra.mxu0 0.0
    %1765 = vmatprep.subr.mxu0 0.0
    %1766 = vmatpush1.msra.mxu0 0.0
    %1767 = vmatprep.subr.mxu0 0.0
    %1768 = vmatpush1.msra.mxu0 0.0
    %1769 = vmatprep.subr.mxu0 0.0
    %1770 = vmatpush1.msra.mxu0 0.0
    %1771 = vmatprep.subr.mxu0 0.0
    %1772 = vmatpush1.msra.mxu0 0.0
    %1773 = vmatprep.mubr.f32.mxu0 0.0
    %1774 = vmatmul.mubr.f32.gmra.mrb[0].mxu0 %v1705
    %v1775 = vpop.f32.mrb[0].mxu0
    %v1776 = vadd.f32 0.0, %v1775
    %v1777 = vpop.f32.mrb[0].mxu0
    %1778 = vdwg.mxu0
    %v1781 = vcombine.high %v1699, %v1699
    %v1783 = vunpack.c.l.s4 1966171168
    %v1784 = vunpack.c.0.s8 %v1783
    %v1785 = vlaneseq
    %v1786 = vshrl.u32 %v1785, 7
    %v1787 = vsub.s32 %v1784, %v1786
    %v1788 = vrot.slane %v1699, %v1787
    %v1790 = vunpack.c.l.s4 1966171168
    %v1791 = vunpack.c.0.s8 %v1790
    %v1792 = vlaneseq
    %v1793 = vshrl.u32 %v1792, 7
    %v1794 = vsub.s32 %v1791, %v1793
    %v1795 = vrot.slane %v1781, %v1794
    %v1796 = vcombine.high %v1788, %v1788
    %v1798 = vunpack.c.l.s4 1966171168
    %v1799 = vunpack.c.0.s8 %v1798
    %v1800 = vlaneseq
    %v1801 = vshrl.u32 %v1800, 7
    %v1802 = vsub.s32 %v1799, %v1801
    %v1803 = vrot.slane %v1788, %v1802
    %v1805 = vunpack.c.l.s4 1966171168
    %v1806 = vunpack.c.0.s8 %v1805
    %v1807 = vlaneseq
    %v1808 = vshrl.u32 %v1807, 7
    %v1809 = vsub.s32 %v1806, %v1808
    %v1810 = vrot.slane %v1795, %v1809
    %v1812 = vunpack.c.l.s4 1966171168
    %v1813 = vunpack.c.0.s8 %v1812
    %v1814 = vlaneseq
    %v1815 = vshrl.u32 %v1814, 7
    %v1816 = vsub.s32 %v1813, %v1815
    %v1817 = vrot.slane %v1796, %v1816
    %v1818 = vcombine.high %v1803, %v1803
    %v1819 = vcombine.high %v1817, %v1817
    %v1820 = vcombine.high %v1776, %v1776
    %v1822 = vunpack.c.l.s4 1966171168
    %v1823 = vunpack.c.0.s8 %v1822
    %v1824 = vlaneseq
    %v1825 = vshrl.u32 %v1824, 7
    %v1826 = vsub.s32 %v1823, %v1825
    %v1827 = vrot.slane %v1776, %v1826
    %v1829 = vunpack.c.l.s4 1966171168
    %v1830 = vunpack.c.0.s8 %v1829
    %v1831 = vlaneseq
    %v1832 = vshrl.u32 %v1831, 7
    %v1833 = vsub.s32 %v1830, %v1832
    %v1834 = vrot.slane %v1820, %v1833
    %v1835 = vcombine.high %v1827, %v1827
    %v1837 = vunpack.c.l.s4 1966171168
    %v1838 = vunpack.c.0.s8 %v1837
    %v1839 = vlaneseq
    %v1840 = vshrl.u32 %v1839, 7
    %v1841 = vsub.s32 %v1838, %v1840
    %v1842 = vrot.slane %v1827, %v1841
    %v1844 = vunpack.c.l.s4 1966171168
    %v1845 = vunpack.c.0.s8 %v1844
    %v1846 = vlaneseq
    %v1847 = vshrl.u32 %v1846, 7
    %v1848 = vsub.s32 %v1845, %v1847
    %v1849 = vrot.slane %v1834, %v1848
    %v1851 = vunpack.c.l.s4 1966171168
    %v1852 = vunpack.c.0.s8 %v1851
    %v1853 = vlaneseq
    %v1854 = vshrl.u32 %v1853, 7
    %v1855 = vsub.s32 %v1852, %v1854
    %v1856 = vrot.slane %v1835, %v1855
    %v1857 = vcombine.high %v1842, %v1842
    %v1858 = vcombine.high %v1856, %v1856
    %v1859 = vcombine.low %v1803, %v1817
    %v1860 = vcombine.low %v1818, %v1819
    %v1861 = vcombine.low %v1810, %v1842
    %v1862 = vcombine.low %v1856, %v1857
    %v1864 = vunpack.c.l.s4 1966171168
    %v1865 = vunpack.c.0.s8 %v1864
    %v1866 = vlaneseq
    %v1867 = vshrl.u32 %v1866, 7
    %v1868 = vsub.s32 %v1865, %v1867
    %v1869 = vrot.slane %v1859, %v1868
    %v1871 = vunpack.c.l.s4 1966171168
    %v1872 = vunpack.c.0.s8 %v1871
    %v1873 = vlaneseq
    %v1874 = vshrl.u32 %v1873, 7
    %v1875 = vsub.s32 %v1872, %v1874
    %v1876 = vrot.slane %v1860, %v1875
    %v1878 = vunpack.c.l.s4 1966171168
    %v1879 = vunpack.c.0.s8 %v1878
    %v1880 = vlaneseq
    %v1881 = vshrl.u32 %v1880, 7
    %v1882 = vsub.s32 %v1879, %v1881
    %v1883 = vrot.slane %v1861, %v1882
    %v1885 = vunpack.c.l.s4 1966171168
    %v1886 = vunpack.c.0.s8 %v1885
    %v1887 = vlaneseq
    %v1888 = vshrl.u32 %v1887, 7
    %v1889 = vsub.s32 %v1886, %v1888
    %v1890 = vrot.slane %v1862, %v1889
    %v1891 = vcombine.low %v1869, %v1876
    %v1892 = vcombine.low %v1883, %v1890
    %v1894 = vunpack.c.l.s4 1966171168
    %v1895 = vunpack.c.0.s8 %v1894
    %v1896 = vlaneseq
    %v1897 = vshrl.u32 %v1896, 7
    %v1898 = vsub.s32 %v1895, %v1897
    %v1899 = vrot.slane %v1891, %v1898
    %v1901 = vunpack.c.l.s4 1966171168
    %v1902 = vunpack.c.0.s8 %v1901
    %v1903 = vlaneseq
    %v1904 = vshrl.u32 %v1903, 7
    %v1905 = vsub.s32 %v1902, %v1904
    %v1906 = vrot.slane %v1892, %v1905
    %v1907 = vcombine.low %v1899, %v1906
    %v1908 = vcombine.low %v1858, %v1849
    %v1910 = vunpack.c.l.s4 1966171168
    %v1911 = vunpack.c.0.s8 %v1910
    %v1912 = vlaneseq
    %v1913 = vshrl.u32 %v1912, 7
    %v1914 = vsub.s32 %v1911, %v1913
    %v1915 = vrot.slane %v1908, %v1914
    %v1917 = vunpack.c.l.s4 1966171168
    %v1918 = vunpack.c.0.s8 %v1917
    %v1919 = vlaneseq
    %v1920 = vshrl.u32 %v1919, 7
    %v1921 = vsub.s32 %v1918, %v1920
    %v1922 = vrot.slane %v1915, %v1921
    %v1923 = vsel %vm998, %v1907, 0
    %v1925 = vsel %vm998, %v1922, 0
    %1927 = vmatprep.subr.mxu0 0.0
    %1928 = vmatpush1.msra.mxu0 %v955
    %1929 = vmatprep.subr.mxu0 0.0
    %1930 = vmatpush1.msra.mxu0 %v956
    %1931 = vmatprep.subr.mxu0 0.0
    %1932 = vmatpush1.msra.mxu0 0.0
    %1933 = vmatprep.subr.mxu0 0.0
    %1934 = vmatpush1.msra.mxu0 0.0
    %1935 = vmatprep.subr.mxu0 0.0
    %1936 = vmatpush1.msra.mxu0 0.0
    %1937 = vmatprep.subr.mxu0 0.0
    %1938 = vmatpush1.msra.mxu0 0.0
    %1939 = vmatprep.subr.mxu0 0.0
    %1940 = vmatpush1.msra.mxu0 0.0
    %1941 = vmatprep.subr.mxu0 0.0
    %1942 = vmatpush1.msra.mxu0 0.0
    %1943 = vmatprep.subr.mxu0 0.0
    %1944 = vmatpush1.msra.mxu0 0.0
    %1945 = vmatprep.subr.mxu0 0.0
    %1946 = vmatpush1.msra.mxu0 0.0
    %1947 = vmatprep.subr.mxu0 0.0
    %1948 = vmatpush1.msra.mxu0 0.0
    %1949 = vmatprep.subr.mxu0 0.0
    %1950 = vmatpush1.msra.mxu0 0.0
    %1951 = vmatprep.subr.mxu0 0.0
    %1952 = vmatpush1.msra.mxu0 0.0
    %1953 = vmatprep.subr.mxu0 0.0
    %1954 = vmatpush1.msra.mxu0 0.0
    %1955 = vmatprep.subr.mxu0 0.0
    %1956 = vmatpush1.msra.mxu0 0.0
    %1957 = vmatprep.subr.mxu0 0.0
    %1958 = vmatpush1.msra.mxu0 0.0
    %1959 = vmatprep.subr.mxu0 0.0
    %1960 = vmatpush1.msra.mxu0 0.0
    %1961 = vmatprep.subr.mxu0 0.0
    %1962 = vmatpush1.msra.mxu0 0.0
    %1963 = vmatprep.subr.mxu0 0.0
    %1964 = vmatpush1.msra.mxu0 0.0
    %1965 = vmatprep.subr.mxu0 0.0
    %1966 = vmatpush1.msra.mxu0 0.0
    %1967 = vmatprep.subr.mxu0 0.0
    %1968 = vmatpush1.msra.mxu0 0.0
    %1969 = vmatprep.subr.mxu0 0.0
    %1970 = vmatpush1.msra.mxu0 0.0
    %1971 = vmatprep.subr.mxu0 0.0
    %1972 = vmatpush1.msra.mxu0 0.0
    %1973 = vmatprep.subr.mxu0 0.0
    %1974 = vmatpush1.msra.mxu0 0.0
    %1975 = vmatprep.subr.mxu0 0.0
    %1976 = vmatpush1.msra.mxu0 0.0
    %1977 = vmatprep.subr.mxu0 0.0
    %1978 = vmatpush1.msra.mxu0 0.0
    %1979 = vmatprep.subr.mxu0 0.0
    %1980 = vmatpush1.msra.mxu0 0.0
    %1981 = vmatprep.subr.mxu0 0.0
    %1982 = vmatpush1.msra.mxu0 0.0
    %1983 = vmatprep.subr.mxu0 0.0
    %1984 = vmatpush1.msra.mxu0 0.0
    %1985 = vmatprep.subr.mxu0 0.0
    %1986 = vmatpush1.msra.mxu0 0.0
    %1987 = vmatprep.subr.mxu0 0.0
    %1988 = vmatpush1.msra.mxu0 0.0
    %1989 = vmatprep.subr.mxu0 0.0
    %1990 = vmatpush1.msra.mxu0 0.0
    %1991 = vmatprep.mubr.f32.mxu0 0.0
    %1992 = vmatmul.mubr.f32.gmra.mrb[0].mxu0 %v1923
    %v1993 = vpop.f32.mrb[0].mxu0
    %v1994 = vadd.f32 0.0, %v1993
    %v1995 = vpop.f32.mrb[0].mxu0
    %1996 = vmatprep.mubr.f32.mxu0 0.0
    %1997 = vmatmul.mubr.f32.gmra.mrb[0].mxu0 %v1925
    %v1998 = vpop.f32.mrb[0].mxu0
    %v1999 = vadd.f32 0.0, %v1998
    %v2000 = vpop.f32.mrb[0].mxu0
    %2001 = vdwg.mxu0
    %v2002 = vcombine.low %v1391, %v1405
    %v2003 = vcombine.low %v1406, %v1407
    %v2004 = vcombine.low %v1398, %v1430
    %v2005 = vcombine.low %v1444, %v1445
    %v2007 = vunpack.c.l.s4 1966171168
    %v2008 = vunpack.c.0.s8 %v2007
    %v2009 = vlaneseq
    %v2010 = vshrl.u32 %v2009, 7
    %v2011 = vsub.s32 %v2008, %v2010
    %v2012 = vrot.slane %v2002, %v2011
    %v2014 = vunpack.c.l.s4 1966171168
    %v2015 = vunpack.c.0.s8 %v2014
    %v2016 = vlaneseq
    %v2017 = vshrl.u32 %v2016, 7
    %v2018 = vsub.s32 %v2015, %v2017
    %v2019 = vrot.slane %v2003, %v2018
    %v2021 = vunpack.c.l.s4 1966171168
    %v2022 = vunpack.c.0.s8 %v2021
    %v2023 = vlaneseq
    %v2024 = vshrl.u32 %v2023, 7
    %v2025 = vsub.s32 %v2022, %v2024
    %v2026 = vrot.slane %v2004, %v2025
    %v2028 = vunpack.c.l.s4 1966171168
    %v2029 = vunpack.c.0.s8 %v2028
    %v2030 = vlaneseq
    %v2031 = vshrl.u32 %v2030, 7
    %v2032 = vsub.s32 %v2029, %v2031
    %v2033 = vrot.slane %v2005, %v2032
    %v2034 = vcombine.low %v2012, %v2019
    %v2035 = vcombine.low %v2026, %v2033
    %v2037 = vunpack.c.l.s4 1966171168
    %v2038 = vunpack.c.0.s8 %v2037
    %v2039 = vlaneseq
    %v2040 = vshrl.u32 %v2039, 7
    %v2041 = vsub.s32 %v2038, %v2040
    %v2042 = vrot.slane %v2034, %v2041
    %v2044 = vunpack.c.l.s4 1966171168
    %v2045 = vunpack.c.0.s8 %v2044
    %v2046 = vlaneseq
    %v2047 = vshrl.u32 %v2046, 7
    %v2048 = vsub.s32 %v2045, %v2047
    %v2049 = vrot.slane %v2035, %v2048
    %v2050 = vcombine.low %v2042, %v2049
    %v2051 = vcombine.low %v1446, %v1437
    %v2053 = vunpack.c.l.s4 1966171168
    %v2054 = vunpack.c.0.s8 %v2053
    %v2055 = vlaneseq
    %v2056 = vshrl.u32 %v2055, 7
    %v2057 = vsub.s32 %v2054, %v2056
    %v2058 = vrot.slane %v2051, %v2057
    %v2060 = vunpack.c.l.s4 1966171168
    %v2061 = vunpack.c.0.s8 %v2060
    %v2062 = vlaneseq
    %v2063 = vshrl.u32 %v2062, 7
    %v2064 = vsub.s32 %v2061, %v2063
    %v2065 = vrot.slane %v2058, %v2064
    %v2066 = vsel %vm998, %v2050, 0
    %v2068 = vsel %vm998, %v2065, 0
    %2070 = vmatprep.subr.mxu0 0.0
    %2071 = vmatpush1.msra.mxu0 %v953
    %2072 = vmatprep.subr.mxu0 0.0
    %2073 = vmatpush1.msra.mxu0 %v954
    %2074 = vmatprep.subr.mxu0 0.0
    %2075 = vmatpush1.msra.mxu0 0.0
    %2076 = vmatprep.subr.mxu0 0.0
    %2077 = vmatpush1.msra.mxu0 0.0
    %2078 = vmatprep.subr.mxu0 0.0
    %2079 = vmatpush1.msra.mxu0 0.0
    %2080 = vmatprep.subr.mxu0 0.0
    %2081 = vmatpush1.msra.mxu0 0.0
    %2082 = vmatprep.subr.mxu0 0.0
    %2083 = vmatpush1.msra.mxu0 0.0
    %2084 = vmatprep.subr.mxu0 0.0
    %2085 = vmatpush1.msra.mxu0 0.0
    %2086 = vmatprep.subr.mxu0 0.0
    %2087 = vmatpush1.msra.mxu0 0.0
    %2088 = vmatprep.subr.mxu0 0.0
    %2089 = vmatpush1.msra.mxu0 0.0
    %2090 = vmatprep.subr.mxu0 0.0
    %2091 = vmatpush1.msra.mxu0 0.0
    %2092 = vmatprep.subr.mxu0 0.0
    %2093 = vmatpush1.msra.mxu0 0.0
    %2094 = vmatprep.subr.mxu0 0.0
    %2095 = vmatpush1.msra.mxu0 0.0
    %2096 = vmatprep.subr.mxu0 0.0
    %2097 = vmatpush1.msra.mxu0 0.0
    %2098 = vmatprep.subr.mxu0 0.0
    %2099 = vmatpush1.msra.mxu0 0.0
    %2100 = vmatprep.subr.mxu0 0.0
    %2101 = vmatpush1.msra.mxu0 0.0
    %2102 = vmatprep.subr.mxu0 0.0
    %2103 = vmatpush1.msra.mxu0 0.0
    %2104 = vmatprep.subr.mxu0 0.0
    %2105 = vmatpush1.msra.mxu0 0.0
    %2106 = vmatprep.subr.mxu0 0.0
    %2107 = vmatpush1.msra.mxu0 0.0
    %2108 = vmatprep.subr.mxu0 0.0
    %2109 = vmatpush1.msra.mxu0 0.0
    %2110 = vmatprep.subr.mxu0 0.0
    %2111 = vmatpush1.msra.mxu0 0.0
    %2112 = vmatprep.subr.mxu0 0.0
    %2113 = vmatpush1.msra.mxu0 0.0
    %2114 = vmatprep.subr.mxu0 0.0
    %2115 = vmatpush1.msra.mxu0 0.0
    %2116 = vmatprep.subr.mxu0 0.0
    %2117 = vmatpush1.msra.mxu0 0.0
    %2118 = vmatprep.subr.mxu0 0.0
    %2119 = vmatpush1.msra.mxu0 0.0
    %2120 = vmatprep.subr.mxu0 0.0
    %2121 = vmatpush1.msra.mxu0 0.0
    %2122 = vmatprep.subr.mxu0 0.0
    %2123 = vmatpush1.msra.mxu0 0.0
    %2124 = vmatprep.subr.mxu0 0.0
    %2125 = vmatpush1.msra.mxu0 0.0
    %2126 = vmatprep.subr.mxu0 0.0
    %2127 = vmatpush1.msra.mxu0 0.0
    %2128 = vmatprep.subr.mxu0 0.0
    %2129 = vmatpush1.msra.mxu0 0.0
    %2130 = vmatprep.subr.mxu0 0.0
    %2131 = vmatpush1.msra.mxu0 0.0
    %2132 = vmatprep.subr.mxu0 0.0
    %2133 = vmatpush1.msra.mxu0 0.0
    %2134 = vmatprep.mubr.f32.mxu0 0.0
    %2135 = vmatmul.mubr.f32.gmra.mrb[0].mxu0 %v2066
    %v2136 = vpop.f32.mrb[0].mxu0
    %v2137 = vadd.f32 %v1994, %v2136
    %v2138 = vpop.f32.mrb[0].mxu0
    %2139 = vmatprep.mubr.f32.mxu0 0.0
    %2140 = vmatmul.mubr.f32.gmra.mrb[0].mxu0 %v2068
    %v2141 = vpop.f32.mrb[0].mxu0
    %v2142 = vadd.f32 %v1999, %v2141
    %v2143 = vpop.f32.mrb[0].mxu0
    %2144 = vdwg.mxu0
    %v2147 = vcombine.high %v2137, %v2137
    %v2149 = vunpack.c.l.s4 1966171168
    %v2150 = vunpack.c.0.s8 %v2149
    %v2151 = vlaneseq
    %v2152 = vshrl.u32 %v2151, 7
    %v2153 = vsub.s32 %v2150, %v2152
    %v2154 = vrot.slane %v2137, %v2153
    %v2156 = vunpack.c.l.s4 1966171168
    %v2157 = vunpack.c.0.s8 %v2156
    %v2158 = vlaneseq
    %v2159 = vshrl.u32 %v2158, 7
    %v2160 = vsub.s32 %v2157, %v2159
    %v2161 = vrot.slane %v2147, %v2160
    %v2162 = vcombine.high %v2154, %v2154
    %v2163 = vcombine.high %v2161, %v2161
    %v2165 = vunpack.c.l.s4 1966171168
    %v2166 = vunpack.c.0.s8 %v2165
    %v2167 = vlaneseq
    %v2168 = vshrl.u32 %v2167, 7
    %v2169 = vsub.s32 %v2166, %v2168
    %v2170 = vrot.slane %v2154, %v2169
    %v2172 = vunpack.c.l.s4 1966171168
    %v2173 = vunpack.c.0.s8 %v2172
    %v2174 = vlaneseq
    %v2175 = vshrl.u32 %v2174, 7
    %v2176 = vsub.s32 %v2173, %v2175
    %v2177 = vrot.slane %v2161, %v2176
    %v2179 = vunpack.c.l.s4 1966171168
    %v2180 = vunpack.c.0.s8 %v2179
    %v2181 = vlaneseq
    %v2182 = vshrl.u32 %v2181, 7
    %v2183 = vsub.s32 %v2180, %v2182
    %v2184 = vrot.slane %v2162, %v2183
    %v2186 = vunpack.c.l.s4 1966171168
    %v2187 = vunpack.c.0.s8 %v2186
    %v2188 = vlaneseq
    %v2189 = vshrl.u32 %v2188, 7
    %v2190 = vsub.s32 %v2187, %v2189
    %v2191 = vrot.slane %v2163, %v2190
    %v2192 = vcombine.high %v2170, %v2170
    %v2193 = vcombine.high %v2177, %v2177
    %v2194 = vcombine.high %v2184, %v2184
    %v2195 = vcombine.high %v2191, %v2191
    %v2197 = vunpack.c.l.s4 1966171168
    %v2198 = vunpack.c.0.s8 %v2197
    %v2199 = vlaneseq
    %v2200 = vshrl.u32 %v2199, 7
    %v2201 = vsub.s32 %v2198, %v2200
    %v2202 = vrot.slane %v2142, %v2201
    %v2203 = vcombine.high %v2202, %v2202
    %v2205 = vunpack.c.l.s4 1966171168
    %v2206 = vunpack.c.0.s8 %v2205
    %v2207 = vlaneseq
    %v2208 = vshrl.u32 %v2207, 7
    %v2209 = vsub.s32 %v2206, %v2208
    %v2210 = vrot.slane %v2202, %v2209
    %v2212 = vunpack.c.l.s4 1966171168
    %v2213 = vunpack.c.0.s8 %v2212
    %v2214 = vlaneseq
    %v2215 = vshrl.u32 %v2214, 7
    %v2216 = vsub.s32 %v2213, %v2215
    %v2217 = vrot.slane %v2203, %v2216
    %v2228 = vadd.f32 %v205, %v2170
    %v2229 = vadd.f32 %v219, %v2184
    %v2230 = vadd.f32 %v220, %v2192
    %v2231 = vadd.f32 %v221, %v2194
    %v2232 = vadd.f32 %v212, %v2177
    %v2233 = vadd.f32 %v244, %v2191
    %v2234 = vadd.f32 %v258, %v2193
    %v2235 = vadd.f32 %v259, %v2195
    %v2236 = vadd.f32 %v260, %v2210
    %v2237 = vadd.f32 %v251, %v2217
    %v2238 = vld [vmem:[%s8] sm:$0x1]
    %v2240 = vlaneseq
    %v2241 = vshrl.u32 %v2240, 7
    %v2242 = vsub.s32 0, %v2241
    %v2243 = vrot.slane %v2238, %v2242
    %v2244 = vcombine.high %v2243, %v2243
    %v2246 = vunpack.c.l.s4 1966171168
    %v2247 = vunpack.c.0.s8 %v2246
    %v2248 = vlaneseq
    %v2249 = vshrl.u32 %v2248, 7
    %v2250 = vsub.s32 %v2247, %v2249
    %v2251 = vrot.slane %v2243, %v2250
    %v2253 = vunpack.c.l.s4 1966171168
    %v2254 = vunpack.c.0.s8 %v2253
    %v2255 = vlaneseq
    %v2256 = vshrl.u32 %v2255, 7
    %v2257 = vsub.s32 %v2254, %v2256
    %v2258 = vrot.slane %v2244, %v2257
    %v2259 = vcombine.high %v2251, %v2251
    %v2260 = vcombine.high %v2258, %v2258
    %v2262 = vunpack.c.l.s4 1966171168
    %v2263 = vunpack.c.0.s8 %v2262
    %v2264 = vlaneseq
    %v2265 = vshrl.u32 %v2264, 7
    %v2266 = vsub.s32 %v2263, %v2265
    %v2267 = vrot.slane %v2251, %v2266
    %v2269 = vunpack.c.l.s4 1966171168
    %v2270 = vunpack.c.0.s8 %v2269
    %v2271 = vlaneseq
    %v2272 = vshrl.u32 %v2271, 7
    %v2273 = vsub.s32 %v2270, %v2272
    %v2274 = vrot.slane %v2258, %v2273
    %v2276 = vunpack.c.l.s4 1966171168
    %v2277 = vunpack.c.0.s8 %v2276
    %v2278 = vlaneseq
    %v2279 = vshrl.u32 %v2278, 7
    %v2280 = vsub.s32 %v2277, %v2279
    %v2281 = vrot.slane %v2259, %v2280
    %v2283 = vunpack.c.l.s4 1966171168
    %v2284 = vunpack.c.0.s8 %v2283
    %v2285 = vlaneseq
    %v2286 = vshrl.u32 %v2285, 7
    %v2287 = vsub.s32 %v2284, %v2286
    %v2288 = vrot.slane %v2260, %v2287
    %v2289 = vcombine.high %v2267, %v2267
    %v2290 = vcombine.high %v2274, %v2274
    %v2291 = vcombine.high %v2281, %v2281
    %v2292 = vcombine.high %v2288, %v2288
    %v2301 = vadd.f32 %v2228, %v2267
    %v2302 = vadd.f32 %v2229, %v2281
    %v2303 = vadd.f32 %v2230, %v2289
    %v2304 = vadd.f32 %v2231, %v2291
    %v2305 = vadd.f32 %v2232, %v2274
    %v2306 = vadd.f32 %v2233, %v2288
    %v2307 = vadd.f32 %v2234, %v2290
    %v2308 = vadd.f32 %v2235, %v2292
    %v2309 = vadd.f32 %v2236, %v2267
    %v2310 = vadd.f32 %v2237, %v2281
    %v2311 = vld [vmem:[%s9] sm:$0x1]
    %v2312 = vld [vmem:[%s10] sm:$0x1]
    %v2323 = vcombine.low %v2301, %v2302
    %v2324 = vcombine.low %v2303, %v2304
    %v2325 = vcombine.low %v2305, %v2306
    %v2326 = vcombine.low %v2307, %v2308
    %v2328 = vunpack.c.l.s4 1966171168
    %v2329 = vunpack.c.0.s8 %v2328
    %v2330 = vlaneseq
    %v2331 = vshrl.u32 %v2330, 7
    %v2332 = vsub.s32 %v2329, %v2331
    %v2333 = vrot.slane %v2323, %v2332
    %v2335 = vunpack.c.l.s4 1966171168
    %v2336 = vunpack.c.0.s8 %v2335
    %v2337 = vlaneseq
    %v2338 = vshrl.u32 %v2337, 7
    %v2339 = vsub.s32 %v2336, %v2338
    %v2340 = vrot.slane %v2324, %v2339
    %v2342 = vunpack.c.l.s4 1966171168
    %v2343 = vunpack.c.0.s8 %v2342
    %v2344 = vlaneseq
    %v2345 = vshrl.u32 %v2344, 7
    %v2346 = vsub.s32 %v2343, %v2345
    %v2347 = vrot.slane %v2325, %v2346
    %v2349 = vunpack.c.l.s4 1966171168
    %v2350 = vunpack.c.0.s8 %v2349
    %v2351 = vlaneseq
    %v2352 = vshrl.u32 %v2351, 7
    %v2353 = vsub.s32 %v2350, %v2352
    %v2354 = vrot.slane %v2326, %v2353
    %v2355 = vcombine.low %v2333, %v2340
    %v2356 = vcombine.low %v2347, %v2354
    %v2358 = vunpack.c.l.s4 1966171168
    %v2359 = vunpack.c.0.s8 %v2358
    %v2360 = vlaneseq
    %v2361 = vshrl.u32 %v2360, 7
    %v2362 = vsub.s32 %v2359, %v2361
    %v2363 = vrot.slane %v2355, %v2362
    %v2365 = vunpack.c.l.s4 1966171168
    %v2366 = vunpack.c.0.s8 %v2365
    %v2367 = vlaneseq
    %v2368 = vshrl.u32 %v2367, 7
    %v2369 = vsub.s32 %v2366, %v2368
    %v2370 = vrot.slane %v2356, %v2369
    %v2371 = vcombine.low %v2363, %v2370
    %v2372 = vcombine.low %v2309, %v2310
    %v2374 = vunpack.c.l.s4 1966171168
    %v2375 = vunpack.c.0.s8 %v2374
    %v2376 = vlaneseq
    %v2377 = vshrl.u32 %v2376, 7
    %v2378 = vsub.s32 %v2375, %v2377
    %v2379 = vrot.slane %v2372, %v2378
    %v2381 = vunpack.c.l.s4 1966171168
    %v2382 = vunpack.c.0.s8 %v2381
    %v2383 = vlaneseq
    %v2384 = vshrl.u32 %v2383, 7
    %v2385 = vsub.s32 %v2382, %v2384
    %v2386 = vrot.slane %v2379, %v2385
    %v2389 = vsel %vm339, %v2371, 0.0
    %2390 = vadd.xlane.f32.xlu0 %v2389
    %v2391 = vpop.xlane.xlu0 %2390
    %v2392 = vsel %vm343, %v2386, 0.0
    %2393 = vadd.xlane.f32.xlu0 %v2392
    %v2394 = vpop.xlane.xlu0 %2393
    %v2395 = vmul.f32 %v2391, %v347
    %v2396 = vmul.f32 %v2394, %v347
    %v2399 = vlaneseq
    %v2400 = vshrl.u32 %v2399, 7
    %v2401 = vsub.s32 0, %v2400
    %v2402 = vrot.slane %v2395, %v2401
    %v2403 = vlaneseq
    %v2404 = vshrl.u32 %v2403, 7
    %v2405 = vsub.s32 1, %v2404
    %v2406 = vrot.slane %v2395, %v2405
    %v2407 = vlaneseq
    %v2408 = vshrl.u32 %v2407, 7
    %v2409 = vsub.s32 2, %v2408
    %v2410 = vrot.slane %v2395, %v2409
    %v2411 = vlaneseq
    %v2412 = vshrl.u32 %v2411, 7
    %v2413 = vsub.s32 3, %v2412
    %v2414 = vrot.slane %v2395, %v2413
    %v2415 = vlaneseq
    %v2416 = vshrl.u32 %v2415, 7
    %v2417 = vsub.s32 4, %v2416
    %v2418 = vrot.slane %v2395, %v2417
    %v2419 = vlaneseq
    %v2420 = vshrl.u32 %v2419, 7
    %v2421 = vsub.s32 5, %v2420
    %v2422 = vrot.slane %v2395, %v2421
    %v2423 = vlaneseq
    %v2424 = vshrl.u32 %v2423, 7
    %v2425 = vsub.s32 6, %v2424
    %v2426 = vrot.slane %v2395, %v2425
    %v2427 = vlaneseq
    %v2428 = vshrl.u32 %v2427, 7
    %v2429 = vsub.s32 7, %v2428
    %v2430 = vrot.slane %v2395, %v2429
    %v2431 = vlaneseq
    %v2432 = vshrl.u32 %v2431, 7
    %v2433 = vsub.s32 0, %v2432
    %v2434 = vrot.slane %v2396, %v2433
    %v2435 = vlaneseq
    %v2436 = vshrl.u32 %v2435, 7
    %v2437 = vsub.s32 1, %v2436
    %v2438 = vrot.slane %v2396, %v2437
    %v2449 = vsub.f32 %v2301, %v2402
    %v2450 = vsub.f32 %v2302, %v2406
    %v2451 = vsub.f32 %v2303, %v2410
    %v2452 = vsub.f32 %v2304, %v2414
    %v2453 = vsub.f32 %v2305, %v2418
    %v2454 = vsub.f32 %v2306, %v2422
    %v2455 = vsub.f32 %v2307, %v2426
    %v2456 = vsub.f32 %v2308, %v2430
    %v2457 = vsub.f32 %v2309, %v2434
    %v2458 = vsub.f32 %v2310, %v2438
    %v2459 = vmul.f32 %v2449, %v2449
    %v2460 = vmul.f32 %v2450, %v2450
    %v2461 = vmul.f32 %v2451, %v2451
    %v2462 = vmul.f32 %v2452, %v2452
    %v2463 = vmul.f32 %v2453, %v2453
    %v2464 = vmul.f32 %v2454, %v2454
    %v2465 = vmul.f32 %v2455, %v2455
    %v2466 = vmul.f32 %v2456, %v2456
    %v2467 = vmul.f32 %v2457, %v2457
    %v2468 = vmul.f32 %v2458, %v2458
    %v2479 = vcombine.low %v2459, %v2460
    %v2480 = vcombine.low %v2461, %v2462
    %v2481 = vcombine.low %v2463, %v2464
    %v2482 = vcombine.low %v2465, %v2466
    %v2484 = vunpack.c.l.s4 1966171168
    %v2485 = vunpack.c.0.s8 %v2484
    %v2486 = vlaneseq
    %v2487 = vshrl.u32 %v2486, 7
    %v2488 = vsub.s32 %v2485, %v2487
    %v2489 = vrot.slane %v2479, %v2488
    %v2491 = vunpack.c.l.s4 1966171168
    %v2492 = vunpack.c.0.s8 %v2491
    %v2493 = vlaneseq
    %v2494 = vshrl.u32 %v2493, 7
    %v2495 = vsub.s32 %v2492, %v2494
    %v2496 = vrot.slane %v2480, %v2495
    %v2498 = vunpack.c.l.s4 1966171168
    %v2499 = vunpack.c.0.s8 %v2498
    %v2500 = vlaneseq
    %v2501 = vshrl.u32 %v2500, 7
    %v2502 = vsub.s32 %v2499, %v2501
    %v2503 = vrot.slane %v2481, %v2502
    %v2505 = vunpack.c.l.s4 1966171168
    %v2506 = vunpack.c.0.s8 %v2505
    %v2507 = vlaneseq
    %v2508 = vshrl.u32 %v2507, 7
    %v2509 = vsub.s32 %v2506, %v2508
    %v2510 = vrot.slane %v2482, %v2509
    %v2511 = vcombine.low %v2489, %v2496
    %v2512 = vcombine.low %v2503, %v2510
    %v2514 = vunpack.c.l.s4 1966171168
    %v2515 = vunpack.c.0.s8 %v2514
    %v2516 = vlaneseq
    %v2517 = vshrl.u32 %v2516, 7
    %v2518 = vsub.s32 %v2515, %v2517
    %v2519 = vrot.slane %v2511, %v2518
    %v2521 = vunpack.c.l.s4 1966171168
    %v2522 = vunpack.c.0.s8 %v2521
    %v2523 = vlaneseq
    %v2524 = vshrl.u32 %v2523, 7
    %v2525 = vsub.s32 %v2522, %v2524
    %v2526 = vrot.slane %v2512, %v2525
    %v2527 = vcombine.low %v2519, %v2526
    %v2528 = vcombine.low %v2467, %v2468
    %v2530 = vunpack.c.l.s4 1966171168
    %v2531 = vunpack.c.0.s8 %v2530
    %v2532 = vlaneseq
    %v2533 = vshrl.u32 %v2532, 7
    %v2534 = vsub.s32 %v2531, %v2533
    %v2535 = vrot.slane %v2528, %v2534
    %v2537 = vunpack.c.l.s4 1966171168
    %v2538 = vunpack.c.0.s8 %v2537
    %v2539 = vlaneseq
    %v2540 = vshrl.u32 %v2539, 7
    %v2541 = vsub.s32 %v2538, %v2540
    %v2542 = vrot.slane %v2535, %v2541
    %v2545 = vsel %vm339, %v2527, 0.0
    %2546 = vadd.xlane.f32.xlu0 %v2545
    %v2547 = vpop.xlane.xlu0 %2546
    %v2548 = vsel %vm343, %v2542, 0.0
    %2549 = vadd.xlane.f32.xlu0 %v2548
    %v2550 = vpop.xlane.xlu0 %2549
    %v2551 = vmul.f32 %v2547, %v347
    %v2552 = vmul.f32 %v2550, %v347
    %v2553 = vadd.f32 %v2551, 1e-06
    %v2554 = vadd.f32 %v2552, 1e-06
    %v2555 = vrsqrt.pop %v2553
    %v2556 = vrsqrt.pop %v2554
    %v2559 = vlaneseq
    %v2560 = vshrl.u32 %v2559, 7
    %v2561 = vsub.s32 0, %v2560
    %v2562 = vrot.slane %v2555, %v2561
    %v2563 = vlaneseq
    %v2564 = vshrl.u32 %v2563, 7
    %v2565 = vsub.s32 1, %v2564
    %v2566 = vrot.slane %v2555, %v2565
    %v2567 = vlaneseq
    %v2568 = vshrl.u32 %v2567, 7
    %v2569 = vsub.s32 2, %v2568
    %v2570 = vrot.slane %v2555, %v2569
    %v2571 = vlaneseq
    %v2572 = vshrl.u32 %v2571, 7
    %v2573 = vsub.s32 3, %v2572
    %v2574 = vrot.slane %v2555, %v2573
    %v2575 = vlaneseq
    %v2576 = vshrl.u32 %v2575, 7
    %v2577 = vsub.s32 4, %v2576
    %v2578 = vrot.slane %v2555, %v2577
    %v2579 = vlaneseq
    %v2580 = vshrl.u32 %v2579, 7
    %v2581 = vsub.s32 5, %v2580
    %v2582 = vrot.slane %v2555, %v2581
    %v2583 = vlaneseq
    %v2584 = vshrl.u32 %v2583, 7
    %v2585 = vsub.s32 6, %v2584
    %v2586 = vrot.slane %v2555, %v2585
    %v2587 = vlaneseq
    %v2588 = vshrl.u32 %v2587, 7
    %v2589 = vsub.s32 7, %v2588
    %v2590 = vrot.slane %v2555, %v2589
    %v2591 = vlaneseq
    %v2592 = vshrl.u32 %v2591, 7
    %v2593 = vsub.s32 0, %v2592
    %v2594 = vrot.slane %v2556, %v2593
    %v2595 = vlaneseq
    %v2596 = vshrl.u32 %v2595, 7
    %v2597 = vsub.s32 1, %v2596
    %v2598 = vrot.slane %v2556, %v2597
    %v2609 = vmul.f32 %v2449, %v2562
    %v2610 = vmul.f32 %v2450, %v2566
    %v2611 = vmul.f32 %v2451, %v2570
    %v2612 = vmul.f32 %v2452, %v2574
    %v2613 = vmul.f32 %v2453, %v2578
    %v2614 = vmul.f32 %v2454, %v2582
    %v2615 = vmul.f32 %v2455, %v2586
    %v2616 = vmul.f32 %v2456, %v2590
    %v2617 = vmul.f32 %v2457, %v2594
    %v2618 = vmul.f32 %v2458, %v2598
    %v2620 = vlaneseq
    %v2621 = vshrl.u32 %v2620, 7
    %v2622 = vsub.s32 0, %v2621
    %v2623 = vrot.slane %v2311, %v2622
    %v2624 = vcombine.high %v2623, %v2623
    %v2626 = vunpack.c.l.s4 1966171168
    %v2627 = vunpack.c.0.s8 %v2626
    %v2628 = vlaneseq
    %v2629 = vshrl.u32 %v2628, 7
    %v2630 = vsub.s32 %v2627, %v2629
    %v2631 = vrot.slane %v2623, %v2630
    %v2633 = vunpack.c.l.s4 1966171168
    %v2634 = vunpack.c.0.s8 %v2633
    %v2635 = vlaneseq
    %v2636 = vshrl.u32 %v2635, 7
    %v2637 = vsub.s32 %v2634, %v2636
    %v2638 = vrot.slane %v2624, %v2637
    %v2639 = vcombine.high %v2631, %v2631
    %v2640 = vcombine.high %v2638, %v2638
    %v2642 = vunpack.c.l.s4 1966171168
    %v2643 = vunpack.c.0.s8 %v2642
    %v2644 = vlaneseq
    %v2645 = vshrl.u32 %v2644, 7
    %v2646 = vsub.s32 %v2643, %v2645
    %v2647 = vrot.slane %v2631, %v2646
    %v2649 = vunpack.c.l.s4 1966171168
    %v2650 = vunpack.c.0.s8 %v2649
    %v2651 = vlaneseq
    %v2652 = vshrl.u32 %v2651, 7
    %v2653 = vsub.s32 %v2650, %v2652
    %v2654 = vrot.slane %v2638, %v2653
    %v2656 = vunpack.c.l.s4 1966171168
    %v2657 = vunpack.c.0.s8 %v2656
    %v2658 = vlaneseq
    %v2659 = vshrl.u32 %v2658, 7
    %v2660 = vsub.s32 %v2657, %v2659
    %v2661 = vrot.slane %v2639, %v2660
    %v2663 = vunpack.c.l.s4 1966171168
    %v2664 = vunpack.c.0.s8 %v2663
    %v2665 = vlaneseq
    %v2666 = vshrl.u32 %v2665, 7
    %v2667 = vsub.s32 %v2664, %v2666
    %v2668 = vrot.slane %v2640, %v2667
    %v2669 = vcombine.high %v2647, %v2647
    %v2670 = vcombine.high %v2654, %v2654
    %v2671 = vcombine.high %v2661, %v2661
    %v2672 = vcombine.high %v2668, %v2668
    %v2681 = vmul.f32 %v2609, %v2647
    %v2682 = vmul.f32 %v2610, %v2661
    %v2683 = vmul.f32 %v2611, %v2669
    %v2684 = vmul.f32 %v2612, %v2671
    %v2685 = vmul.f32 %v2613, %v2654
    %v2686 = vmul.f32 %v2614, %v2668
    %v2687 = vmul.f32 %v2615, %v2670
    %v2688 = vmul.f32 %v2616, %v2672
    %v2689 = vmul.f32 %v2617, %v2647
    %v2690 = vmul.f32 %v2618, %v2661
    %v2692 = vlaneseq
    %v2693 = vshrl.u32 %v2692, 7
    %v2694 = vsub.s32 0, %v2693
    %v2695 = vrot.slane %v2312, %v2694
    %v2696 = vcombine.high %v2695, %v2695
    %v2698 = vunpack.c.l.s4 1966171168
    %v2699 = vunpack.c.0.s8 %v2698
    %v2700 = vlaneseq
    %v2701 = vshrl.u32 %v2700, 7
    %v2702 = vsub.s32 %v2699, %v2701
    %v2703 = vrot.slane %v2695, %v2702
    %v2705 = vunpack.c.l.s4 1966171168
    %v2706 = vunpack.c.0.s8 %v2705
    %v2707 = vlaneseq
    %v2708 = vshrl.u32 %v2707, 7
    %v2709 = vsub.s32 %v2706, %v2708
    %v2710 = vrot.slane %v2696, %v2709
    %v2711 = vcombine.high %v2703, %v2703
    %v2712 = vcombine.high %v2710, %v2710
    %v2714 = vunpack.c.l.s4 1966171168
    %v2715 = vunpack.c.0.s8 %v2714
    %v2716 = vlaneseq
    %v2717 = vshrl.u32 %v2716, 7
    %v2718 = vsub.s32 %v2715, %v2717
    %v2719 = vrot.slane %v2703, %v2718
    %v2721 = vunpack.c.l.s4 1966171168
    %v2722 = vunpack.c.0.s8 %v2721
    %v2723 = vlaneseq
    %v2724 = vshrl.u32 %v2723, 7
    %v2725 = vsub.s32 %v2722, %v2724
    %v2726 = vrot.slane %v2710, %v2725
    %v2728 = vunpack.c.l.s4 1966171168
    %v2729 = vunpack.c.0.s8 %v2728
    %v2730 = vlaneseq
    %v2731 = vshrl.u32 %v2730, 7
    %v2732 = vsub.s32 %v2729, %v2731
    %v2733 = vrot.slane %v2711, %v2732
    %v2735 = vunpack.c.l.s4 1966171168
    %v2736 = vunpack.c.0.s8 %v2735
    %v2737 = vlaneseq
    %v2738 = vshrl.u32 %v2737, 7
    %v2739 = vsub.s32 %v2736, %v2738
    %v2740 = vrot.slane %v2712, %v2739
    %v2741 = vcombine.high %v2719, %v2719
    %v2742 = vcombine.high %v2726, %v2726
    %v2743 = vcombine.high %v2733, %v2733
    %v2744 = vcombine.high %v2740, %v2740
    %v2753 = vadd.f32 %v2681, %v2719
    %v2754 = vadd.f32 %v2682, %v2733
    %v2755 = vadd.f32 %v2683, %v2741
    %v2756 = vadd.f32 %v2684, %v2743
    %v2757 = vadd.f32 %v2685, %v2726
    %v2758 = vadd.f32 %v2686, %v2740
    %v2759 = vadd.f32 %v2687, %v2742
    %v2760 = vadd.f32 %v2688, %v2744
    %v2761 = vadd.f32 %v2689, %v2719
    %v2762 = vadd.f32 %v2690, %v2733
    %v2763 = vld [vmem:[%s11] sm:$0xff]
    %v2764 = vld [vmem:[%s11 + $0x8] sm:$0xff]
    %v2765 = vld [vmem:[%s11 + $0x10] sm:$0xff]
    %v2766 = vld [vmem:[%s11 + $0x18] sm:$0xff]
    %v2767 = vld [vmem:[%s12] sm:$0x1]
    %v2769 = vlaneseq
    %v2770 = vshrl.u32 %v2769, 7
    %v2771 = vsub.s32 0, %v2770
    %v2772 = vrot.slane %v2767, %v2771
    %v2784 = vcombine.low %v2753, %v2754
    %v2785 = vcombine.low %v2755, %v2756
    %v2786 = vcombine.low %v2757, %v2758
    %v2787 = vcombine.low %v2759, %v2760
    %v2789 = vunpack.c.l.s4 1966171168
    %v2790 = vunpack.c.0.s8 %v2789
    %v2791 = vlaneseq
    %v2792 = vshrl.u32 %v2791, 7
    %v2793 = vsub.s32 %v2790, %v2792
    %v2794 = vrot.slane %v2784, %v2793
    %v2796 = vunpack.c.l.s4 1966171168
    %v2797 = vunpack.c.0.s8 %v2796
    %v2798 = vlaneseq
    %v2799 = vshrl.u32 %v2798, 7
    %v2800 = vsub.s32 %v2797, %v2799
    %v2801 = vrot.slane %v2785, %v2800
    %v2803 = vunpack.c.l.s4 1966171168
    %v2804 = vunpack.c.0.s8 %v2803
    %v2805 = vlaneseq
    %v2806 = vshrl.u32 %v2805, 7
    %v2807 = vsub.s32 %v2804, %v2806
    %v2808 = vrot.slane %v2786, %v2807
    %v2810 = vunpack.c.l.s4 1966171168
    %v2811 = vunpack.c.0.s8 %v2810
    %v2812 = vlaneseq
    %v2813 = vshrl.u32 %v2812, 7
    %v2814 = vsub.s32 %v2811, %v2813
    %v2815 = vrot.slane %v2787, %v2814
    %v2816 = vcombine.low %v2794, %v2801
    %v2817 = vcombine.low %v2808, %v2815
    %v2819 = vunpack.c.l.s4 1966171168
    %v2820 = vunpack.c.0.s8 %v2819
    %v2821 = vlaneseq
    %v2822 = vshrl.u32 %v2821, 7
    %v2823 = vsub.s32 %v2820, %v2822
    %v2824 = vrot.slane %v2816, %v2823
    %v2826 = vunpack.c.l.s4 1966171168
    %v2827 = vunpack.c.0.s8 %v2826
    %v2828 = vlaneseq
    %v2829 = vshrl.u32 %v2828, 7
    %v2830 = vsub.s32 %v2827, %v2829
    %v2831 = vrot.slane %v2817, %v2830
    %v2832 = vcombine.low %v2824, %v2831
    %v2833 = vcombine.low %v2761, %v2762
    %v2835 = vunpack.c.l.s4 1966171168
    %v2836 = vunpack.c.0.s8 %v2835
    %v2837 = vlaneseq
    %v2838 = vshrl.u32 %v2837, 7
    %v2839 = vsub.s32 %v2836, %v2838
    %v2840 = vrot.slane %v2833, %v2839
    %v2842 = vunpack.c.l.s4 1966171168
    %v2843 = vunpack.c.0.s8 %v2842
    %v2844 = vlaneseq
    %v2845 = vshrl.u32 %v2844, 7
    %v2846 = vsub.s32 %v2843, %v2845
    %v2847 = vrot.slane %v2840, %v2846
    %v2848 = vsel %vm339, %v2832, 0
    %v2850 = vsel %vm339, %v2847, 0
    %2852 = vmatprep.subr.mxu0 0.0
    %2853 = vmatpush1.msra.mxu0 %v2763
    %2854 = vmatprep.subr.mxu0 0.0
    %2855 = vmatpush1.msra.mxu0 %v2764
    %2856 = vmatprep.subr.mxu0 0.0
    %2857 = vmatpush1.msra.mxu0 %v2765
    %2858 = vmatprep.subr.mxu0 0.0
    %2859 = vmatpush1.msra.mxu0 %v2766
    %2860 = vmatprep.subr.mxu0 0.0
    %2861 = vmatpush1.msra.mxu0 0.0
    %2862 = vmatprep.subr.mxu0 0.0
    %2863 = vmatpush1.msra.mxu0 0.0
    %2864 = vmatprep.subr.mxu0 0.0
    %2865 = vmatpush1.msra.mxu0 0.0
    %2866 = vmatprep.subr.mxu0 0.0
    %2867 = vmatpush1.msra.mxu0 0.0
    %2868 = vmatprep.subr.mxu0 0.0
    %2869 = vmatpush1.msra.mxu0 0.0
    %2870 = vmatprep.subr.mxu0 0.0
    %2871 = vmatpush1.msra.mxu0 0.0
    %2872 = vmatprep.subr.mxu0 0.0
    %2873 = vmatpush1.msra.mxu0 0.0
    %2874 = vmatprep.subr.mxu0 0.0
    %2875 = vmatpush1.msra.mxu0 0.0
    %2876 = vmatprep.subr.mxu0 0.0
    %2877 = vmatpush1.msra.mxu0 0.0
    %2878 = vmatprep.subr.mxu0 0.0
    %2879 = vmatpush1.msra.mxu0 0.0
    %2880 = vmatprep.subr.mxu0 0.0
    %2881 = vmatpush1.msra.mxu0 0.0
    %2882 = vmatprep.subr.mxu0 0.0
    %2883 = vmatpush1.msra.mxu0 0.0
    %2884 = vmatprep.subr.mxu0 0.0
    %2885 = vmatpush1.msra.mxu0 0.0
    %2886 = vmatprep.subr.mxu0 0.0
    %2887 = vmatpush1.msra.mxu0 0.0
    %2888 = vmatprep.subr.mxu0 0.0
    %2889 = vmatpush1.msra.mxu0 0.0
    %2890 = vmatprep.subr.mxu0 0.0
    %2891 = vmatpush1.msra.mxu0 0.0
    %2892 = vmatprep.subr.mxu0 0.0
    %2893 = vmatpush1.msra.mxu0 0.0
    %2894 = vmatprep.subr.mxu0 0.0
    %2895 = vmatpush1.msra.mxu0 0.0
    %2896 = vmatprep.subr.mxu0 0.0
    %2897 = vmatpush1.msra.mxu0 0.0
    %2898 = vmatprep.subr.mxu0 0.0
    %2899 = vmatpush1.msra.mxu0 0.0
    %2900 = vmatprep.subr.mxu0 0.0
    %2901 = vmatpush1.msra.mxu0 0.0
    %2902 = vmatprep.subr.mxu0 0.0
    %2903 = vmatpush1.msra.mxu0 0.0
    %2904 = vmatprep.subr.mxu0 0.0
    %2905 = vmatpush1.msra.mxu0 0.0
    %2906 = vmatprep.subr.mxu0 0.0
    %2907 = vmatpush1.msra.mxu0 0.0
    %2908 = vmatprep.subr.mxu0 0.0
    %2909 = vmatpush1.msra.mxu0 0.0
    %2910 = vmatprep.subr.mxu0 0.0
    %2911 = vmatpush1.msra.mxu0 0.0
    %2912 = vmatprep.subr.mxu0 0.0
    %2913 = vmatpush1.msra.mxu0 0.0
    %2914 = vmatprep.subr.mxu0 0.0
    %2915 = vmatpush1.msra.mxu0 0.0
    %2916 = vmatprep.mubr.f32.mxu0 0.0
    %2917 = vmatmul.mubr.f32.gmra.mrb[0].mxu0 %v2848
    %v2918 = vpop.f32.mrb[0].mxu0
    %v2919 = vadd.f32 %v2772, %v2918
    %v2920 = vpop.f32.mrb[0].mxu0
    %2921 = vmatprep.mubr.f32.mxu0 0.0
    %2922 = vmatmul.mubr.f32.gmra.mrb[0].mxu0 %v2850
    %v2923 = vpop.f32.mrb[0].mxu0
    %v2924 = vadd.f32 %v2772, %v2923
    %v2925 = vpop.f32.mrb[0].mxu0
    %2926 = vdwg.mxu0
    %v2927 = vmul.f32 %v2919, 0.5
    %v2928 = vmul.f32 %v2924, 0.5
    %v2929 = vmul.f32 %v2919, 0.70710677
    %v2930 = vmul.f32 %v2924, 0.70710677
    %vm2931 = vcmp.ge.f32.partialorder %v2929, 0.0
    %vm2932 = vcmp.ge.f32.partialorder %v2930, 0.0
    %v2933 = vsel %vm2931, 1.0, -1.0
    %v2934 = vsel %vm2932, 1.0, -1.0
    %v2935 = vand.u32 2147483647, %v2929
    %v2936 = vand.u32 2147483647, %v2930
    %v2937 = vmul.f32 %v2935, 0.3275911
    %v2938 = vmul.f32 %v2936, 0.3275911
    %v2939 = vadd.f32 %v2937, 1.0
    %v2940 = vadd.f32 %v2938, 1.0
    %v2941 = vrcp.pop %v2939
    %v2942 = vmul.f32 1.0, %v2941
    %v2943 = vrcp.pop %v2940
    %v2944 = vmul.f32 1.0, %v2943
    %v2945 = vmul.f32 %v2942, 1.0614054
    %v2946 = vmul.f32 %v2944, 1.0614054
    %v2947 = vadd.f32 %v2945, -1.4531521
    %v2948 = vadd.f32 %v2946, -1.4531521
    %v2949 = vmul.f32 %v2947, %v2942
    %v2950 = vmul.f32 %v2948, %v2944
    %v2951 = vadd.f32 %v2949, 1.4214138
    %v2952 = vadd.f32 %v2950, 1.4214138
    %v2953 = vmul.f32 %v2951, %v2942
    %v2954 = vmul.f32 %v2952, %v2944
    %v2955 = vadd.f32 %v2953, -0.28449672
    %v2956 = vadd.f32 %v2954, -0.28449672
    %v2957 = vmul.f32 %v2955, %v2942
    %v2958 = vmul.f32 %v2956, %v2944
    %v2959 = vadd.f32 %v2957, 0.2548296
    %v2960 = vadd.f32 %v2958, 0.2548296
    %v2961 = vmul.f32 %v2959, %v2942
    %v2962 = vmul.f32 %v2960, %v2944
    %v2963 = vsub.f32 0.0, %v2935
    %v2964 = vsub.f32 0.0, %v2936
    %v2965 = vmul.f32 %v2963, %v2935
    %v2966 = vmul.f32 %v2964, %v2936
    %v2967 = vmul.f32 %v2965, 1.442695
    %v2968 = vpow.pop %v2967
    %v2969 = vmul.f32 %v2966, 1.442695
    %v2970 = vpow.pop %v2969
    %v2971 = vmul.f32 %v2961, %v2968
    %v2972 = vmul.f32 %v2962, %v2970
    %v2973 = vsub.f32 1.0, %v2971
    %v2974 = vsub.f32 1.0, %v2972
    %v2975 = vmul.f32 %v2933, %v2973
    %v2976 = vmul.f32 %v2934, %v2974
    %v2977 = vadd.f32 %v2975, 1.0
    %v2978 = vadd.f32 %v2976, 1.0
    %v2979 = vmul.f32 %v2927, %v2977
    %v2980 = vmul.f32 %v2928, %v2978
    %v2981 = vld [vmem:[%s13] sm:$0xff]
    %v2982 = vld [vmem:[%s13 + $0x8] sm:$0xff]
    %v2983 = vld [vmem:[%s13 + $0x10] sm:$0xff]
    %v2984 = vld [vmem:[%s13 + $0x18] sm:$0xff]
    %v2985 = vld [vmem:[%s13 + $0x20] sm:$0xff]
    %v2986 = vld [vmem:[%s13 + $0x28] sm:$0xff]
    %v2987 = vld [vmem:[%s13 + $0x30] sm:$0xff]
    %v2988 = vld [vmem:[%s13 + $0x38] sm:$0xff]
    %v2989 = vld [vmem:[%s13 + $0x40] sm:$0xff]
    %v2990 = vld [vmem:[%s13 + $0x48] sm:$0xff]
    %v2991 = vld [vmem:[%s13 + $0x50] sm:$0xff]
    %v2992 = vld [vmem:[%s13 + $0x58] sm:$0xff]
    %v2993 = vld [vmem:[%s13 + $0x60] sm:$0xff]
    %v2994 = vld [vmem:[%s13 + $0x68] sm:$0xff]
    %v2995 = vld [vmem:[%s13 + $0x70] sm:$0xff]
    %v2996 = vld [vmem:[%s13 + $0x78] sm:$0xff]
    %2997 = vmatprep.subr.mxu0 0.0
    %2998 = vmatpush1.msra.mxu0 %v2981
    %2999 = vmatprep.subr.mxu0 0.0
    %3000 = vmatpush1.msra.mxu0 %v2982
    %3001 = vmatprep.subr.mxu0 0.0
    %3002 = vmatpush1.msra.mxu0 %v2983
    %3003 = vmatprep.subr.mxu0 0.0
    %3004 = vmatpush1.msra.mxu0 %v2984
    %3005 = vmatprep.subr.mxu0 0.0
    %3006 = vmatpush1.msra.mxu0 %v2985
    %3007 = vmatprep.subr.mxu0 0.0
    %3008 = vmatpush1.msra.mxu0 %v2986
    %3009 = vmatprep.subr.mxu0 0.0
    %3010 = vmatpush1.msra.mxu0 %v2987
    %3011 = vmatprep.subr.mxu0 0.0
    %3012 = vmatpush1.msra.mxu0 %v2988
    %3013 = vmatprep.subr.mxu0 0.0
    %3014 = vmatpush1.msra.mxu0 %v2989
    %3015 = vmatprep.subr.mxu0 0.0
    %3016 = vmatpush1.msra.mxu0 %v2990
    %3017 = vmatprep.subr.mxu0 0.0
    %3018 = vmatpush1.msra.mxu0 %v2991
    %3019 = vmatprep.subr.mxu0 0.0
    %3020 = vmatpush1.msra.mxu0 %v2992
    %3021 = vmatprep.subr.mxu0 0.0
    %3022 = vmatpush1.msra.mxu0 %v2993
    %3023 = vmatprep.subr.mxu0 0.0
    %3024 = vmatpush1.msra.mxu0 %v2994
    %3025 = vmatprep.subr.mxu0 0.0
    %3026 = vmatpush1.msra.mxu0 %v2995
    %3027 = vmatprep.subr.mxu0 0.0
    %3028 = vmatpush1.msra.mxu0 %v2996
    %3029 = vmatprep.subr.mxu0 0.0
    %3030 = vmatpush1.msra.mxu0 0.0
    %3031 = vmatprep.subr.mxu0 0.0
    %3032 = vmatpush1.msra.mxu0 0.0
    %3033 = vmatprep.subr.mxu0 0.0
    %3034 = vmatpush1.msra.mxu0 0.0
    %3035 = vmatprep.subr.mxu0 0.0
    %3036 = vmatpush1.msra.mxu0 0.0
    %3037 = vmatprep.subr.mxu0 0.0
    %3038 = vmatpush1.msra.mxu0 0.0
    %3039 = vmatprep.subr.mxu0 0.0
    %3040 = vmatpush1.msra.mxu0 0.0
    %3041 = vmatprep.subr.mxu0 0.0
    %3042 = vmatpush1.msra.mxu0 0.0
    %3043 = vmatprep.subr.mxu0 0.0
    %3044 = vmatpush1.msra.mxu0 0.0
    %3045 = vmatprep.subr.mxu0 0.0
    %3046 = vmatpush1.msra.mxu0 0.0
    %3047 = vmatprep.subr.mxu0 0.0
    %3048 = vmatpush1.msra.mxu0 0.0
    %3049 = vmatprep.subr.mxu0 0.0
    %3050 = vmatpush1.msra.mxu0 0.0
    %3051 = vmatprep.subr.mxu0 0.0
    %3052 = vmatpush1.msra.mxu0 0.0
    %3053 = vmatprep.subr.mxu0 0.0
    %3054 = vmatpush1.msra.mxu0 0.0
    %3055 = vmatprep.subr.mxu0 0.0
    %3056 = vmatpush1.msra.mxu0 0.0
    %3057 = vmatprep.subr.mxu0 0.0
    %3058 = vmatpush1.msra.mxu0 0.0
    %3059 = vmatprep.subr.mxu0 0.0
    %3060 = vmatpush1.msra.mxu0 0.0
    %3061 = vmatprep.mubr.f32.mxu0 0.0
    %3062 = vmatmul.mubr.f32.gmra.mrb[0].mxu0 %v2979
    %v3063 = vpop.f32.mrb[0].mxu0
    %v3064 = vadd.f32 0.0, %v3063
    %v3065 = vpop.f32.mrb[0].mxu0
    %3066 = vmatprep.mubr.f32.mxu0 0.0
    %3067 = vmatmul.mubr.f32.gmra.mrb[0].mxu0 %v2980
    %v3068 = vpop.f32.mrb[0].mxu0
    %v3069 = vadd.f32 0.0, %v3068
    %v3070 = vpop.f32.mrb[0].mxu0
    %3071 = vdwg.mxu0
    %v3074 = vcombine.high %v3064, %v3064
    %v3076 = vunpack.c.l.s4 1966171168
    %v3077 = vunpack.c.0.s8 %v3076
    %v3078 = vlaneseq
    %v3079 = vshrl.u32 %v3078, 7
    %v3080 = vsub.s32 %v3077, %v3079
    %v3081 = vrot.slane %v3064, %v3080
    %v3083 = vunpack.c.l.s4 1966171168
    %v3084 = vunpack.c.0.s8 %v3083
    %v3085 = vlaneseq
    %v3086 = vshrl.u32 %v3085, 7
    %v3087 = vsub.s32 %v3084, %v3086
    %v3088 = vrot.slane %v3074, %v3087
    %v3089 = vcombine.high %v3081, %v3081
    %v3090 = vcombine.high %v3088, %v3088
    %v3092 = vunpack.c.l.s4 1966171168
    %v3093 = vunpack.c.0.s8 %v3092
    %v3094 = vlaneseq
    %v3095 = vshrl.u32 %v3094, 7
    %v3096 = vsub.s32 %v3093, %v3095
    %v3097 = vrot.slane %v3081, %v3096
    %v3099 = vunpack.c.l.s4 1966171168
    %v3100 = vunpack.c.0.s8 %v3099
    %v3101 = vlaneseq
    %v3102 = vshrl.u32 %v3101, 7
    %v3103 = vsub.s32 %v3100, %v3102
    %v3104 = vrot.slane %v3088, %v3103
    %v3106 = vunpack.c.l.s4 1966171168
    %v3107 = vunpack.c.0.s8 %v3106
    %v3108 = vlaneseq
    %v3109 = vshrl.u32 %v3108, 7
    %v3110 = vsub.s32 %v3107, %v3109
    %v3111 = vrot.slane %v3089, %v3110
    %v3113 = vunpack.c.l.s4 1966171168
    %v3114 = vunpack.c.0.s8 %v3113
    %v3115 = vlaneseq
    %v3116 = vshrl.u32 %v3115, 7
    %v3117 = vsub.s32 %v3114, %v3116
    %v3118 = vrot.slane %v3090, %v3117
    %v3119 = vcombine.high %v3097, %v3097
    %v3120 = vcombine.high %v3104, %v3104
    %v3121 = vcombine.high %v3111, %v3111
    %v3122 = vcombine.high %v3118, %v3118
    %v3124 = vunpack.c.l.s4 1966171168
    %v3125 = vunpack.c.0.s8 %v3124
    %v3126 = vlaneseq
    %v3127 = vshrl.u32 %v3126, 7
    %v3128 = vsub.s32 %v3125, %v3127
    %v3129 = vrot.slane %v3069, %v3128
    %v3130 = vcombine.high %v3129, %v3129
    %v3132 = vunpack.c.l.s4 1966171168
    %v3133 = vunpack.c.0.s8 %v3132
    %v3134 = vlaneseq
    %v3135 = vshrl.u32 %v3134, 7
    %v3136 = vsub.s32 %v3133, %v3135
    %v3137 = vrot.slane %v3129, %v3136
    %v3139 = vunpack.c.l.s4 1966171168
    %v3140 = vunpack.c.0.s8 %v3139
    %v3141 = vlaneseq
    %v3142 = vshrl.u32 %v3141, 7
    %v3143 = vsub.s32 %v3140, %v3142
    %v3144 = vrot.slane %v3130, %v3143
    %v3155 = vadd.f32 %v2301, %v3097
    %v3156 = vadd.f32 %v2302, %v3111
    %v3157 = vadd.f32 %v2303, %v3119
    %v3158 = vadd.f32 %v2304, %v3121
    %v3159 = vadd.f32 %v2305, %v3104
    %v3160 = vadd.f32 %v2306, %v3118
    %v3161 = vadd.f32 %v2307, %v3120
    %v3162 = vadd.f32 %v2308, %v3122
    %v3163 = vadd.f32 %v2309, %v3137
    %v3164 = vadd.f32 %v2310, %v3144
    %v3165 = vld [vmem:[%s14] sm:$0x1]
    %v3167 = vlaneseq
    %v3168 = vshrl.u32 %v3167, 7
    %v3169 = vsub.s32 0, %v3168
    %v3170 = vrot.slane %v3165, %v3169
    %v3171 = vcombine.high %v3170, %v3170
    %v3173 = vunpack.c.l.s4 1966171168
    %v3174 = vunpack.c.0.s8 %v3173
    %v3175 = vlaneseq
    %v3176 = vshrl.u32 %v3175, 7
    %v3177 = vsub.s32 %v3174, %v3176
    %v3178 = vrot.slane %v3170, %v3177
    %v3180 = vunpack.c.l.s4 1966171168
    %v3181 = vunpack.c.0.s8 %v3180
    %v3182 = vlaneseq
    %v3183 = vshrl.u32 %v3182, 7
    %v3184 = vsub.s32 %v3181, %v3183
    %v3185 = vrot.slane %v3171, %v3184
    %v3186 = vcombine.high %v3178, %v3178
    %v3187 = vcombine.high %v3185, %v3185
    %v3189 = vunpack.c.l.s4 1966171168
    %v3190 = vunpack.c.0.s8 %v3189
    %v3191 = vlaneseq
    %v3192 = vshrl.u32 %v3191, 7
    %v3193 = vsub.s32 %v3190, %v3192
    %v3194 = vrot.slane %v3178, %v3193
    %v3196 = vunpack.c.l.s4 1966171168
    %v3197 = vunpack.c.0.s8 %v3196
    %v3198 = vlaneseq
    %v3199 = vshrl.u32 %v3198, 7
    %v3200 = vsub.s32 %v3197, %v3199
    %v3201 = vrot.slane %v3185, %v3200
    %v3203 = vunpack.c.l.s4 1966171168
    %v3204 = vunpack.c.0.s8 %v3203
    %v3205 = vlaneseq
    %v3206 = vshrl.u32 %v3205, 7
    %v3207 = vsub.s32 %v3204, %v3206
    %v3208 = vrot.slane %v3186, %v3207
    %v3210 = vunpack.c.l.s4 1966171168
    %v3211 = vunpack.c.0.s8 %v3210
    %v3212 = vlaneseq
    %v3213 = vshrl.u32 %v3212, 7
    %v3214 = vsub.s32 %v3211, %v3213
    %v3215 = vrot.slane %v3187, %v3214
    %v3216 = vcombine.high %v3194, %v3194
    %v3217 = vcombine.high %v3201, %v3201
    %v3218 = vcombine.high %v3208, %v3208
    %v3219 = vcombine.high %v3215, %v3215
    %v3228 = vadd.f32 %v3155, %v3194
    %v3229 = vadd.f32 %v3156, %v3208
    %v3230 = vadd.f32 %v3157, %v3216
    %v3231 = vadd.f32 %v3158, %v3218
    %v3232 = vadd.f32 %v3159, %v3201
    %v3233 = vadd.f32 %v3160, %v3215
    %v3234 = vadd.f32 %v3161, %v3217
    %v3235 = vadd.f32 %v3162, %v3219
    %v3236 = vadd.f32 %v3163, %v3194
    %v3237 = vadd.f32 %v3164, %v3208
    %s3238 = scalar_lea.vmem %s3, 1
    %v3239 = vld [vmem:[%s3238] sm:$0x1]
    %s3240 = scalar_lea.vmem %s4, 1
    %v3241 = vld [vmem:[%s3240] sm:$0x1]
    %v3252 = vcombine.low %v3228, %v3229
    %v3253 = vcombine.low %v3230, %v3231
    %v3254 = vcombine.low %v3232, %v3233
    %v3255 = vcombine.low %v3234, %v3235
    %v3257 = vunpack.c.l.s4 1966171168
    %v3258 = vunpack.c.0.s8 %v3257
    %v3259 = vlaneseq
    %v3260 = vshrl.u32 %v3259, 7
    %v3261 = vsub.s32 %v3258, %v3260
    %v3262 = vrot.slane %v3252, %v3261
    %v3264 = vunpack.c.l.s4 1966171168
    %v3265 = vunpack.c.0.s8 %v3264
    %v3266 = vlaneseq
    %v3267 = vshrl.u32 %v3266, 7
    %v3268 = vsub.s32 %v3265, %v3267
    %v3269 = vrot.slane %v3253, %v3268
    %v3271 = vunpack.c.l.s4 1966171168
    %v3272 = vunpack.c.0.s8 %v3271
    %v3273 = vlaneseq
    %v3274 = vshrl.u32 %v3273, 7
    %v3275 = vsub.s32 %v3272, %v3274
    %v3276 = vrot.slane %v3254, %v3275
    %v3278 = vunpack.c.l.s4 1966171168
    %v3279 = vunpack.c.0.s8 %v3278
    %v3280 = vlaneseq
    %v3281 = vshrl.u32 %v3280, 7
    %v3282 = vsub.s32 %v3279, %v3281
    %v3283 = vrot.slane %v3255, %v3282
    %v3284 = vcombine.low %v3262, %v3269
    %v3285 = vcombine.low %v3276, %v3283
    %v3287 = vunpack.c.l.s4 1966171168
    %v3288 = vunpack.c.0.s8 %v3287
    %v3289 = vlaneseq
    %v3290 = vshrl.u32 %v3289, 7
    %v3291 = vsub.s32 %v3288, %v3290
    %v3292 = vrot.slane %v3284, %v3291
    %v3294 = vunpack.c.l.s4 1966171168
    %v3295 = vunpack.c.0.s8 %v3294
    %v3296 = vlaneseq
    %v3297 = vshrl.u32 %v3296, 7
    %v3298 = vsub.s32 %v3295, %v3297
    %v3299 = vrot.slane %v3285, %v3298
    %v3300 = vcombine.low %v3292, %v3299
    %v3301 = vcombine.low %v3236, %v3237
    %v3303 = vunpack.c.l.s4 1966171168
    %v3304 = vunpack.c.0.s8 %v3303
    %v3305 = vlaneseq
    %v3306 = vshrl.u32 %v3305, 7
    %v3307 = vsub.s32 %v3304, %v3306
    %v3308 = vrot.slane %v3301, %v3307
    %v3310 = vunpack.c.l.s4 1966171168
    %v3311 = vunpack.c.0.s8 %v3310
    %v3312 = vlaneseq
    %v3313 = vshrl.u32 %v3312, 7
    %v3314 = vsub.s32 %v3311, %v3313
    %v3315 = vrot.slane %v3308, %v3314
    %v3318 = vsel %vm339, %v3300, 0.0
    %3319 = vadd.xlane.f32.xlu0 %v3318
    %v3320 = vpop.xlane.xlu0 %3319
    %v3321 = vsel %vm343, %v3315, 0.0
    %3322 = vadd.xlane.f32.xlu0 %v3321
    %v3323 = vpop.xlane.xlu0 %3322
    %v3324 = vmul.f32 %v3320, %v347
    %v3325 = vmul.f32 %v3323, %v347
    %v3328 = vlaneseq
    %v3329 = vshrl.u32 %v3328, 7
    %v3330 = vsub.s32 0, %v3329
    %v3331 = vrot.slane %v3324, %v3330
    %v3332 = vlaneseq
    %v3333 = vshrl.u32 %v3332, 7
    %v3334 = vsub.s32 1, %v3333
    %v3335 = vrot.slane %v3324, %v3334
    %v3336 = vlaneseq
    %v3337 = vshrl.u32 %v3336, 7
    %v3338 = vsub.s32 2, %v3337
    %v3339 = vrot.slane %v3324, %v3338
    %v3340 = vlaneseq
    %v3341 = vshrl.u32 %v3340, 7
    %v3342 = vsub.s32 3, %v3341
    %v3343 = vrot.slane %v3324, %v3342
    %v3344 = vlaneseq
    %v3345 = vshrl.u32 %v3344, 7
    %v3346 = vsub.s32 4, %v3345
    %v3347 = vrot.slane %v3324, %v3346
    %v3348 = vlaneseq
    %v3349 = vshrl.u32 %v3348, 7
    %v3350 = vsub.s32 5, %v3349
    %v3351 = vrot.slane %v3324, %v3350
    %v3352 = vlaneseq
    %v3353 = vshrl.u32 %v3352, 7
    %v3354 = vsub.s32 6, %v3353
    %v3355 = vrot.slane %v3324, %v3354
    %v3356 = vlaneseq
    %v3357 = vshrl.u32 %v3356, 7
    %v3358 = vsub.s32 7, %v3357
    %v3359 = vrot.slane %v3324, %v3358
    %v3360 = vlaneseq
    %v3361 = vshrl.u32 %v3360, 7
    %v3362 = vsub.s32 0, %v3361
    %v3363 = vrot.slane %v3325, %v3362
    %v3364 = vlaneseq
    %v3365 = vshrl.u32 %v3364, 7
    %v3366 = vsub.s32 1, %v3365
    %v3367 = vrot.slane %v3325, %v3366
    %v3378 = vsub.f32 %v3228, %v3331
    %v3379 = vsub.f32 %v3229, %v3335
    %v3380 = vsub.f32 %v3230, %v3339
    %v3381 = vsub.f32 %v3231, %v3343
    %v3382 = vsub.f32 %v3232, %v3347
    %v3383 = vsub.f32 %v3233, %v3351
    %v3384 = vsub.f32 %v3234, %v3355
    %v3385 = vsub.f32 %v3235, %v3359
    %v3386 = vsub.f32 %v3236, %v3363
    %v3387 = vsub.f32 %v3237, %v3367
    %v3388 = vmul.f32 %v3378, %v3378
    %v3389 = vmul.f32 %v3379, %v3379
    %v3390 = vmul.f32 %v3380, %v3380
    %v3391 = vmul.f32 %v3381, %v3381
    %v3392 = vmul.f32 %v3382, %v3382
    %v3393 = vmul.f32 %v3383, %v3383
    %v3394 = vmul.f32 %v3384, %v3384
    %v3395 = vmul.f32 %v3385, %v3385
    %v3396 = vmul.f32 %v3386, %v3386
    %v3397 = vmul.f32 %v3387, %v3387
    %v3408 = vcombine.low %v3388, %v3389
    %v3409 = vcombine.low %v3390, %v3391
    %v3410 = vcombine.low %v3392, %v3393
    %v3411 = vcombine.low %v3394, %v3395
    %v3413 = vunpack.c.l.s4 1966171168
    %v3414 = vunpack.c.0.s8 %v3413
    %v3415 = vlaneseq
    %v3416 = vshrl.u32 %v3415, 7
    %v3417 = vsub.s32 %v3414, %v3416
    %v3418 = vrot.slane %v3408, %v3417
    %v3420 = vunpack.c.l.s4 1966171168
    %v3421 = vunpack.c.0.s8 %v3420
    %v3422 = vlaneseq
    %v3423 = vshrl.u32 %v3422, 7
    %v3424 = vsub.s32 %v3421, %v3423
    %v3425 = vrot.slane %v3409, %v3424
    %v3427 = vunpack.c.l.s4 1966171168
    %v3428 = vunpack.c.0.s8 %v3427
    %v3429 = vlaneseq
    %v3430 = vshrl.u32 %v3429, 7
    %v3431 = vsub.s32 %v3428, %v3430
    %v3432 = vrot.slane %v3410, %v3431
    %v3434 = vunpack.c.l.s4 1966171168
    %v3435 = vunpack.c.0.s8 %v3434
    %v3436 = vlaneseq
    %v3437 = vshrl.u32 %v3436, 7
    %v3438 = vsub.s32 %v3435, %v3437
    %v3439 = vrot.slane %v3411, %v3438
    %v3440 = vcombine.low %v3418, %v3425
    %v3441 = vcombine.low %v3432, %v3439
    %v3443 = vunpack.c.l.s4 1966171168
    %v3444 = vunpack.c.0.s8 %v3443
    %v3445 = vlaneseq
    %v3446 = vshrl.u32 %v3445, 7
    %v3447 = vsub.s32 %v3444, %v3446
    %v3448 = vrot.slane %v3440, %v3447
    %v3450 = vunpack.c.l.s4 1966171168
    %v3451 = vunpack.c.0.s8 %v3450
    %v3452 = vlaneseq
    %v3453 = vshrl.u32 %v3452, 7
    %v3454 = vsub.s32 %v3451, %v3453
    %v3455 = vrot.slane %v3441, %v3454
    %v3456 = vcombine.low %v3448, %v3455
    %v3457 = vcombine.low %v3396, %v3397
    %v3459 = vunpack.c.l.s4 1966171168
    %v3460 = vunpack.c.0.s8 %v3459
    %v3461 = vlaneseq
    %v3462 = vshrl.u32 %v3461, 7
    %v3463 = vsub.s32 %v3460, %v3462
    %v3464 = vrot.slane %v3457, %v3463
    %v3466 = vunpack.c.l.s4 1966171168
    %v3467 = vunpack.c.0.s8 %v3466
    %v3468 = vlaneseq
    %v3469 = vshrl.u32 %v3468, 7
    %v3470 = vsub.s32 %v3467, %v3469
    %v3471 = vrot.slane %v3464, %v3470
    %v3474 = vsel %vm339, %v3456, 0.0
    %3475 = vadd.xlane.f32.xlu0 %v3474
    %v3476 = vpop.xlane.xlu0 %3475
    %v3477 = vsel %vm343, %v3471, 0.0
    %3478 = vadd.xlane.f32.xlu0 %v3477
    %v3479 = vpop.xlane.xlu0 %3478
    %v3480 = vmul.f32 %v3476, %v347
    %v3481 = vmul.f32 %v3479, %v347
    %v3482 = vadd.f32 %v3480, 1e-06
    %v3483 = vadd.f32 %v3481, 1e-06
    %v3484 = vrsqrt.pop %v3482
    %v3485 = vrsqrt.pop %v3483
    %v3488 = vlaneseq
    %v3489 = vshrl.u32 %v3488, 7
    %v3490 = vsub.s32 0, %v3489
    %v3491 = vrot.slane %v3484, %v3490
    %v3492 = vlaneseq
    %v3493 = vshrl.u32 %v3492, 7
    %v3494 = vsub.s32 1, %v3493
    %v3495 = vrot.slane %v3484, %v3494
    %v3496 = vlaneseq
    %v3497 = vshrl.u32 %v3496, 7
    %v3498 = vsub.s32 2, %v3497
    %v3499 = vrot.slane %v3484, %v3498
    %v3500 = vlaneseq
    %v3501 = vshrl.u32 %v3500, 7
    %v3502 = vsub.s32 3, %v3501
    %v3503 = vrot.slane %v3484, %v3502
    %v3504 = vlaneseq
    %v3505 = vshrl.u32 %v3504, 7
    %v3506 = vsub.s32 4, %v3505
    %v3507 = vrot.slane %v3484, %v3506
    %v3508 = vlaneseq
    %v3509 = vshrl.u32 %v3508, 7
    %v3510 = vsub.s32 5, %v3509
    %v3511 = vrot.slane %v3484, %v3510
    %v3512 = vlaneseq
    %v3513 = vshrl.u32 %v3512, 7
    %v3514 = vsub.s32 6, %v3513
    %v3515 = vrot.slane %v3484, %v3514
    %v3516 = vlaneseq
    %v3517 = vshrl.u32 %v3516, 7
    %v3518 = vsub.s32 7, %v3517
    %v3519 = vrot.slane %v3484, %v3518
    %v3520 = vlaneseq
    %v3521 = vshrl.u32 %v3520, 7
    %v3522 = vsub.s32 0, %v3521
    %v3523 = vrot.slane %v3485, %v3522
    %v3524 = vlaneseq
    %v3525 = vshrl.u32 %v3524, 7
    %v3526 = vsub.s32 1, %v3525
    %v3527 = vrot.slane %v3485, %v3526
    %v3538 = vmul.f32 %v3378, %v3491
    %v3539 = vmul.f32 %v3379, %v3495
    %v3540 = vmul.f32 %v3380, %v3499
    %v3541 = vmul.f32 %v3381, %v3503
    %v3542 = vmul.f32 %v3382, %v3507
    %v3543 = vmul.f32 %v3383, %v3511
    %v3544 = vmul.f32 %v3384, %v3515
    %v3545 = vmul.f32 %v3385, %v3519
    %v3546 = vmul.f32 %v3386, %v3523
    %v3547 = vmul.f32 %v3387, %v3527
    %v3549 = vlaneseq
    %v3550 = vshrl.u32 %v3549, 7
    %v3551 = vsub.s32 0, %v3550
    %v3552 = vrot.slane %v3239, %v3551
    %v3553 = vcombine.high %v3552, %v3552
    %v3555 = vunpack.c.l.s4 1966171168
    %v3556 = vunpack.c.0.s8 %v3555
    %v3557 = vlaneseq
    %v3558 = vshrl.u32 %v3557, 7
    %v3559 = vsub.s32 %v3556, %v3558
    %v3560 = vrot.slane %v3552, %v3559
    %v3562 = vunpack.c.l.s4 1966171168
    %v3563 = vunpack.c.0.s8 %v3562
    %v3564 = vlaneseq
    %v3565 = vshrl.u32 %v3564, 7
    %v3566 = vsub.s32 %v3563, %v3565
    %v3567 = vrot.slane %v3553, %v3566
    %v3568 = vcombine.high %v3560, %v3560
    %v3569 = vcombine.high %v3567, %v3567
    %v3571 = vunpack.c.l.s4 1966171168
    %v3572 = vunpack.c.0.s8 %v3571
    %v3573 = vlaneseq
    %v3574 = vshrl.u32 %v3573, 7
    %v3575 = vsub.s32 %v3572, %v3574
    %v3576 = vrot.slane %v3560, %v3575
    %v3578 = vunpack.c.l.s4 1966171168
    %v3579 = vunpack.c.0.s8 %v3578
    %v3580 = vlaneseq
    %v3581 = vshrl.u32 %v3580, 7
    %v3582 = vsub.s32 %v3579, %v3581
    %v3583 = vrot.slane %v3567, %v3582
    %v3585 = vunpack.c.l.s4 1966171168
    %v3586 = vunpack.c.0.s8 %v3585
    %v3587 = vlaneseq
    %v3588 = vshrl.u32 %v3587, 7
    %v3589 = vsub.s32 %v3586, %v3588
    %v3590 = vrot.slane %v3568, %v3589
    %v3592 = vunpack.c.l.s4 1966171168
    %v3593 = vunpack.c.0.s8 %v3592
    %v3594 = vlaneseq
    %v3595 = vshrl.u32 %v3594, 7
    %v3596 = vsub.s32 %v3593, %v3595
    %v3597 = vrot.slane %v3569, %v3596
    %v3598 = vcombine.high %v3576, %v3576
    %v3599 = vcombine.high %v3583, %v3583
    %v3600 = vcombine.high %v3590, %v3590
    %v3601 = vcombine.high %v3597, %v3597
    %v3610 = vmul.f32 %v3538, %v3576
    %v3611 = vmul.f32 %v3539, %v3590
    %v3612 = vmul.f32 %v3540, %v3598
    %v3613 = vmul.f32 %v3541, %v3600
    %v3614 = vmul.f32 %v3542, %v3583
    %v3615 = vmul.f32 %v3543, %v3597
    %v3616 = vmul.f32 %v3544, %v3599
    %v3617 = vmul.f32 %v3545, %v3601
    %v3618 = vmul.f32 %v3546, %v3576
    %v3619 = vmul.f32 %v3547, %v3590
    %v3621 = vlaneseq
    %v3622 = vshrl.u32 %v3621, 7
    %v3623 = vsub.s32 0, %v3622
    %v3624 = vrot.slane %v3241, %v3623
    %v3625 = vcombine.high %v3624, %v3624
    %v3627 = vunpack.c.l.s4 1966171168
    %v3628 = vunpack.c.0.s8 %v3627
    %v3629 = vlaneseq
    %v3630 = vshrl.u32 %v3629, 7
    %v3631 = vsub.s32 %v3628, %v3630
    %v3632 = vrot.slane %v3624, %v3631
    %v3634 = vunpack.c.l.s4 1966171168
    %v3635 = vunpack.c.0.s8 %v3634
    %v3636 = vlaneseq
    %v3637 = vshrl.u32 %v3636, 7
    %v3638 = vsub.s32 %v3635, %v3637
    %v3639 = vrot.slane %v3625, %v3638
    %v3640 = vcombine.high %v3632, %v3632
    %v3641 = vcombine.high %v3639, %v3639
    %v3643 = vunpack.c.l.s4 1966171168
    %v3644 = vunpack.c.0.s8 %v3643
    %v3645 = vlaneseq
    %v3646 = vshrl.u32 %v3645, 7
    %v3647 = vsub.s32 %v3644, %v3646
    %v3648 = vrot.slane %v3632, %v3647
    %v3650 = vunpack.c.l.s4 1966171168
    %v3651 = vunpack.c.0.s8 %v3650
    %v3652 = vlaneseq
    %v3653 = vshrl.u32 %v3652, 7
    %v3654 = vsub.s32 %v3651, %v3653
    %v3655 = vrot.slane %v3639, %v3654
    %v3657 = vunpack.c.l.s4 1966171168
    %v3658 = vunpack.c.0.s8 %v3657
    %v3659 = vlaneseq
    %v3660 = vshrl.u32 %v3659, 7
    %v3661 = vsub.s32 %v3658, %v3660
    %v3662 = vrot.slane %v3640, %v3661
    %v3664 = vunpack.c.l.s4 1966171168
    %v3665 = vunpack.c.0.s8 %v3664
    %v3666 = vlaneseq
    %v3667 = vshrl.u32 %v3666, 7
    %v3668 = vsub.s32 %v3665, %v3667
    %v3669 = vrot.slane %v3641, %v3668
    %v3670 = vcombine.high %v3648, %v3648
    %v3671 = vcombine.high %v3655, %v3655
    %v3672 = vcombine.high %v3662, %v3662
    %v3673 = vcombine.high %v3669, %v3669
    %v3682 = vadd.f32 %v3610, %v3648
    %v3683 = vadd.f32 %v3611, %v3662
    %v3684 = vadd.f32 %v3612, %v3670
    %v3685 = vadd.f32 %v3613, %v3672
    %v3686 = vadd.f32 %v3614, %v3655
    %v3687 = vadd.f32 %v3615, %v3669
    %v3688 = vadd.f32 %v3616, %v3671
    %v3689 = vadd.f32 %v3617, %v3673
    %v3690 = vadd.f32 %v3618, %v3648
    %v3691 = vadd.f32 %v3619, %v3662
    %s3692 = scalar_lea.vmem %s5, 32
    %v3693 = vld [vmem:[%s3692] sm:$0xff]
    %v3694 = vld [vmem:[%s3692 + $0x8] sm:$0xff]
    %v3695 = vld [vmem:[%s3692 + $0x10] sm:$0xff]
    %v3696 = vld [vmem:[%s3692 + $0x18] sm:$0xff]
    %s3697 = scalar_lea.vmem %s6, 1
    %v3698 = vld [vmem:[%s3697] sm:$0x1]
    %v3700 = vlaneseq
    %v3701 = vshrl.u32 %v3700, 7
    %v3702 = vsub.s32 0, %v3701
    %v3703 = vrot.slane %v3698, %v3702
    %v3715 = vcombine.low %v3682, %v3683
    %v3716 = vcombine.low %v3684, %v3685
    %v3717 = vcombine.low %v3686, %v3687
    %v3718 = vcombine.low %v3688, %v3689
    %v3720 = vunpack.c.l.s4 1966171168
    %v3721 = vunpack.c.0.s8 %v3720
    %v3722 = vlaneseq
    %v3723 = vshrl.u32 %v3722, 7
    %v3724 = vsub.s32 %v3721, %v3723
    %v3725 = vrot.slane %v3715, %v3724
    %v3727 = vunpack.c.l.s4 1966171168
    %v3728 = vunpack.c.0.s8 %v3727
    %v3729 = vlaneseq
    %v3730 = vshrl.u32 %v3729, 7
    %v3731 = vsub.s32 %v3728, %v3730
    %v3732 = vrot.slane %v3716, %v3731
    %v3734 = vunpack.c.l.s4 1966171168
    %v3735 = vunpack.c.0.s8 %v3734
    %v3736 = vlaneseq
    %v3737 = vshrl.u32 %v3736, 7
    %v3738 = vsub.s32 %v3735, %v3737
    %v3739 = vrot.slane %v3717, %v3738
    %v3741 = vunpack.c.l.s4 1966171168
    %v3742 = vunpack.c.0.s8 %v3741
    %v3743 = vlaneseq
    %v3744 = vshrl.u32 %v3743, 7
    %v3745 = vsub.s32 %v3742, %v3744
    %v3746 = vrot.slane %v3718, %v3745
    %v3747 = vcombine.low %v3725, %v3732
    %v3748 = vcombine.low %v3739, %v3746
    %v3750 = vunpack.c.l.s4 1966171168
    %v3751 = vunpack.c.0.s8 %v3750
    %v3752 = vlaneseq
    %v3753 = vshrl.u32 %v3752, 7
    %v3754 = vsub.s32 %v3751, %v3753
    %v3755 = vrot.slane %v3747, %v3754
    %v3757 = vunpack.c.l.s4 1966171168
    %v3758 = vunpack.c.0.s8 %v3757
    %v3759 = vlaneseq
    %v3760 = vshrl.u32 %v3759, 7
    %v3761 = vsub.s32 %v3758, %v3760
    %v3762 = vrot.slane %v3748, %v3761
    %v3763 = vcombine.low %v3755, %v3762
    %v3764 = vcombine.low %v3690, %v3691
    %v3766 = vunpack.c.l.s4 1966171168
    %v3767 = vunpack.c.0.s8 %v3766
    %v3768 = vlaneseq
    %v3769 = vshrl.u32 %v3768, 7
    %v3770 = vsub.s32 %v3767, %v3769
    %v3771 = vrot.slane %v3764, %v3770
    %v3773 = vunpack.c.l.s4 1966171168
    %v3774 = vunpack.c.0.s8 %v3773
    %v3775 = vlaneseq
    %v3776 = vshrl.u32 %v3775, 7
    %v3777 = vsub.s32 %v3774, %v3776
    %v3778 = vrot.slane %v3771, %v3777
    %v3779 = vsel %vm339, %v3763, 0
    %v3781 = vsel %vm339, %v3778, 0
    %3783 = vmatprep.subr.mxu0 0.0
    %3784 = vmatpush1.msra.mxu0 %v3693
    %3785 = vmatprep.subr.mxu0 0.0
    %3786 = vmatpush1.msra.mxu0 %v3694
    %3787 = vmatprep.subr.mxu0 0.0
    %3788 = vmatpush1.msra.mxu0 %v3695
    %3789 = vmatprep.subr.mxu0 0.0
    %3790 = vmatpush1.msra.mxu0 %v3696
    %3791 = vmatprep.subr.mxu0 0.0
    %3792 = vmatpush1.msra.mxu0 0.0
    %3793 = vmatprep.subr.mxu0 0.0
    %3794 = vmatpush1.msra.mxu0 0.0
    %3795 = vmatprep.subr.mxu0 0.0
    %3796 = vmatpush1.msra.mxu0 0.0
    %3797 = vmatprep.subr.mxu0 0.0
    %3798 = vmatpush1.msra.mxu0 0.0
    %3799 = vmatprep.subr.mxu0 0.0
    %3800 = vmatpush1.msra.mxu0 0.0
    %3801 = vmatprep.subr.mxu0 0.0
    %3802 = vmatpush1.msra.mxu0 0.0
    %3803 = vmatprep.subr.mxu0 0.0
    %3804 = vmatpush1.msra.mxu0 0.0
    %3805 = vmatprep.subr.mxu0 0.0
    %3806 = vmatpush1.msra.mxu0 0.0
    %3807 = vmatprep.subr.mxu0 0.0
    %3808 = vmatpush1.msra.mxu0 0.0
    %3809 = vmatprep.subr.mxu0 0.0
    %3810 = vmatpush1.msra.mxu0 0.0
    %3811 = vmatprep.subr.mxu0 0.0
    %3812 = vmatpush1.msra.mxu0 0.0
    %3813 = vmatprep.subr.mxu0 0.0
    %3814 = vmatpush1.msra.mxu0 0.0
    %3815 = vmatprep.subr.mxu0 0.0
    %3816 = vmatpush1.msra.mxu0 0.0
    %3817 = vmatprep.subr.mxu0 0.0
    %3818 = vmatpush1.msra.mxu0 0.0
    %3819 = vmatprep.subr.mxu0 0.0
    %3820 = vmatpush1.msra.mxu0 0.0
    %3821 = vmatprep.subr.mxu0 0.0
    %3822 = vmatpush1.msra.mxu0 0.0
    %3823 = vmatprep.subr.mxu0 0.0
    %3824 = vmatpush1.msra.mxu0 0.0
    %3825 = vmatprep.subr.mxu0 0.0
    %3826 = vmatpush1.msra.mxu0 0.0
    %3827 = vmatprep.subr.mxu0 0.0
    %3828 = vmatpush1.msra.mxu0 0.0
    %3829 = vmatprep.subr.mxu0 0.0
    %3830 = vmatpush1.msra.mxu0 0.0
    %3831 = vmatprep.subr.mxu0 0.0
    %3832 = vmatpush1.msra.mxu0 0.0
    %3833 = vmatprep.subr.mxu0 0.0
    %3834 = vmatpush1.msra.mxu0 0.0
    %3835 = vmatprep.subr.mxu0 0.0
    %3836 = vmatpush1.msra.mxu0 0.0
    %3837 = vmatprep.subr.mxu0 0.0
    %3838 = vmatpush1.msra.mxu0 0.0
    %3839 = vmatprep.subr.mxu0 0.0
    %3840 = vmatpush1.msra.mxu0 0.0
    %3841 = vmatprep.subr.mxu0 0.0
    %3842 = vmatpush1.msra.mxu0 0.0
    %3843 = vmatprep.subr.mxu0 0.0
    %3844 = vmatpush1.msra.mxu0 0.0
    %3845 = vmatprep.subr.mxu0 0.0
    %3846 = vmatpush1.msra.mxu0 0.0
    %3847 = vmatprep.mubr.f32.mxu0 0.0
    %3848 = vmatmul.mubr.f32.gmra.mrb[0].mxu0 %v3779
    %v3849 = vpop.f32.mrb[0].mxu0
    %v3850 = vadd.f32 %v3703, %v3849
    %v3851 = vpop.f32.mrb[0].mxu0
    %3852 = vmatprep.mubr.f32.mxu0 0.0
    %3853 = vmatmul.mubr.f32.gmra.mrb[0].mxu0 %v3781
    %v3854 = vpop.f32.mrb[0].mxu0
    %v3855 = vadd.f32 %v3703, %v3854
    %v3856 = vpop.f32.mrb[0].mxu0
    %3857 = vdwg.mxu0
    %v3860 = vcombine.high %v3850, %v3850
    %v3862 = vunpack.c.l.s4 1966171168
    %v3863 = vunpack.c.0.s8 %v3862
    %v3864 = vlaneseq
    %v3865 = vshrl.u32 %v3864, 7
    %v3866 = vsub.s32 %v3863, %v3865
    %v3867 = vrot.slane %v3850, %v3866
    %v3869 = vunpack.c.l.s4 1966171168
    %v3870 = vunpack.c.0.s8 %v3869
    %v3871 = vlaneseq
    %v3872 = vshrl.u32 %v3871, 7
    %v3873 = vsub.s32 %v3870, %v3872
    %v3874 = vrot.slane %v3860, %v3873
    %v3875 = vcombine.high %v3867, %v3867
    %v3876 = vcombine.high %v3874, %v3874
    %v3878 = vunpack.c.l.s4 1966171168
    %v3879 = vunpack.c.0.s8 %v3878
    %v3880 = vlaneseq
    %v3881 = vshrl.u32 %v3880, 7
    %v3882 = vsub.s32 %v3879, %v3881
    %v3883 = vrot.slane %v3867, %v3882
    %v3885 = vunpack.c.l.s4 1966171168
    %v3886 = vunpack.c.0.s8 %v3885
    %v3887 = vlaneseq
    %v3888 = vshrl.u32 %v3887, 7
    %v3889 = vsub.s32 %v3886, %v3888
    %v3890 = vrot.slane %v3874, %v3889
    %v3892 = vunpack.c.l.s4 1966171168
    %v3893 = vunpack.c.0.s8 %v3892
    %v3894 = vlaneseq
    %v3895 = vshrl.u32 %v3894, 7
    %v3896 = vsub.s32 %v3893, %v3895
    %v3897 = vrot.slane %v3875, %v3896
    %v3899 = vunpack.c.l.s4 1966171168
    %v3900 = vunpack.c.0.s8 %v3899
    %v3901 = vlaneseq
    %v3902 = vshrl.u32 %v3901, 7
    %v3903 = vsub.s32 %v3900, %v3902
    %v3904 = vrot.slane %v3876, %v3903
    %v3905 = vcombine.high %v3883, %v3883
    %v3906 = vcombine.high %v3890, %v3890
    %v3907 = vcombine.high %v3897, %v3897
    %v3908 = vcombine.high %v3904, %v3904
    %v3910 = vunpack.c.l.s4 1966171168
    %v3911 = vunpack.c.0.s8 %v3910
    %v3912 = vlaneseq
    %v3913 = vshrl.u32 %v3912, 7
    %v3914 = vsub.s32 %v3911, %v3913
    %v3915 = vrot.slane %v3855, %v3914
    %v3916 = vcombine.high %v3915, %v3915
    %v3918 = vunpack.c.l.s4 1966171168
    %v3919 = vunpack.c.0.s8 %v3918
    %v3920 = vlaneseq
    %v3921 = vshrl.u32 %v3920, 7
    %v3922 = vsub.s32 %v3919, %v3921
    %v3923 = vrot.slane %v3915, %v3922
    %v3925 = vunpack.c.l.s4 1966171168
    %v3926 = vunpack.c.0.s8 %v3925
    %v3927 = vlaneseq
    %v3928 = vshrl.u32 %v3927, 7
    %v3929 = vsub.s32 %v3926, %v3928
    %v3930 = vrot.slane %v3916, %v3929
    %s3931 = scalar_lea.vmem %s7, 32
    %v3932 = vld [vmem:[%s3931] sm:$0xff]
    %v3933 = vld [vmem:[%s3931 + $0x8] sm:$0xff]
    %v3934 = vld [vmem:[%s3931 + $0x10] sm:$0xff]
    %v3935 = vld [vmem:[%s3931 + $0x18] sm:$0xff]
    %v3936 = vcombine.low %v3883, %v3897
    %v3937 = vcombine.low %v3905, %v3907
    %v3939 = vunpack.c.l.s4 1966171168
    %v3940 = vunpack.c.0.s8 %v3939
    %v3941 = vlaneseq
    %v3942 = vshrl.u32 %v3941, 7
    %v3943 = vsub.s32 %v3940, %v3942
    %v3944 = vrot.slane %v3936, %v3943
    %v3946 = vunpack.c.l.s4 1966171168
    %v3947 = vunpack.c.0.s8 %v3946
    %v3948 = vlaneseq
    %v3949 = vshrl.u32 %v3948, 7
    %v3950 = vsub.s32 %v3947, %v3949
    %v3951 = vrot.slane %v3937, %v3950
    %v3953 = vunpack.c.l.s4 1966171168
    %v3954 = vunpack.c.0.s8 %v3953
    %v3955 = vlaneseq
    %v3956 = vshrl.u32 %v3955, 7
    %v3957 = vsub.s32 %v3954, %v3956
    %v3958 = vrot.slane %v3890, %v3957
    %v3959 = vcombine.low %v3944, %v3951
    %v3961 = vunpack.c.l.s4 1966171168
    %v3962 = vunpack.c.0.s8 %v3961
    %v3963 = vlaneseq
    %v3964 = vshrl.u32 %v3963, 7
    %v3965 = vsub.s32 %v3962, %v3964
    %v3966 = vrot.slane %v3959, %v3965
    %v3968 = vunpack.c.l.s4 1966171168
    %v3969 = vunpack.c.0.s8 %v3968
    %v3970 = vlaneseq
    %v3971 = vshrl.u32 %v3970, 7
    %v3972 = vsub.s32 %v3969, %v3971
    %v3973 = vrot.slane %v3958, %v3972
    %v3974 = vcombine.low %v3966, %v3973
    %3975 = vrot.lane.b32.xlu0 %v3974, 96
    %v3976 = vpop.permute.xlu0 %3975
    %v3977 = vsel %vm998, %v3974, 0
    %v3979 = vsel %vm998, %v3976, 0
    %3981 = vmatprep.subr.mxu0 0.0
    %3982 = vmatpush1.xpose.msra.mxu0 %v3979
    %3983 = vmatprep.subr.mxu0 0.0
    %3984 = vmatpush1.xpose.msra.mxu0 0.0
    %3985 = vmatprep.subr.mxu0 0.0
    %3986 = vmatpush1.xpose.msra.mxu0 0.0
    %3987 = vmatprep.subr.mxu0 0.0
    %3988 = vmatpush1.xpose.msra.mxu0 0.0
    %3989 = vmatprep.subr.mxu0 0.0
    %3990 = vmatpush1.xpose.msra.mxu0 0.0
    %3991 = vmatprep.subr.mxu0 0.0
    %3992 = vmatpush1.xpose.msra.mxu0 0.0
    %3993 = vmatprep.subr.mxu0 0.0
    %3994 = vmatpush1.xpose.msra.mxu0 0.0
    %3995 = vmatprep.subr.mxu0 0.0
    %3996 = vmatpush1.xpose.msra.mxu0 0.0
    %3997 = vmatprep.subr.mxu0 0.0
    %3998 = vmatpush1.xpose.msra.mxu0 0.0
    %3999 = vmatprep.subr.mxu0 0.0
    %4000 = vmatpush1.xpose.msra.mxu0 0.0
    %4001 = vmatprep.subr.mxu0 0.0
    %4002 = vmatpush1.xpose.msra.mxu0 0.0
    %4003 = vmatprep.subr.mxu0 0.0
    %4004 = vmatpush1.xpose.msra.mxu0 0.0
    %4005 = vmatprep.subr.mxu0 0.0
    %4006 = vmatpush1.xpose.msra.mxu0 0.0
    %4007 = vmatprep.subr.mxu0 0.0
    %4008 = vmatpush1.xpose.msra.mxu0 0.0
    %4009 = vmatprep.subr.mxu0 0.0
    %4010 = vmatpush1.xpose.msra.mxu0 0.0
    %4011 = vmatprep.subr.mxu0 0.0
    %4012 = vmatpush1.xpose.msra.mxu0 0.0
    %4013 = vmatprep.subr.mxu0 0.0
    %4014 = vmatpush1.xpose.msra.mxu0 0.0
    %4015 = vmatprep.subr.mxu0 0.0
    %4016 = vmatpush1.xpose.msra.mxu0 0.0
    %4017 = vmatprep.subr.mxu0 0.0
    %4018 = vmatpush1.xpose.msra.mxu0 0.0
    %4019 = vmatprep.subr.mxu0 0.0
    %4020 = vmatpush1.xpose.msra.mxu0 0.0
    %4021 = vmatprep.subr.mxu0 0.0
    %4022 = vmatpush1.xpose.msra.mxu0 0.0
    %4023 = vmatprep.subr.mxu0 0.0
    %4024 = vmatpush1.xpose.msra.mxu0 0.0
    %4025 = vmatprep.subr.mxu0 0.0
    %4026 = vmatpush1.xpose.msra.mxu0 0.0
    %4027 = vmatprep.subr.mxu0 0.0
    %4028 = vmatpush1.xpose.msra.mxu0 0.0
    %4029 = vmatprep.subr.mxu0 0.0
    %4030 = vmatpush1.xpose.msra.mxu0 0.0
    %4031 = vmatprep.subr.mxu0 0.0
    %4032 = vmatpush1.xpose.msra.mxu0 0.0
    %4033 = vmatprep.subr.mxu0 0.0
    %4034 = vmatpush1.xpose.msra.mxu0 0.0
    %4035 = vmatprep.subr.mxu0 0.0
    %4036 = vmatpush1.xpose.msra.mxu0 0.0
    %4037 = vmatprep.subr.mxu0 0.0
    %4038 = vmatpush1.xpose.msra.mxu0 0.0
    %4039 = vmatprep.subr.mxu0 0.0
    %4040 = vmatpush1.xpose.msra.mxu0 0.0
    %4041 = vmatprep.subr.mxu0 0.0
    %4042 = vmatpush1.xpose.msra.mxu0 0.0
    %4043 = vmatprep.subr.mxu0 0.0
    %4044 = vmatpush1.xpose.msra.mxu0 0.0
    %4045 = vmatprep.mubr.f32.mxu0 0.0
    %4046 = vmatmul.mubr.f32.gmra.mrb[0].mxu0 %v3977
    %v4047 = vpop.f32.mrb[0].mxu0
    %v4048 = vadd.f32 0.0, %v4047
    %v4049 = vpop.f32.mrb[0].mxu0
    %4050 = vdwg.mxu0
    %v4051 = vcombine.low %v3904, %v3906
    %v4052 = vcombine.low %v3908, %v3923
    %v4054 = vunpack.c.l.s4 1966171168
    %v4055 = vunpack.c.0.s8 %v4054
    %v4056 = vlaneseq
    %v4057 = vshrl.u32 %v4056, 7
    %v4058 = vsub.s32 %v4055, %v4057
    %v4059 = vrot.slane %v4051, %v4058
    %v4061 = vunpack.c.l.s4 1966171168
    %v4062 = vunpack.c.0.s8 %v4061
    %v4063 = vlaneseq
    %v4064 = vshrl.u32 %v4063, 7
    %v4065 = vsub.s32 %v4062, %v4064
    %v4066 = vrot.slane %v4052, %v4065
    %v4068 = vunpack.c.l.s4 1966171168
    %v4069 = vunpack.c.0.s8 %v4068
    %v4070 = vlaneseq
    %v4071 = vshrl.u32 %v4070, 7
    %v4072 = vsub.s32 %v4069, %v4071
    %v4073 = vrot.slane %v3930, %v4072
    %v4074 = vcombine.low %v4059, %v4066
    %v4076 = vunpack.c.l.s4 1966171168
    %v4077 = vunpack.c.0.s8 %v4076
    %v4078 = vlaneseq
    %v4079 = vshrl.u32 %v4078, 7
    %v4080 = vsub.s32 %v4077, %v4079
    %v4081 = vrot.slane %v4074, %v4080
    %v4083 = vunpack.c.l.s4 1966171168
    %v4084 = vunpack.c.0.s8 %v4083
    %v4085 = vlaneseq
    %v4086 = vshrl.u32 %v4085, 7
    %v4087 = vsub.s32 %v4084, %v4086
    %v4088 = vrot.slane %v4073, %v4087
    %v4089 = vcombine.low %v4081, %v4088
    %4090 = vrot.lane.b32.xlu0 %v4089, 96
    %v4091 = vpop.permute.xlu0 %4090
    %v4092 = vsel %vm998, %v4089, 0
    %v4094 = vsel %vm998, %v4091, 0
    %4096 = vmatprep.subr.mxu0 0.0
    %4097 = vmatpush1.xpose.msra.mxu0 %v4094
    %4098 = vmatprep.subr.mxu0 0.0
    %4099 = vmatpush1.xpose.msra.mxu0 0.0
    %4100 = vmatprep.subr.mxu0 0.0
    %4101 = vmatpush1.xpose.msra.mxu0 0.0
    %4102 = vmatprep.subr.mxu0 0.0
    %4103 = vmatpush1.xpose.msra.mxu0 0.0
    %4104 = vmatprep.subr.mxu0 0.0
    %4105 = vmatpush1.xpose.msra.mxu0 0.0
    %4106 = vmatprep.subr.mxu0 0.0
    %4107 = vmatpush1.xpose.msra.mxu0 0.0
    %4108 = vmatprep.subr.mxu0 0.0
    %4109 = vmatpush1.xpose.msra.mxu0 0.0
    %4110 = vmatprep.subr.mxu0 0.0
    %4111 = vmatpush1.xpose.msra.mxu0 0.0
    %4112 = vmatprep.subr.mxu0 0.0
    %4113 = vmatpush1.xpose.msra.mxu0 0.0
    %4114 = vmatprep.subr.mxu0 0.0
    %4115 = vmatpush1.xpose.msra.mxu0 0.0
    %4116 = vmatprep.subr.mxu0 0.0
    %4117 = vmatpush1.xpose.msra.mxu0 0.0
    %4118 = vmatprep.subr.mxu0 0.0
    %4119 = vmatpush1.xpose.msra.mxu0 0.0
    %4120 = vmatprep.subr.mxu0 0.0
    %4121 = vmatpush1.xpose.msra.mxu0 0.0
    %4122 = vmatprep.subr.mxu0 0.0
    %4123 = vmatpush1.xpose.msra.mxu0 0.0
    %4124 = vmatprep.subr.mxu0 0.0
    %4125 = vmatpush1.xpose.msra.mxu0 0.0
    %4126 = vmatprep.subr.mxu0 0.0
    %4127 = vmatpush1.xpose.msra.mxu0 0.0
    %4128 = vmatprep.subr.mxu0 0.0
    %4129 = vmatpush1.xpose.msra.mxu0 0.0
    %4130 = vmatprep.subr.mxu0 0.0
    %4131 = vmatpush1.xpose.msra.mxu0 0.0
    %4132 = vmatprep.subr.mxu0 0.0
    %4133 = vmatpush1.xpose.msra.mxu0 0.0
    %4134 = vmatprep.subr.mxu0 0.0
    %4135 = vmatpush1.xpose.msra.mxu0 0.0
    %4136 = vmatprep.subr.mxu0 0.0
    %4137 = vmatpush1.xpose.msra.mxu0 0.0
    %4138 = vmatprep.subr.mxu0 0.0
    %4139 = vmatpush1.xpose.msra.mxu0 0.0
    %4140 = vmatprep.subr.mxu0 0.0
    %4141 = vmatpush1.xpose.msra.mxu0 0.0
    %4142 = vmatprep.subr.mxu0 0.0
    %4143 = vmatpush1.xpose.msra.mxu0 0.0
    %4144 = vmatprep.subr.mxu0 0.0
    %4145 = vmatpush1.xpose.msra.mxu0 0.0
    %4146 = vmatprep.subr.mxu0 0.0
    %4147 = vmatpush1.xpose.msra.mxu0 0.0
    %4148 = vmatprep.subr.mxu0 0.0
    %4149 = vmatpush1.xpose.msra.mxu0 0.0
    %4150 = vmatprep.subr.mxu0 0.0
    %4151 = vmatpush1.xpose.msra.mxu0 0.0
    %4152 = vmatprep.subr.mxu0 0.0
    %4153 = vmatpush1.xpose.msra.mxu0 0.0
    %4154 = vmatprep.subr.mxu0 0.0
    %4155 = vmatpush1.xpose.msra.mxu0 0.0
    %4156 = vmatprep.subr.mxu0 0.0
    %4157 = vmatpush1.xpose.msra.mxu0 0.0
    %4158 = vmatprep.subr.mxu0 0.0
    %4159 = vmatpush1.xpose.msra.mxu0 0.0
    %4160 = vmatprep.mubr.f32.mxu0 0.0
    %4161 = vmatmul.mubr.f32.gmra.mrb[0].mxu0 %v4092
    %v4162 = vpop.f32.mrb[0].mxu0
    %v4163 = vadd.f32 0.0, %v4162
    %v4164 = vpop.f32.mrb[0].mxu0
    %4165 = vdwg.mxu0
    %v4166 = vsel %vm1188, %v4048, -inf
    %4167 = vmax.xlane.f32.xlu0 %v4166
    %v4168 = vpop.xlane.xlu0 %4167
    %v4169 = vsel %vm1188, %v4163, -inf
    %4170 = vmax.xlane.f32.xlu0 %v4169
    %v4171 = vpop.xlane.xlu0 %4170
    %v4172 = vsub.f32 %v4048, %v4168
    %v4173 = vsub.f32 %v4163, %v4171
    %v4174 = vmul.f32 %v4172, 1.442695
    %v4175 = vpow.pop %v4174
    %v4176 = vmul.f32 %v4173, 1.442695
    %v4177 = vpow.pop %v4176
    %v4178 = vsel %vm1188, %v4175, 0.0
    %4179 = vadd.xlane.f32.xlu0 %v4178
    %v4180 = vpop.xlane.xlu0 %4179
    %v4181 = vsel %vm1188, %v4177, 0.0
    %4182 = vadd.xlane.f32.xlu0 %v4181
    %v4183 = vpop.xlane.xlu0 %4182
    %v4184 = vrcp.pop %v4180
    %v4185 = vrcp.pop %v4183
    %v4186 = vmul.f32 %v4175, %v4184
    %v4187 = vmul.f32 %v4177, %v4185
    %4188 = vrot.lane.b32.xlu0 %v3974, 64
    %v4189 = vpop.permute.xlu0 %4188
    %v4191 = vsel %vm1213, %v4186, 0
    %v4193 = vsel %vm1217, %v4189, 0
    %4195 = vmatprep.subr.mxu0 0.0
    %4196 = vmatpush1.msra.mxu0 %v4193
    %4197 = vmatprep.subr.mxu0 0.0
    %4198 = vmatpush1.msra.mxu0 0.0
    %4199 = vmatprep.subr.mxu0 0.0
    %4200 = vmatpush1.msra.mxu0 0.0
    %4201 = vmatprep.subr.mxu0 0.0
    %4202 = vmatpush1.msra.mxu0 0.0
    %4203 = vmatprep.subr.mxu0 0.0
    %4204 = vmatpush1.msra.mxu0 0.0
    %4205 = vmatprep.subr.mxu0 0.0
    %4206 = vmatpush1.msra.mxu0 0.0
    %4207 = vmatprep.subr.mxu0 0.0
    %4208 = vmatpush1.msra.mxu0 0.0
    %4209 = vmatprep.subr.mxu0 0.0
    %4210 = vmatpush1.msra.mxu0 0.0
    %4211 = vmatprep.subr.mxu0 0.0
    %4212 = vmatpush1.msra.mxu0 0.0
    %4213 = vmatprep.subr.mxu0 0.0
    %4214 = vmatpush1.msra.mxu0 0.0
    %4215 = vmatprep.subr.mxu0 0.0
    %4216 = vmatpush1.msra.mxu0 0.0
    %4217 = vmatprep.subr.mxu0 0.0
    %4218 = vmatpush1.msra.mxu0 0.0
    %4219 = vmatprep.subr.mxu0 0.0
    %4220 = vmatpush1.msra.mxu0 0.0
    %4221 = vmatprep.subr.mxu0 0.0
    %4222 = vmatpush1.msra.mxu0 0.0
    %4223 = vmatprep.subr.mxu0 0.0
    %4224 = vmatpush1.msra.mxu0 0.0
    %4225 = vmatprep.subr.mxu0 0.0
    %4226 = vmatpush1.msra.mxu0 0.0
    %4227 = vmatprep.subr.mxu0 0.0
    %4228 = vmatpush1.msra.mxu0 0.0
    %4229 = vmatprep.subr.mxu0 0.0
    %4230 = vmatpush1.msra.mxu0 0.0
    %4231 = vmatprep.subr.mxu0 0.0
    %4232 = vmatpush1.msra.mxu0 0.0
    %4233 = vmatprep.subr.mxu0 0.0
    %4234 = vmatpush1.msra.mxu0 0.0
    %4235 = vmatprep.subr.mxu0 0.0
    %4236 = vmatpush1.msra.mxu0 0.0
    %4237 = vmatprep.subr.mxu0 0.0
    %4238 = vmatpush1.msra.mxu0 0.0
    %4239 = vmatprep.subr.mxu0 0.0
    %4240 = vmatpush1.msra.mxu0 0.0
    %4241 = vmatprep.subr.mxu0 0.0
    %4242 = vmatpush1.msra.mxu0 0.0
    %4243 = vmatprep.subr.mxu0 0.0
    %4244 = vmatpush1.msra.mxu0 0.0
    %4245 = vmatprep.subr.mxu0 0.0
    %4246 = vmatpush1.msra.mxu0 0.0
    %4247 = vmatprep.subr.mxu0 0.0
    %4248 = vmatpush1.msra.mxu0 0.0
    %4249 = vmatprep.subr.mxu0 0.0
    %4250 = vmatpush1.msra.mxu0 0.0
    %4251 = vmatprep.subr.mxu0 0.0
    %4252 = vmatpush1.msra.mxu0 0.0
    %4253 = vmatprep.subr.mxu0 0.0
    %4254 = vmatpush1.msra.mxu0 0.0
    %4255 = vmatprep.subr.mxu0 0.0
    %4256 = vmatpush1.msra.mxu0 0.0
    %4257 = vmatprep.subr.mxu0 0.0
    %4258 = vmatpush1.msra.mxu0 0.0
    %4259 = vmatprep.mubr.f32.mxu0 0.0
    %4260 = vmatmul.mubr.f32.gmra.mrb[0].mxu0 %v4191
    %v4261 = vpop.f32.mrb[0].mxu0
    %v4262 = vadd.f32 0.0, %v4261
    %v4263 = vpop.f32.mrb[0].mxu0
    %4264 = vdwg.mxu0
    %4265 = vrot.lane.b32.xlu0 %v4089, 64
    %v4266 = vpop.permute.xlu0 %4265
    %v4268 = vsel %vm1213, %v4187, 0
    %v4270 = vsel %vm1217, %v4266, 0
    %4272 = vmatprep.subr.mxu0 0.0
    %4273 = vmatpush1.msra.mxu0 %v4270
    %4274 = vmatprep.subr.mxu0 0.0
    %4275 = vmatpush1.msra.mxu0 0.0
    %4276 = vmatprep.subr.mxu0 0.0
    %4277 = vmatpush1.msra.mxu0 0.0
    %4278 = vmatprep.subr.mxu0 0.0
    %4279 = vmatpush1.msra.mxu0 0.0
    %4280 = vmatprep.subr.mxu0 0.0
    %4281 = vmatpush1.msra.mxu0 0.0
    %4282 = vmatprep.subr.mxu0 0.0
    %4283 = vmatpush1.msra.mxu0 0.0
    %4284 = vmatprep.subr.mxu0 0.0
    %4285 = vmatpush1.msra.mxu0 0.0
    %4286 = vmatprep.subr.mxu0 0.0
    %4287 = vmatpush1.msra.mxu0 0.0
    %4288 = vmatprep.subr.mxu0 0.0
    %4289 = vmatpush1.msra.mxu0 0.0
    %4290 = vmatprep.subr.mxu0 0.0
    %4291 = vmatpush1.msra.mxu0 0.0
    %4292 = vmatprep.subr.mxu0 0.0
    %4293 = vmatpush1.msra.mxu0 0.0
    %4294 = vmatprep.subr.mxu0 0.0
    %4295 = vmatpush1.msra.mxu0 0.0
    %4296 = vmatprep.subr.mxu0 0.0
    %4297 = vmatpush1.msra.mxu0 0.0
    %4298 = vmatprep.subr.mxu0 0.0
    %4299 = vmatpush1.msra.mxu0 0.0
    %4300 = vmatprep.subr.mxu0 0.0
    %4301 = vmatpush1.msra.mxu0 0.0
    %4302 = vmatprep.subr.mxu0 0.0
    %4303 = vmatpush1.msra.mxu0 0.0
    %4304 = vmatprep.subr.mxu0 0.0
    %4305 = vmatpush1.msra.mxu0 0.0
    %4306 = vmatprep.subr.mxu0 0.0
    %4307 = vmatpush1.msra.mxu0 0.0
    %4308 = vmatprep.subr.mxu0 0.0
    %4309 = vmatpush1.msra.mxu0 0.0
    %4310 = vmatprep.subr.mxu0 0.0
    %4311 = vmatpush1.msra.mxu0 0.0
    %4312 = vmatprep.subr.mxu0 0.0
    %4313 = vmatpush1.msra.mxu0 0.0
    %4314 = vmatprep.subr.mxu0 0.0
    %4315 = vmatpush1.msra.mxu0 0.0
    %4316 = vmatprep.subr.mxu0 0.0
    %4317 = vmatpush1.msra.mxu0 0.0
    %4318 = vmatprep.subr.mxu0 0.0
    %4319 = vmatpush1.msra.mxu0 0.0
    %4320 = vmatprep.subr.mxu0 0.0
    %4321 = vmatpush1.msra.mxu0 0.0
    %4322 = vmatprep.subr.mxu0 0.0
    %4323 = vmatpush1.msra.mxu0 0.0
    %4324 = vmatprep.subr.mxu0 0.0
    %4325 = vmatpush1.msra.mxu0 0.0
    %4326 = vmatprep.subr.mxu0 0.0
    %4327 = vmatpush1.msra.mxu0 0.0
    %4328 = vmatprep.subr.mxu0 0.0
    %4329 = vmatpush1.msra.mxu0 0.0
    %4330 = vmatprep.subr.mxu0 0.0
    %4331 = vmatpush1.msra.mxu0 0.0
    %4332 = vmatprep.subr.mxu0 0.0
    %4333 = vmatpush1.msra.mxu0 0.0
    %4334 = vmatprep.subr.mxu0 0.0
    %4335 = vmatpush1.msra.mxu0 0.0
    %4336 = vmatprep.mubr.f32.mxu0 0.0
    %4337 = vmatmul.mubr.f32.gmra.mrb[0].mxu0 %v4268
    %v4338 = vpop.f32.mrb[0].mxu0
    %v4339 = vadd.f32 0.0, %v4338
    %v4340 = vpop.f32.mrb[0].mxu0
    %4341 = vdwg.mxu0
    %v4344 = vcombine.high %v4262, %v4262
    %v4346 = vunpack.c.l.s4 1966171168
    %v4347 = vunpack.c.0.s8 %v4346
    %v4348 = vlaneseq
    %v4349 = vshrl.u32 %v4348, 7
    %v4350 = vsub.s32 %v4347, %v4349
    %v4351 = vrot.slane %v4262, %v4350
    %v4353 = vunpack.c.l.s4 1966171168
    %v4354 = vunpack.c.0.s8 %v4353
    %v4355 = vlaneseq
    %v4356 = vshrl.u32 %v4355, 7
    %v4357 = vsub.s32 %v4354, %v4356
    %v4358 = vrot.slane %v4344, %v4357
    %v4359 = vcombine.high %v4351, %v4351
    %v4361 = vunpack.c.l.s4 1966171168
    %v4362 = vunpack.c.0.s8 %v4361
    %v4363 = vlaneseq
    %v4364 = vshrl.u32 %v4363, 7
    %v4365 = vsub.s32 %v4362, %v4364
    %v4366 = vrot.slane %v4351, %v4365
    %v4368 = vunpack.c.l.s4 1966171168
    %v4369 = vunpack.c.0.s8 %v4368
    %v4370 = vlaneseq
    %v4371 = vshrl.u32 %v4370, 7
    %v4372 = vsub.s32 %v4369, %v4371
    %v4373 = vrot.slane %v4358, %v4372
    %v4375 = vunpack.c.l.s4 1966171168
    %v4376 = vunpack.c.0.s8 %v4375
    %v4377 = vlaneseq
    %v4378 = vshrl.u32 %v4377, 7
    %v4379 = vsub.s32 %v4376, %v4378
    %v4380 = vrot.slane %v4359, %v4379
    %v4381 = vcombine.high %v4366, %v4366
    %v4382 = vcombine.high %v4380, %v4380
    %v4383 = vcombine.high %v4339, %v4339
    %v4385 = vunpack.c.l.s4 1966171168
    %v4386 = vunpack.c.0.s8 %v4385
    %v4387 = vlaneseq
    %v4388 = vshrl.u32 %v4387, 7
    %v4389 = vsub.s32 %v4386, %v4388
    %v4390 = vrot.slane %v4339, %v4389
    %v4392 = vunpack.c.l.s4 1966171168
    %v4393 = vunpack.c.0.s8 %v4392
    %v4394 = vlaneseq
    %v4395 = vshrl.u32 %v4394, 7
    %v4396 = vsub.s32 %v4393, %v4395
    %v4397 = vrot.slane %v4383, %v4396
    %v4398 = vcombine.high %v4390, %v4390
    %v4400 = vunpack.c.l.s4 1966171168
    %v4401 = vunpack.c.0.s8 %v4400
    %v4402 = vlaneseq
    %v4403 = vshrl.u32 %v4402, 7
    %v4404 = vsub.s32 %v4401, %v4403
    %v4405 = vrot.slane %v4390, %v4404
    %v4407 = vunpack.c.l.s4 1966171168
    %v4408 = vunpack.c.0.s8 %v4407
    %v4409 = vlaneseq
    %v4410 = vshrl.u32 %v4409, 7
    %v4411 = vsub.s32 %v4408, %v4410
    %v4412 = vrot.slane %v4397, %v4411
    %v4414 = vunpack.c.l.s4 1966171168
    %v4415 = vunpack.c.0.s8 %v4414
    %v4416 = vlaneseq
    %v4417 = vshrl.u32 %v4416, 7
    %v4418 = vsub.s32 %v4415, %v4417
    %v4419 = vrot.slane %v4398, %v4418
    %v4420 = vcombine.high %v4405, %v4405
    %v4421 = vcombine.high %v4419, %v4419
    %4422 = vrot.lane.b32.xlu0 %v3974, 112
    %v4423 = vpop.permute.xlu0 %4422
    %4424 = vrot.lane.b32.xlu0 %v3974, 80
    %v4425 = vpop.permute.xlu0 %4424
    %v4426 = vsel %vm998, %v4423, 0
    %v4428 = vsel %vm998, %v4425, 0
    %4430 = vmatprep.subr.mxu0 0.0
    %4431 = vmatpush1.xpose.msra.mxu0 %v4428
    %4432 = vmatprep.subr.mxu0 0.0
    %4433 = vmatpush1.xpose.msra.mxu0 0.0
    %4434 = vmatprep.subr.mxu0 0.0
    %4435 = vmatpush1.xpose.msra.mxu0 0.0
    %4436 = vmatprep.subr.mxu0 0.0
    %4437 = vmatpush1.xpose.msra.mxu0 0.0
    %4438 = vmatprep.subr.mxu0 0.0
    %4439 = vmatpush1.xpose.msra.mxu0 0.0
    %4440 = vmatprep.subr.mxu0 0.0
    %4441 = vmatpush1.xpose.msra.mxu0 0.0
    %4442 = vmatprep.subr.mxu0 0.0
    %4443 = vmatpush1.xpose.msra.mxu0 0.0
    %4444 = vmatprep.subr.mxu0 0.0
    %4445 = vmatpush1.xpose.msra.mxu0 0.0
    %4446 = vmatprep.subr.mxu0 0.0
    %4447 = vmatpush1.xpose.msra.mxu0 0.0
    %4448 = vmatprep.subr.mxu0 0.0
    %4449 = vmatpush1.xpose.msra.mxu0 0.0
    %4450 = vmatprep.subr.mxu0 0.0
    %4451 = vmatpush1.xpose.msra.mxu0 0.0
    %4452 = vmatprep.subr.mxu0 0.0
    %4453 = vmatpush1.xpose.msra.mxu0 0.0
    %4454 = vmatprep.subr.mxu0 0.0
    %4455 = vmatpush1.xpose.msra.mxu0 0.0
    %4456 = vmatprep.subr.mxu0 0.0
    %4457 = vmatpush1.xpose.msra.mxu0 0.0
    %4458 = vmatprep.subr.mxu0 0.0
    %4459 = vmatpush1.xpose.msra.mxu0 0.0
    %4460 = vmatprep.subr.mxu0 0.0
    %4461 = vmatpush1.xpose.msra.mxu0 0.0
    %4462 = vmatprep.subr.mxu0 0.0
    %4463 = vmatpush1.xpose.msra.mxu0 0.0
    %4464 = vmatprep.subr.mxu0 0.0
    %4465 = vmatpush1.xpose.msra.mxu0 0.0
    %4466 = vmatprep.subr.mxu0 0.0
    %4467 = vmatpush1.xpose.msra.mxu0 0.0
    %4468 = vmatprep.subr.mxu0 0.0
    %4469 = vmatpush1.xpose.msra.mxu0 0.0
    %4470 = vmatprep.subr.mxu0 0.0
    %4471 = vmatpush1.xpose.msra.mxu0 0.0
    %4472 = vmatprep.subr.mxu0 0.0
    %4473 = vmatpush1.xpose.msra.mxu0 0.0
    %4474 = vmatprep.subr.mxu0 0.0
    %4475 = vmatpush1.xpose.msra.mxu0 0.0
    %4476 = vmatprep.subr.mxu0 0.0
    %4477 = vmatpush1.xpose.msra.mxu0 0.0
    %4478 = vmatprep.subr.mxu0 0.0
    %4479 = vmatpush1.xpose.msra.mxu0 0.0
    %4480 = vmatprep.subr.mxu0 0.0
    %4481 = vmatpush1.xpose.msra.mxu0 0.0
    %4482 = vmatprep.subr.mxu0 0.0
    %4483 = vmatpush1.xpose.msra.mxu0 0.0
    %4484 = vmatprep.subr.mxu0 0.0
    %4485 = vmatpush1.xpose.msra.mxu0 0.0
    %4486 = vmatprep.subr.mxu0 0.0
    %4487 = vmatpush1.xpose.msra.mxu0 0.0
    %4488 = vmatprep.subr.mxu0 0.0
    %4489 = vmatpush1.xpose.msra.mxu0 0.0
    %4490 = vmatprep.subr.mxu0 0.0
    %4491 = vmatpush1.xpose.msra.mxu0 0.0
    %4492 = vmatprep.subr.mxu0 0.0
    %4493 = vmatpush1.xpose.msra.mxu0 0.0
    %4494 = vmatprep.mubr.f32.mxu0 0.0
    %4495 = vmatmul.mubr.f32.gmra.mrb[0].mxu0 %v4426
    %v4496 = vpop.f32.mrb[0].mxu0
    %v4497 = vadd.f32 0.0, %v4496
    %v4498 = vpop.f32.mrb[0].mxu0
    %4499 = vdwg.mxu0
    %4500 = vrot.lane.b32.xlu0 %v4089, 112
    %v4501 = vpop.permute.xlu0 %4500
    %4502 = vrot.lane.b32.xlu0 %v4089, 80
    %v4503 = vpop.permute.xlu0 %4502
    %v4504 = vsel %vm998, %v4501, 0
    %v4506 = vsel %vm998, %v4503, 0
    %4508 = vmatprep.subr.mxu0 0.0
    %4509 = vmatpush1.xpose.msra.mxu0 %v4506
    %4510 = vmatprep.subr.mxu0 0.0
    %4511 = vmatpush1.xpose.msra.mxu0 0.0
    %4512 = vmatprep.subr.mxu0 0.0
    %4513 = vmatpush1.xpose.msra.mxu0 0.0
    %4514 = vmatprep.subr.mxu0 0.0
    %4515 = vmatpush1.xpose.msra.mxu0 0.0
    %4516 = vmatprep.subr.mxu0 0.0
    %4517 = vmatpush1.xpose.msra.mxu0 0.0
    %4518 = vmatprep.subr.mxu0 0.0
    %4519 = vmatpush1.xpose.msra.mxu0 0.0
    %4520 = vmatprep.subr.mxu0 0.0
    %4521 = vmatpush1.xpose.msra.mxu0 0.0
    %4522 = vmatprep.subr.mxu0 0.0
    %4523 = vmatpush1.xpose.msra.mxu0 0.0
    %4524 = vmatprep.subr.mxu0 0.0
    %4525 = vmatpush1.xpose.msra.mxu0 0.0
    %4526 = vmatprep.subr.mxu0 0.0
    %4527 = vmatpush1.xpose.msra.mxu0 0.0
    %4528 = vmatprep.subr.mxu0 0.0
    %4529 = vmatpush1.xpose.msra.mxu0 0.0
    %4530 = vmatprep.subr.mxu0 0.0
    %4531 = vmatpush1.xpose.msra.mxu0 0.0
    %4532 = vmatprep.subr.mxu0 0.0
    %4533 = vmatpush1.xpose.msra.mxu0 0.0
    %4534 = vmatprep.subr.mxu0 0.0
    %4535 = vmatpush1.xpose.msra.mxu0 0.0
    %4536 = vmatprep.subr.mxu0 0.0
    %4537 = vmatpush1.xpose.msra.mxu0 0.0
    %4538 = vmatprep.subr.mxu0 0.0
    %4539 = vmatpush1.xpose.msra.mxu0 0.0
    %4540 = vmatprep.subr.mxu0 0.0
    %4541 = vmatpush1.xpose.msra.mxu0 0.0
    %4542 = vmatprep.subr.mxu0 0.0
    %4543 = vmatpush1.xpose.msra.mxu0 0.0
    %4544 = vmatprep.subr.mxu0 0.0
    %4545 = vmatpush1.xpose.msra.mxu0 0.0
    %4546 = vmatprep.subr.mxu0 0.0
    %4547 = vmatpush1.xpose.msra.mxu0 0.0
    %4548 = vmatprep.subr.mxu0 0.0
    %4549 = vmatpush1.xpose.msra.mxu0 0.0
    %4550 = vmatprep.subr.mxu0 0.0
    %4551 = vmatpush1.xpose.msra.mxu0 0.0
    %4552 = vmatprep.subr.mxu0 0.0
    %4553 = vmatpush1.xpose.msra.mxu0 0.0
    %4554 = vmatprep.subr.mxu0 0.0
    %4555 = vmatpush1.xpose.msra.mxu0 0.0
    %4556 = vmatprep.subr.mxu0 0.0
    %4557 = vmatpush1.xpose.msra.mxu0 0.0
    %4558 = vmatprep.subr.mxu0 0.0
    %4559 = vmatpush1.xpose.msra.mxu0 0.0
    %4560 = vmatprep.subr.mxu0 0.0
    %4561 = vmatpush1.xpose.msra.mxu0 0.0
    %4562 = vmatprep.subr.mxu0 0.0
    %4563 = vmatpush1.xpose.msra.mxu0 0.0
    %4564 = vmatprep.subr.mxu0 0.0
    %4565 = vmatpush1.xpose.msra.mxu0 0.0
    %4566 = vmatprep.subr.mxu0 0.0
    %4567 = vmatpush1.xpose.msra.mxu0 0.0
    %4568 = vmatprep.subr.mxu0 0.0
    %4569 = vmatpush1.xpose.msra.mxu0 0.0
    %4570 = vmatprep.subr.mxu0 0.0
    %4571 = vmatpush1.xpose.msra.mxu0 0.0
    %4572 = vmatprep.mubr.f32.mxu0 0.0
    %4573 = vmatmul.mubr.f32.gmra.mrb[0].mxu0 %v4504
    %v4574 = vpop.f32.mrb[0].mxu0
    %v4575 = vadd.f32 0.0, %v4574
    %v4576 = vpop.f32.mrb[0].mxu0
    %4577 = vdwg.mxu0
    %v4578 = vsel %vm1188, %v4497, -inf
    %4579 = vmax.xlane.f32.xlu0 %v4578
    %v4580 = vpop.xlane.xlu0 %4579
    %v4581 = vsel %vm1188, %v4575, -inf
    %4582 = vmax.xlane.f32.xlu0 %v4581
    %v4583 = vpop.xlane.xlu0 %4582
    %v4584 = vsub.f32 %v4497, %v4580
    %v4585 = vsub.f32 %v4575, %v4583
    %v4586 = vmul.f32 %v4584, 1.442695
    %v4587 = vpow.pop %v4586
    %v4588 = vmul.f32 %v4585, 1.442695
    %v4589 = vpow.pop %v4588
    %v4590 = vsel %vm1188, %v4587, 0.0
    %4591 = vadd.xlane.f32.xlu0 %v4590
    %v4592 = vpop.xlane.xlu0 %4591
    %v4593 = vsel %vm1188, %v4589, 0.0
    %4594 = vadd.xlane.f32.xlu0 %v4593
    %v4595 = vpop.xlane.xlu0 %4594
    %v4596 = vrcp.pop %v4592
    %v4597 = vrcp.pop %v4595
    %v4598 = vmul.f32 %v4587, %v4596
    %v4599 = vmul.f32 %v4589, %v4597
    %4600 = vrot.lane.b32.xlu0 %v3974, 48
    %v4601 = vpop.permute.xlu0 %4600
    %v4603 = vsel %vm1213, %v4598, 0
    %v4605 = vsel %vm1217, %v4601, 0
    %4607 = vmatprep.subr.mxu0 0.0
    %4608 = vmatpush1.msra.mxu0 %v4605
    %4609 = vmatprep.subr.mxu0 0.0
    %4610 = vmatpush1.msra.mxu0 0.0
    %4611 = vmatprep.subr.mxu0 0.0
    %4612 = vmatpush1.msra.mxu0 0.0
    %4613 = vmatprep.subr.mxu0 0.0
    %4614 = vmatpush1.msra.mxu0 0.0
    %4615 = vmatprep.subr.mxu0 0.0
    %4616 = vmatpush1.msra.mxu0 0.0
    %4617 = vmatprep.subr.mxu0 0.0
    %4618 = vmatpush1.msra.mxu0 0.0
    %4619 = vmatprep.subr.mxu0 0.0
    %4620 = vmatpush1.msra.mxu0 0.0
    %4621 = vmatprep.subr.mxu0 0.0
    %4622 = vmatpush1.msra.mxu0 0.0
    %4623 = vmatprep.subr.mxu0 0.0
    %4624 = vmatpush1.msra.mxu0 0.0
    %4625 = vmatprep.subr.mxu0 0.0
    %4626 = vmatpush1.msra.mxu0 0.0
    %4627 = vmatprep.subr.mxu0 0.0
    %4628 = vmatpush1.msra.mxu0 0.0
    %4629 = vmatprep.subr.mxu0 0.0
    %4630 = vmatpush1.msra.mxu0 0.0
    %4631 = vmatprep.subr.mxu0 0.0
    %4632 = vmatpush1.msra.mxu0 0.0
    %4633 = vmatprep.subr.mxu0 0.0
    %4634 = vmatpush1.msra.mxu0 0.0
    %4635 = vmatprep.subr.mxu0 0.0
    %4636 = vmatpush1.msra.mxu0 0.0
    %4637 = vmatprep.subr.mxu0 0.0
    %4638 = vmatpush1.msra.mxu0 0.0
    %4639 = vmatprep.subr.mxu0 0.0
    %4640 = vmatpush1.msra.mxu0 0.0
    %4641 = vmatprep.subr.mxu0 0.0
    %4642 = vmatpush1.msra.mxu0 0.0
    %4643 = vmatprep.subr.mxu0 0.0
    %4644 = vmatpush1.msra.mxu0 0.0
    %4645 = vmatprep.subr.mxu0 0.0
    %4646 = vmatpush1.msra.mxu0 0.0
    %4647 = vmatprep.subr.mxu0 0.0
    %4648 = vmatpush1.msra.mxu0 0.0
    %4649 = vmatprep.subr.mxu0 0.0
    %4650 = vmatpush1.msra.mxu0 0.0
    %4651 = vmatprep.subr.mxu0 0.0
    %4652 = vmatpush1.msra.mxu0 0.0
    %4653 = vmatprep.subr.mxu0 0.0
    %4654 = vmatpush1.msra.mxu0 0.0
    %4655 = vmatprep.subr.mxu0 0.0
    %4656 = vmatpush1.msra.mxu0 0.0
    %4657 = vmatprep.subr.mxu0 0.0
    %4658 = vmatpush1.msra.mxu0 0.0
    %4659 = vmatprep.subr.mxu0 0.0
    %4660 = vmatpush1.msra.mxu0 0.0
    %4661 = vmatprep.subr.mxu0 0.0
    %4662 = vmatpush1.msra.mxu0 0.0
    %4663 = vmatprep.subr.mxu0 0.0
    %4664 = vmatpush1.msra.mxu0 0.0
    %4665 = vmatprep.subr.mxu0 0.0
    %4666 = vmatpush1.msra.mxu0 0.0
    %4667 = vmatprep.subr.mxu0 0.0
    %4668 = vmatpush1.msra.mxu0 0.0
    %4669 = vmatprep.subr.mxu0 0.0
    %4670 = vmatpush1.msra.mxu0 0.0
    %4671 = vmatprep.mubr.f32.mxu0 0.0
    %4672 = vmatmul.mubr.f32.gmra.mrb[0].mxu0 %v4603
    %v4673 = vpop.f32.mrb[0].mxu0
    %v4674 = vadd.f32 0.0, %v4673
    %v4675 = vpop.f32.mrb[0].mxu0
    %4676 = vdwg.mxu0
    %4677 = vrot.lane.b32.xlu0 %v4089, 48
    %v4678 = vpop.permute.xlu0 %4677
    %v4680 = vsel %vm1213, %v4599, 0
    %v4682 = vsel %vm1217, %v4678, 0
    %4684 = vmatprep.subr.mxu0 0.0
    %4685 = vmatpush1.msra.mxu0 %v4682
    %4686 = vmatprep.subr.mxu0 0.0
    %4687 = vmatpush1.msra.mxu0 0.0
    %4688 = vmatprep.subr.mxu0 0.0
    %4689 = vmatpush1.msra.mxu0 0.0
    %4690 = vmatprep.subr.mxu0 0.0
    %4691 = vmatpush1.msra.mxu0 0.0
    %4692 = vmatprep.subr.mxu0 0.0
    %4693 = vmatpush1.msra.mxu0 0.0
    %4694 = vmatprep.subr.mxu0 0.0
    %4695 = vmatpush1.msra.mxu0 0.0
    %4696 = vmatprep.subr.mxu0 0.0
    %4697 = vmatpush1.msra.mxu0 0.0
    %4698 = vmatprep.subr.mxu0 0.0
    %4699 = vmatpush1.msra.mxu0 0.0
    %4700 = vmatprep.subr.mxu0 0.0
    %4701 = vmatpush1.msra.mxu0 0.0
    %4702 = vmatprep.subr.mxu0 0.0
    %4703 = vmatpush1.msra.mxu0 0.0
    %4704 = vmatprep.subr.mxu0 0.0
    %4705 = vmatpush1.msra.mxu0 0.0
    %4706 = vmatprep.subr.mxu0 0.0
    %4707 = vmatpush1.msra.mxu0 0.0
    %4708 = vmatprep.subr.mxu0 0.0
    %4709 = vmatpush1.msra.mxu0 0.0
    %4710 = vmatprep.subr.mxu0 0.0
    %4711 = vmatpush1.msra.mxu0 0.0
    %4712 = vmatprep.subr.mxu0 0.0
    %4713 = vmatpush1.msra.mxu0 0.0
    %4714 = vmatprep.subr.mxu0 0.0
    %4715 = vmatpush1.msra.mxu0 0.0
    %4716 = vmatprep.subr.mxu0 0.0
    %4717 = vmatpush1.msra.mxu0 0.0
    %4718 = vmatprep.subr.mxu0 0.0
    %4719 = vmatpush1.msra.mxu0 0.0
    %4720 = vmatprep.subr.mxu0 0.0
    %4721 = vmatpush1.msra.mxu0 0.0
    %4722 = vmatprep.subr.mxu0 0.0
    %4723 = vmatpush1.msra.mxu0 0.0
    %4724 = vmatprep.subr.mxu0 0.0
    %4725 = vmatpush1.msra.mxu0 0.0
    %4726 = vmatprep.subr.mxu0 0.0
    %4727 = vmatpush1.msra.mxu0 0.0
    %4728 = vmatprep.subr.mxu0 0.0
    %4729 = vmatpush1.msra.mxu0 0.0
    %4730 = vmatprep.subr.mxu0 0.0
    %4731 = vmatpush1.msra.mxu0 0.0
    %4732 = vmatprep.subr.mxu0 0.0
    %4733 = vmatpush1.msra.mxu0 0.0
    %4734 = vmatprep.subr.mxu0 0.0
    %4735 = vmatpush1.msra.mxu0 0.0
    %4736 = vmatprep.subr.mxu0 0.0
    %4737 = vmatpush1.msra.mxu0 0.0
    %4738 = vmatprep.subr.mxu0 0.0
    %4739 = vmatpush1.msra.mxu0 0.0
    %4740 = vmatprep.subr.mxu0 0.0
    %4741 = vmatpush1.msra.mxu0 0.0
    %4742 = vmatprep.subr.mxu0 0.0
    %4743 = vmatpush1.msra.mxu0 0.0
    %4744 = vmatprep.subr.mxu0 0.0
    %4745 = vmatpush1.msra.mxu0 0.0
    %4746 = vmatprep.subr.mxu0 0.0
    %4747 = vmatpush1.msra.mxu0 0.0
    %4748 = vmatprep.mubr.f32.mxu0 0.0
    %4749 = vmatmul.mubr.f32.gmra.mrb[0].mxu0 %v4680
    %v4750 = vpop.f32.mrb[0].mxu0
    %v4751 = vadd.f32 0.0, %v4750
    %v4752 = vpop.f32.mrb[0].mxu0
    %4753 = vdwg.mxu0
    %v4756 = vcombine.high %v4674, %v4674
    %v4758 = vunpack.c.l.s4 1966171168
    %v4759 = vunpack.c.0.s8 %v4758
    %v4760 = vlaneseq
    %v4761 = vshrl.u32 %v4760, 7
    %v4762 = vsub.s32 %v4759, %v4761
    %v4763 = vrot.slane %v4674, %v4762
    %v4765 = vunpack.c.l.s4 1966171168
    %v4766 = vunpack.c.0.s8 %v4765
    %v4767 = vlaneseq
    %v4768 = vshrl.u32 %v4767, 7
    %v4769 = vsub.s32 %v4766, %v4768
    %v4770 = vrot.slane %v4756, %v4769
    %v4771 = vcombine.high %v4763, %v4763
    %v4773 = vunpack.c.l.s4 1966171168
    %v4774 = vunpack.c.0.s8 %v4773
    %v4775 = vlaneseq
    %v4776 = vshrl.u32 %v4775, 7
    %v4777 = vsub.s32 %v4774, %v4776
    %v4778 = vrot.slane %v4763, %v4777
    %v4780 = vunpack.c.l.s4 1966171168
    %v4781 = vunpack.c.0.s8 %v4780
    %v4782 = vlaneseq
    %v4783 = vshrl.u32 %v4782, 7
    %v4784 = vsub.s32 %v4781, %v4783
    %v4785 = vrot.slane %v4770, %v4784
    %v4787 = vunpack.c.l.s4 1966171168
    %v4788 = vunpack.c.0.s8 %v4787
    %v4789 = vlaneseq
    %v4790 = vshrl.u32 %v4789, 7
    %v4791 = vsub.s32 %v4788, %v4790
    %v4792 = vrot.slane %v4771, %v4791
    %v4793 = vcombine.high %v4778, %v4778
    %v4794 = vcombine.high %v4792, %v4792
    %v4795 = vcombine.high %v4751, %v4751
    %v4797 = vunpack.c.l.s4 1966171168
    %v4798 = vunpack.c.0.s8 %v4797
    %v4799 = vlaneseq
    %v4800 = vshrl.u32 %v4799, 7
    %v4801 = vsub.s32 %v4798, %v4800
    %v4802 = vrot.slane %v4751, %v4801
    %v4804 = vunpack.c.l.s4 1966171168
    %v4805 = vunpack.c.0.s8 %v4804
    %v4806 = vlaneseq
    %v4807 = vshrl.u32 %v4806, 7
    %v4808 = vsub.s32 %v4805, %v4807
    %v4809 = vrot.slane %v4795, %v4808
    %v4810 = vcombine.high %v4802, %v4802
    %v4812 = vunpack.c.l.s4 1966171168
    %v4813 = vunpack.c.0.s8 %v4812
    %v4814 = vlaneseq
    %v4815 = vshrl.u32 %v4814, 7
    %v4816 = vsub.s32 %v4813, %v4815
    %v4817 = vrot.slane %v4802, %v4816
    %v4819 = vunpack.c.l.s4 1966171168
    %v4820 = vunpack.c.0.s8 %v4819
    %v4821 = vlaneseq
    %v4822 = vshrl.u32 %v4821, 7
    %v4823 = vsub.s32 %v4820, %v4822
    %v4824 = vrot.slane %v4809, %v4823
    %v4826 = vunpack.c.l.s4 1966171168
    %v4827 = vunpack.c.0.s8 %v4826
    %v4828 = vlaneseq
    %v4829 = vshrl.u32 %v4828, 7
    %v4830 = vsub.s32 %v4827, %v4829
    %v4831 = vrot.slane %v4810, %v4830
    %v4832 = vcombine.high %v4817, %v4817
    %v4833 = vcombine.high %v4831, %v4831
    %v4834 = vcombine.low %v4778, %v4792
    %v4835 = vcombine.low %v4793, %v4794
    %v4836 = vcombine.low %v4785, %v4817
    %v4837 = vcombine.low %v4831, %v4832
    %v4839 = vunpack.c.l.s4 1966171168
    %v4840 = vunpack.c.0.s8 %v4839
    %v4841 = vlaneseq
    %v4842 = vshrl.u32 %v4841, 7
    %v4843 = vsub.s32 %v4840, %v4842
    %v4844 = vrot.slane %v4834, %v4843
    %v4846 = vunpack.c.l.s4 1966171168
    %v4847 = vunpack.c.0.s8 %v4846
    %v4848 = vlaneseq
    %v4849 = vshrl.u32 %v4848, 7
    %v4850 = vsub.s32 %v4847, %v4849
    %v4851 = vrot.slane %v4835, %v4850
    %v4853 = vunpack.c.l.s4 1966171168
    %v4854 = vunpack.c.0.s8 %v4853
    %v4855 = vlaneseq
    %v4856 = vshrl.u32 %v4855, 7
    %v4857 = vsub.s32 %v4854, %v4856
    %v4858 = vrot.slane %v4836, %v4857
    %v4860 = vunpack.c.l.s4 1966171168
    %v4861 = vunpack.c.0.s8 %v4860
    %v4862 = vlaneseq
    %v4863 = vshrl.u32 %v4862, 7
    %v4864 = vsub.s32 %v4861, %v4863
    %v4865 = vrot.slane %v4837, %v4864
    %v4866 = vcombine.low %v4844, %v4851
    %v4867 = vcombine.low %v4858, %v4865
    %v4869 = vunpack.c.l.s4 1966171168
    %v4870 = vunpack.c.0.s8 %v4869
    %v4871 = vlaneseq
    %v4872 = vshrl.u32 %v4871, 7
    %v4873 = vsub.s32 %v4870, %v4872
    %v4874 = vrot.slane %v4866, %v4873
    %v4876 = vunpack.c.l.s4 1966171168
    %v4877 = vunpack.c.0.s8 %v4876
    %v4878 = vlaneseq
    %v4879 = vshrl.u32 %v4878, 7
    %v4880 = vsub.s32 %v4877, %v4879
    %v4881 = vrot.slane %v4867, %v4880
    %v4882 = vcombine.low %v4874, %v4881
    %v4883 = vcombine.low %v4833, %v4824
    %v4885 = vunpack.c.l.s4 1966171168
    %v4886 = vunpack.c.0.s8 %v4885
    %v4887 = vlaneseq
    %v4888 = vshrl.u32 %v4887, 7
    %v4889 = vsub.s32 %v4886, %v4888
    %v4890 = vrot.slane %v4883, %v4889
    %v4892 = vunpack.c.l.s4 1966171168
    %v4893 = vunpack.c.0.s8 %v4892
    %v4894 = vlaneseq
    %v4895 = vshrl.u32 %v4894, 7
    %v4896 = vsub.s32 %v4893, %v4895
    %v4897 = vrot.slane %v4890, %v4896
    %v4898 = vsel %vm998, %v4882, 0
    %v4900 = vsel %vm998, %v4897, 0
    %4902 = vmatprep.subr.mxu0 0.0
    %4903 = vmatpush1.msra.mxu0 %v3934
    %4904 = vmatprep.subr.mxu0 0.0
    %4905 = vmatpush1.msra.mxu0 %v3935
    %4906 = vmatprep.subr.mxu0 0.0
    %4907 = vmatpush1.msra.mxu0 0.0
    %4908 = vmatprep.subr.mxu0 0.0
    %4909 = vmatpush1.msra.mxu0 0.0
    %4910 = vmatprep.subr.mxu0 0.0
    %4911 = vmatpush1.msra.mxu0 0.0
    %4912 = vmatprep.subr.mxu0 0.0
    %4913 = vmatpush1.msra.mxu0 0.0
    %4914 = vmatprep.subr.mxu0 0.0
    %4915 = vmatpush1.msra.mxu0 0.0
    %4916 = vmatprep.subr.mxu0 0.0
    %4917 = vmatpush1.msra.mxu0 0.0
    %4918 = vmatprep.subr.mxu0 0.0
    %4919 = vmatpush1.msra.mxu0 0.0
    %4920 = vmatprep.subr.mxu0 0.0
    %4921 = vmatpush1.msra.mxu0 0.0
    %4922 = vmatprep.subr.mxu0 0.0
    %4923 = vmatpush1.msra.mxu0 0.0
    %4924 = vmatprep.subr.mxu0 0.0
    %4925 = vmatpush1.msra.mxu0 0.0
    %4926 = vmatprep.subr.mxu0 0.0
    %4927 = vmatpush1.msra.mxu0 0.0
    %4928 = vmatprep.subr.mxu0 0.0
    %4929 = vmatpush1.msra.mxu0 0.0
    %4930 = vmatprep.subr.mxu0 0.0
    %4931 = vmatpush1.msra.mxu0 0.0
    %4932 = vmatprep.subr.mxu0 0.0
    %4933 = vmatpush1.msra.mxu0 0.0
    %4934 = vmatprep.subr.mxu0 0.0
    %4935 = vmatpush1.msra.mxu0 0.0
    %4936 = vmatprep.subr.mxu0 0.0
    %4937 = vmatpush1.msra.mxu0 0.0
    %4938 = vmatprep.subr.mxu0 0.0
    %4939 = vmatpush1.msra.mxu0 0.0
    %4940 = vmatprep.subr.mxu0 0.0
    %4941 = vmatpush1.msra.mxu0 0.0
    %4942 = vmatprep.subr.mxu0 0.0
    %4943 = vmatpush1.msra.mxu0 0.0
    %4944 = vmatprep.subr.mxu0 0.0
    %4945 = vmatpush1.msra.mxu0 0.0
    %4946 = vmatprep.subr.mxu0 0.0
    %4947 = vmatpush1.msra.mxu0 0.0
    %4948 = vmatprep.subr.mxu0 0.0
    %4949 = vmatpush1.msra.mxu0 0.0
    %4950 = vmatprep.subr.mxu0 0.0
    %4951 = vmatpush1.msra.mxu0 0.0
    %4952 = vmatprep.subr.mxu0 0.0
    %4953 = vmatpush1.msra.mxu0 0.0
    %4954 = vmatprep.subr.mxu0 0.0
    %4955 = vmatpush1.msra.mxu0 0.0
    %4956 = vmatprep.subr.mxu0 0.0
    %4957 = vmatpush1.msra.mxu0 0.0
    %4958 = vmatprep.subr.mxu0 0.0
    %4959 = vmatpush1.msra.mxu0 0.0
    %4960 = vmatprep.subr.mxu0 0.0
    %4961 = vmatpush1.msra.mxu0 0.0
    %4962 = vmatprep.subr.mxu0 0.0
    %4963 = vmatpush1.msra.mxu0 0.0
    %4964 = vmatprep.subr.mxu0 0.0
    %4965 = vmatpush1.msra.mxu0 0.0
    %4966 = vmatprep.mubr.f32.mxu0 0.0
    %4967 = vmatmul.mubr.f32.gmra.mrb[0].mxu0 %v4898
    %v4968 = vpop.f32.mrb[0].mxu0
    %v4969 = vadd.f32 0.0, %v4968
    %v4970 = vpop.f32.mrb[0].mxu0
    %4971 = vmatprep.mubr.f32.mxu0 0.0
    %4972 = vmatmul.mubr.f32.gmra.mrb[0].mxu0 %v4900
    %v4973 = vpop.f32.mrb[0].mxu0
    %v4974 = vadd.f32 0.0, %v4973
    %v4975 = vpop.f32.mrb[0].mxu0
    %4976 = vdwg.mxu0
    %v4977 = vcombine.low %v4366, %v4380
    %v4978 = vcombine.low %v4381, %v4382
    %v4979 = vcombine.low %v4373, %v4405
    %v4980 = vcombine.low %v4419, %v4420
    %v4982 = vunpack.c.l.s4 1966171168
    %v4983 = vunpack.c.0.s8 %v4982
    %v4984 = vlaneseq
    %v4985 = vshrl.u32 %v4984, 7
    %v4986 = vsub.s32 %v4983, %v4985
    %v4987 = vrot.slane %v4977, %v4986
    %v4989 = vunpack.c.l.s4 1966171168
    %v4990 = vunpack.c.0.s8 %v4989
    %v4991 = vlaneseq
    %v4992 = vshrl.u32 %v4991, 7
    %v4993 = vsub.s32 %v4990, %v4992
    %v4994 = vrot.slane %v4978, %v4993
    %v4996 = vunpack.c.l.s4 1966171168
    %v4997 = vunpack.c.0.s8 %v4996
    %v4998 = vlaneseq
    %v4999 = vshrl.u32 %v4998, 7
    %v5000 = vsub.s32 %v4997, %v4999
    %v5001 = vrot.slane %v4979, %v5000
    %v5003 = vunpack.c.l.s4 1966171168
    %v5004 = vunpack.c.0.s8 %v5003
    %v5005 = vlaneseq
    %v5006 = vshrl.u32 %v5005, 7
    %v5007 = vsub.s32 %v5004, %v5006
    %v5008 = vrot.slane %v4980, %v5007
    %v5009 = vcombine.low %v4987, %v4994
    %v5010 = vcombine.low %v5001, %v5008
    %v5012 = vunpack.c.l.s4 1966171168
    %v5013 = vunpack.c.0.s8 %v5012
    %v5014 = vlaneseq
    %v5015 = vshrl.u32 %v5014, 7
    %v5016 = vsub.s32 %v5013, %v5015
    %v5017 = vrot.slane %v5009, %v5016
    %v5019 = vunpack.c.l.s4 1966171168
    %v5020 = vunpack.c.0.s8 %v5019
    %v5021 = vlaneseq
    %v5022 = vshrl.u32 %v5021, 7
    %v5023 = vsub.s32 %v5020, %v5022
    %v5024 = vrot.slane %v5010, %v5023
    %v5025 = vcombine.low %v5017, %v5024
    %v5026 = vcombine.low %v4421, %v4412
    %v5028 = vunpack.c.l.s4 1966171168
    %v5029 = vunpack.c.0.s8 %v5028
    %v5030 = vlaneseq
    %v5031 = vshrl.u32 %v5030, 7
    %v5032 = vsub.s32 %v5029, %v5031
    %v5033 = vrot.slane %v5026, %v5032
    %v5035 = vunpack.c.l.s4 1966171168
    %v5036 = vunpack.c.0.s8 %v5035
    %v5037 = vlaneseq
    %v5038 = vshrl.u32 %v5037, 7
    %v5039 = vsub.s32 %v5036, %v5038
    %v5040 = vrot.slane %v5033, %v5039
    %v5041 = vsel %vm998, %v5025, 0
    %v5043 = vsel %vm998, %v5040, 0
    %5045 = vmatprep.subr.mxu0 0.0
    %5046 = vmatpush1.msra.mxu0 %v3932
    %5047 = vmatprep.subr.mxu0 0.0
    %5048 = vmatpush1.msra.mxu0 %v3933
    %5049 = vmatprep.subr.mxu0 0.0
    %5050 = vmatpush1.msra.mxu0 0.0
    %5051 = vmatprep.subr.mxu0 0.0
    %5052 = vmatpush1.msra.mxu0 0.0
    %5053 = vmatprep.subr.mxu0 0.0
    %5054 = vmatpush1.msra.mxu0 0.0
    %5055 = vmatprep.subr.mxu0 0.0
    %5056 = vmatpush1.msra.mxu0 0.0
    %5057 = vmatprep.subr.mxu0 0.0
    %5058 = vmatpush1.msra.mxu0 0.0
    %5059 = vmatprep.subr.mxu0 0.0
    %5060 = vmatpush1.msra.mxu0 0.0
    %5061 = vmatprep.subr.mxu0 0.0
    %5062 = vmatpush1.msra.mxu0 0.0
    %5063 = vmatprep.subr.mxu0 0.0
    %5064 = vmatpush1.msra.mxu0 0.0
    %5065 = vmatprep.subr.mxu0 0.0
    %5066 = vmatpush1.msra.mxu0 0.0
    %5067 = vmatprep.subr.mxu0 0.0
    %5068 = vmatpush1.msra.mxu0 0.0
    %5069 = vmatprep.subr.mxu0 0.0
    %5070 = vmatpush1.msra.mxu0 0.0
    %5071 = vmatprep.subr.mxu0 0.0
    %5072 = vmatpush1.msra.mxu0 0.0
    %5073 = vmatprep.subr.mxu0 0.0
    %5074 = vmatpush1.msra.mxu0 0.0
    %5075 = vmatprep.subr.mxu0 0.0
    %5076 = vmatpush1.msra.mxu0 0.0
    %5077 = vmatprep.subr.mxu0 0.0
    %5078 = vmatpush1.msra.mxu0 0.0
    %5079 = vmatprep.subr.mxu0 0.0
    %5080 = vmatpush1.msra.mxu0 0.0
    %5081 = vmatprep.subr.mxu0 0.0
    %5082 = vmatpush1.msra.mxu0 0.0
    %5083 = vmatprep.subr.mxu0 0.0
    %5084 = vmatpush1.msra.mxu0 0.0
    %5085 = vmatprep.subr.mxu0 0.0
    %5086 = vmatpush1.msra.mxu0 0.0
    %5087 = vmatprep.subr.mxu0 0.0
    %5088 = vmatpush1.msra.mxu0 0.0
    %5089 = vmatprep.subr.mxu0 0.0
    %5090 = vmatpush1.msra.mxu0 0.0
    %5091 = vmatprep.subr.mxu0 0.0
    %5092 = vmatpush1.msra.mxu0 0.0
    %5093 = vmatprep.subr.mxu0 0.0
    %5094 = vmatpush1.msra.mxu0 0.0
    %5095 = vmatprep.subr.mxu0 0.0
    %5096 = vmatpush1.msra.mxu0 0.0
    %5097 = vmatprep.subr.mxu0 0.0
    %5098 = vmatpush1.msra.mxu0 0.0
    %5099 = vmatprep.subr.mxu0 0.0
    %5100 = vmatpush1.msra.mxu0 0.0
    %5101 = vmatprep.subr.mxu0 0.0
    %5102 = vmatpush1.msra.mxu0 0.0
    %5103 = vmatprep.subr.mxu0 0.0
    %5104 = vmatpush1.msra.mxu0 0.0
    %5105 = vmatprep.subr.mxu0 0.0
    %5106 = vmatpush1.msra.mxu0 0.0
    %5107 = vmatprep.subr.mxu0 0.0
    %5108 = vmatpush1.msra.mxu0 0.0
    %5109 = vmatprep.mubr.f32.mxu0 0.0
    %5110 = vmatmul.mubr.f32.gmra.mrb[0].mxu0 %v5041
    %v5111 = vpop.f32.mrb[0].mxu0
    %v5112 = vadd.f32 %v4969, %v5111
    %v5113 = vpop.f32.mrb[0].mxu0
    %5114 = vmatprep.mubr.f32.mxu0 0.0
    %5115 = vmatmul.mubr.f32.gmra.mrb[0].mxu0 %v5043
    %v5116 = vpop.f32.mrb[0].mxu0
    %v5117 = vadd.f32 %v4974, %v5116
    %v5118 = vpop.f32.mrb[0].mxu0
    %5119 = vdwg.mxu0
    %v5122 = vcombine.high %v5112, %v5112
    %v5124 = vunpack.c.l.s4 1966171168
    %v5125 = vunpack.c.0.s8 %v5124
    %v5126 = vlaneseq
    %v5127 = vshrl.u32 %v5126, 7
    %v5128 = vsub.s32 %v5125, %v5127
    %v5129 = vrot.slane %v5112, %v5128
    %v5131 = vunpack.c.l.s4 1966171168
    %v5132 = vunpack.c.0.s8 %v5131
    %v5133 = vlaneseq
    %v5134 = vshrl.u32 %v5133, 7
    %v5135 = vsub.s32 %v5132, %v5134
    %v5136 = vrot.slane %v5122, %v5135
    %v5137 = vcombine.high %v5129, %v5129
    %v5138 = vcombine.high %v5136, %v5136
    %v5140 = vunpack.c.l.s4 1966171168
    %v5141 = vunpack.c.0.s8 %v5140
    %v5142 = vlaneseq
    %v5143 = vshrl.u32 %v5142, 7
    %v5144 = vsub.s32 %v5141, %v5143
    %v5145 = vrot.slane %v5129, %v5144
    %v5147 = vunpack.c.l.s4 1966171168
    %v5148 = vunpack.c.0.s8 %v5147
    %v5149 = vlaneseq
    %v5150 = vshrl.u32 %v5149, 7
    %v5151 = vsub.s32 %v5148, %v5150
    %v5152 = vrot.slane %v5136, %v5151
    %v5154 = vunpack.c.l.s4 1966171168
    %v5155 = vunpack.c.0.s8 %v5154
    %v5156 = vlaneseq
    %v5157 = vshrl.u32 %v5156, 7
    %v5158 = vsub.s32 %v5155, %v5157
    %v5159 = vrot.slane %v5137, %v5158
    %v5161 = vunpack.c.l.s4 1966171168
    %v5162 = vunpack.c.0.s8 %v5161
    %v5163 = vlaneseq
    %v5164 = vshrl.u32 %v5163, 7
    %v5165 = vsub.s32 %v5162, %v5164
    %v5166 = vrot.slane %v5138, %v5165
    %v5167 = vcombine.high %v5145, %v5145
    %v5168 = vcombine.high %v5152, %v5152
    %v5169 = vcombine.high %v5159, %v5159
    %v5170 = vcombine.high %v5166, %v5166
    %v5172 = vunpack.c.l.s4 1966171168
    %v5173 = vunpack.c.0.s8 %v5172
    %v5174 = vlaneseq
    %v5175 = vshrl.u32 %v5174, 7
    %v5176 = vsub.s32 %v5173, %v5175
    %v5177 = vrot.slane %v5117, %v5176
    %v5178 = vcombine.high %v5177, %v5177
    %v5180 = vunpack.c.l.s4 1966171168
    %v5181 = vunpack.c.0.s8 %v5180
    %v5182 = vlaneseq
    %v5183 = vshrl.u32 %v5182, 7
    %v5184 = vsub.s32 %v5181, %v5183
    %v5185 = vrot.slane %v5177, %v5184
    %v5187 = vunpack.c.l.s4 1966171168
    %v5188 = vunpack.c.0.s8 %v5187
    %v5189 = vlaneseq
    %v5190 = vshrl.u32 %v5189, 7
    %v5191 = vsub.s32 %v5188, %v5190
    %v5192 = vrot.slane %v5178, %v5191
    %v5203 = vadd.f32 %v3228, %v5145
    %v5204 = vadd.f32 %v3229, %v5159
    %v5205 = vadd.f32 %v3230, %v5167
    %v5206 = vadd.f32 %v3231, %v5169
    %v5207 = vadd.f32 %v3232, %v5152
    %v5208 = vadd.f32 %v3233, %v5166
    %v5209 = vadd.f32 %v3234, %v5168
    %v5210 = vadd.f32 %v3235, %v5170
    %v5211 = vadd.f32 %v3236, %v5185
    %v5212 = vadd.f32 %v3237, %v5192
    %s5213 = scalar_lea.vmem %s8, 1
    %v5214 = vld [vmem:[%s5213] sm:$0x1]
    %v5216 = vlaneseq
    %v5217 = vshrl.u32 %v5216, 7
    %v5218 = vsub.s32 0, %v5217
    %v5219 = vrot.slane %v5214, %v5218
    %v5220 = vcombine.high %v5219, %v5219
    %v5222 = vunpack.c.l.s4 1966171168
    %v5223 = vunpack.c.0.s8 %v5222
    %v5224 = vlaneseq
    %v5225 = vshrl.u32 %v5224, 7
    %v5226 = vsub.s32 %v5223, %v5225
    %v5227 = vrot.slane %v5219, %v5226
    %v5229 = vunpack.c.l.s4 1966171168
    %v5230 = vunpack.c.0.s8 %v5229
    %v5231 = vlaneseq
    %v5232 = vshrl.u32 %v5231, 7
    %v5233 = vsub.s32 %v5230, %v5232
    %v5234 = vrot.slane %v5220, %v5233
    %v5235 = vcombine.high %v5227, %v5227
    %v5236 = vcombine.high %v5234, %v5234
    %v5238 = vunpack.c.l.s4 1966171168
    %v5239 = vunpack.c.0.s8 %v5238
    %v5240 = vlaneseq
    %v5241 = vshrl.u32 %v5240, 7
    %v5242 = vsub.s32 %v5239, %v5241
    %v5243 = vrot.slane %v5227, %v5242
    %v5245 = vunpack.c.l.s4 1966171168
    %v5246 = vunpack.c.0.s8 %v5245
    %v5247 = vlaneseq
    %v5248 = vshrl.u32 %v5247, 7
    %v5249 = vsub.s32 %v5246, %v5248
    %v5250 = vrot.slane %v5234, %v5249
    %v5252 = vunpack.c.l.s4 1966171168
    %v5253 = vunpack.c.0.s8 %v5252
    %v5254 = vlaneseq
    %v5255 = vshrl.u32 %v5254, 7
    %v5256 = vsub.s32 %v5253, %v5255
    %v5257 = vrot.slane %v5235, %v5256
    %v5259 = vunpack.c.l.s4 1966171168
    %v5260 = vunpack.c.0.s8 %v5259
    %v5261 = vlaneseq
    %v5262 = vshrl.u32 %v5261, 7
    %v5263 = vsub.s32 %v5260, %v5262
    %v5264 = vrot.slane %v5236, %v5263
    %v5265 = vcombine.high %v5243, %v5243
    %v5266 = vcombine.high %v5250, %v5250
    %v5267 = vcombine.high %v5257, %v5257
    %v5268 = vcombine.high %v5264, %v5264
    %v5277 = vadd.f32 %v5203, %v5243
    %v5278 = vadd.f32 %v5204, %v5257
    %v5279 = vadd.f32 %v5205, %v5265
    %v5280 = vadd.f32 %v5206, %v5267
    %v5281 = vadd.f32 %v5207, %v5250
    %v5282 = vadd.f32 %v5208, %v5264
    %v5283 = vadd.f32 %v5209, %v5266
    %v5284 = vadd.f32 %v5210, %v5268
    %v5285 = vadd.f32 %v5211, %v5243
    %v5286 = vadd.f32 %v5212, %v5257
    %s5287 = scalar_lea.vmem %s9, 1
    %v5288 = vld [vmem:[%s5287] sm:$0x1]
    %s5289 = scalar_lea.vmem %s10, 1
    %v5290 = vld [vmem:[%s5289] sm:$0x1]
    %v5301 = vcombine.low %v5277, %v5278
    %v5302 = vcombine.low %v5279, %v5280
    %v5303 = vcombine.low %v5281, %v5282
    %v5304 = vcombine.low %v5283, %v5284
    %v5306 = vunpack.c.l.s4 1966171168
    %v5307 = vunpack.c.0.s8 %v5306
    %v5308 = vlaneseq
    %v5309 = vshrl.u32 %v5308, 7
    %v5310 = vsub.s32 %v5307, %v5309
    %v5311 = vrot.slane %v5301, %v5310
    %v5313 = vunpack.c.l.s4 1966171168
    %v5314 = vunpack.c.0.s8 %v5313
    %v5315 = vlaneseq
    %v5316 = vshrl.u32 %v5315, 7
    %v5317 = vsub.s32 %v5314, %v5316
    %v5318 = vrot.slane %v5302, %v5317
    %v5320 = vunpack.c.l.s4 1966171168
    %v5321 = vunpack.c.0.s8 %v5320
    %v5322 = vlaneseq
    %v5323 = vshrl.u32 %v5322, 7
    %v5324 = vsub.s32 %v5321, %v5323
    %v5325 = vrot.slane %v5303, %v5324
    %v5327 = vunpack.c.l.s4 1966171168
    %v5328 = vunpack.c.0.s8 %v5327
    %v5329 = vlaneseq
    %v5330 = vshrl.u32 %v5329, 7
    %v5331 = vsub.s32 %v5328, %v5330
    %v5332 = vrot.slane %v5304, %v5331
    %v5333 = vcombine.low %v5311, %v5318
    %v5334 = vcombine.low %v5325, %v5332
    %v5336 = vunpack.c.l.s4 1966171168
    %v5337 = vunpack.c.0.s8 %v5336
    %v5338 = vlaneseq
    %v5339 = vshrl.u32 %v5338, 7
    %v5340 = vsub.s32 %v5337, %v5339
    %v5341 = vrot.slane %v5333, %v5340
    %v5343 = vunpack.c.l.s4 1966171168
    %v5344 = vunpack.c.0.s8 %v5343
    %v5345 = vlaneseq
    %v5346 = vshrl.u32 %v5345, 7
    %v5347 = vsub.s32 %v5344, %v5346
    %v5348 = vrot.slane %v5334, %v5347
    %v5349 = vcombine.low %v5341, %v5348
    %v5350 = vcombine.low %v5285, %v5286
    %v5352 = vunpack.c.l.s4 1966171168
    %v5353 = vunpack.c.0.s8 %v5352
    %v5354 = vlaneseq
    %v5355 = vshrl.u32 %v5354, 7
    %v5356 = vsub.s32 %v5353, %v5355
    %v5357 = vrot.slane %v5350, %v5356
    %v5359 = vunpack.c.l.s4 1966171168
    %v5360 = vunpack.c.0.s8 %v5359
    %v5361 = vlaneseq
    %v5362 = vshrl.u32 %v5361, 7
    %v5363 = vsub.s32 %v5360, %v5362
    %v5364 = vrot.slane %v5357, %v5363
    %v5367 = vsel %vm339, %v5349, 0.0
    %5368 = vadd.xlane.f32.xlu0 %v5367
    %v5369 = vpop.xlane.xlu0 %5368
    %v5370 = vsel %vm343, %v5364, 0.0
    %5371 = vadd.xlane.f32.xlu0 %v5370
    %v5372 = vpop.xlane.xlu0 %5371
    %v5373 = vmul.f32 %v5369, %v347
    %v5374 = vmul.f32 %v5372, %v347
    %v5377 = vlaneseq
    %v5378 = vshrl.u32 %v5377, 7
    %v5379 = vsub.s32 0, %v5378
    %v5380 = vrot.slane %v5373, %v5379
    %v5381 = vlaneseq
    %v5382 = vshrl.u32 %v5381, 7
    %v5383 = vsub.s32 1, %v5382
    %v5384 = vrot.slane %v5373, %v5383
    %v5385 = vlaneseq
    %v5386 = vshrl.u32 %v5385, 7
    %v5387 = vsub.s32 2, %v5386
    %v5388 = vrot.slane %v5373, %v5387
    %v5389 = vlaneseq
    %v5390 = vshrl.u32 %v5389, 7
    %v5391 = vsub.s32 3, %v5390
    %v5392 = vrot.slane %v5373, %v5391
    %v5393 = vlaneseq
    %v5394 = vshrl.u32 %v5393, 7
    %v5395 = vsub.s32 4, %v5394
    %v5396 = vrot.slane %v5373, %v5395
    %v5397 = vlaneseq
    %v5398 = vshrl.u32 %v5397, 7
    %v5399 = vsub.s32 5, %v5398
    %v5400 = vrot.slane %v5373, %v5399
    %v5401 = vlaneseq
    %v5402 = vshrl.u32 %v5401, 7
    %v5403 = vsub.s32 6, %v5402
    %v5404 = vrot.slane %v5373, %v5403
    %v5405 = vlaneseq
    %v5406 = vshrl.u32 %v5405, 7
    %v5407 = vsub.s32 7, %v5406
    %v5408 = vrot.slane %v5373, %v5407
    %v5409 = vlaneseq
    %v5410 = vshrl.u32 %v5409, 7
    %v5411 = vsub.s32 0, %v5410
    %v5412 = vrot.slane %v5374, %v5411
    %v5413 = vlaneseq
    %v5414 = vshrl.u32 %v5413, 7
    %v5415 = vsub.s32 1, %v5414
    %v5416 = vrot.slane %v5374, %v5415
    %v5427 = vsub.f32 %v5277, %v5380
    %v5428 = vsub.f32 %v5278, %v5384
    %v5429 = vsub.f32 %v5279, %v5388
    %v5430 = vsub.f32 %v5280, %v5392
    %v5431 = vsub.f32 %v5281, %v5396
    %v5432 = vsub.f32 %v5282, %v5400
    %v5433 = vsub.f32 %v5283, %v5404
    %v5434 = vsub.f32 %v5284, %v5408
    %v5435 = vsub.f32 %v5285, %v5412
    %v5436 = vsub.f32 %v5286, %v5416
    %v5437 = vmul.f32 %v5427, %v5427
    %v5438 = vmul.f32 %v5428, %v5428
    %v5439 = vmul.f32 %v5429, %v5429
    %v5440 = vmul.f32 %v5430, %v5430
    %v5441 = vmul.f32 %v5431, %v5431
    %v5442 = vmul.f32 %v5432, %v5432
    %v5443 = vmul.f32 %v5433, %v5433
    %v5444 = vmul.f32 %v5434, %v5434
    %v5445 = vmul.f32 %v5435, %v5435
    %v5446 = vmul.f32 %v5436, %v5436
    %v5457 = vcombine.low %v5437, %v5438
    %v5458 = vcombine.low %v5439, %v5440
    %v5459 = vcombine.low %v5441, %v5442
    %v5460 = vcombine.low %v5443, %v5444
    %v5462 = vunpack.c.l.s4 1966171168
    %v5463 = vunpack.c.0.s8 %v5462
    %v5464 = vlaneseq
    %v5465 = vshrl.u32 %v5464, 7
    %v5466 = vsub.s32 %v5463, %v5465
    %v5467 = vrot.slane %v5457, %v5466
    %v5469 = vunpack.c.l.s4 1966171168
    %v5470 = vunpack.c.0.s8 %v5469
    %v5471 = vlaneseq
    %v5472 = vshrl.u32 %v5471, 7
    %v5473 = vsub.s32 %v5470, %v5472
    %v5474 = vrot.slane %v5458, %v5473
    %v5476 = vunpack.c.l.s4 1966171168
    %v5477 = vunpack.c.0.s8 %v5476
    %v5478 = vlaneseq
    %v5479 = vshrl.u32 %v5478, 7
    %v5480 = vsub.s32 %v5477, %v5479
    %v5481 = vrot.slane %v5459, %v5480
    %v5483 = vunpack.c.l.s4 1966171168
    %v5484 = vunpack.c.0.s8 %v5483
    %v5485 = vlaneseq
    %v5486 = vshrl.u32 %v5485, 7
    %v5487 = vsub.s32 %v5484, %v5486
    %v5488 = vrot.slane %v5460, %v5487
    %v5489 = vcombine.low %v5467, %v5474
    %v5490 = vcombine.low %v5481, %v5488
    %v5492 = vunpack.c.l.s4 1966171168
    %v5493 = vunpack.c.0.s8 %v5492
    %v5494 = vlaneseq
    %v5495 = vshrl.u32 %v5494, 7
    %v5496 = vsub.s32 %v5493, %v5495
    %v5497 = vrot.slane %v5489, %v5496
    %v5499 = vunpack.c.l.s4 1966171168
    %v5500 = vunpack.c.0.s8 %v5499
    %v5501 = vlaneseq
    %v5502 = vshrl.u32 %v5501, 7
    %v5503 = vsub.s32 %v5500, %v5502
    %v5504 = vrot.slane %v5490, %v5503
    %v5505 = vcombine.low %v5497, %v5504
    %v5506 = vcombine.low %v5445, %v5446
    %v5508 = vunpack.c.l.s4 1966171168
    %v5509 = vunpack.c.0.s8 %v5508
    %v5510 = vlaneseq
    %v5511 = vshrl.u32 %v5510, 7
    %v5512 = vsub.s32 %v5509, %v5511
    %v5513 = vrot.slane %v5506, %v5512
    %v5515 = vunpack.c.l.s4 1966171168
    %v5516 = vunpack.c.0.s8 %v5515
    %v5517 = vlaneseq
    %v5518 = vshrl.u32 %v5517, 7
    %v5519 = vsub.s32 %v5516, %v5518
    %v5520 = vrot.slane %v5513, %v5519
    %v5523 = vsel %vm339, %v5505, 0.0
    %5524 = vadd.xlane.f32.xlu0 %v5523
    %v5525 = vpop.xlane.xlu0 %5524
    %v5526 = vsel %vm343, %v5520, 0.0
    %5527 = vadd.xlane.f32.xlu0 %v5526
    %v5528 = vpop.xlane.xlu0 %5527
    %v5529 = vmul.f32 %v5525, %v347
    %v5530 = vmul.f32 %v5528, %v347
    %v5531 = vadd.f32 %v5529, 1e-06
    %v5532 = vadd.f32 %v5530, 1e-06
    %v5533 = vrsqrt.pop %v5531
    %v5534 = vrsqrt.pop %v5532
    %v5537 = vlaneseq
    %v5538 = vshrl.u32 %v5537, 7
    %v5539 = vsub.s32 0, %v5538
    %v5540 = vrot.slane %v5533, %v5539
    %v5541 = vlaneseq
    %v5542 = vshrl.u32 %v5541, 7
    %v5543 = vsub.s32 1, %v5542
    %v5544 = vrot.slane %v5533, %v5543
    %v5545 = vlaneseq
    %v5546 = vshrl.u32 %v5545, 7
    %v5547 = vsub.s32 2, %v5546
    %v5548 = vrot.slane %v5533, %v5547
    %v5549 = vlaneseq
    %v5550 = vshrl.u32 %v5549, 7
    %v5551 = vsub.s32 3, %v5550
    %v5552 = vrot.slane %v5533, %v5551
    %v5553 = vlaneseq
    %v5554 = vshrl.u32 %v5553, 7
    %v5555 = vsub.s32 4, %v5554
    %v5556 = vrot.slane %v5533, %v5555
    %v5557 = vlaneseq
    %v5558 = vshrl.u32 %v5557, 7
    %v5559 = vsub.s32 5, %v5558
    %v5560 = vrot.slane %v5533, %v5559
    %v5561 = vlaneseq
    %v5562 = vshrl.u32 %v5561, 7
    %v5563 = vsub.s32 6, %v5562
    %v5564 = vrot.slane %v5533, %v5563
    %v5565 = vlaneseq
    %v5566 = vshrl.u32 %v5565, 7
    %v5567 = vsub.s32 7, %v5566
    %v5568 = vrot.slane %v5533, %v5567
    %v5569 = vlaneseq
    %v5570 = vshrl.u32 %v5569, 7
    %v5571 = vsub.s32 0, %v5570
    %v5572 = vrot.slane %v5534, %v5571
    %v5573 = vlaneseq
    %v5574 = vshrl.u32 %v5573, 7
    %v5575 = vsub.s32 1, %v5574
    %v5576 = vrot.slane %v5534, %v5575
    %v5587 = vmul.f32 %v5427, %v5540
    %v5588 = vmul.f32 %v5428, %v5544
    %v5589 = vmul.f32 %v5429, %v5548
    %v5590 = vmul.f32 %v5430, %v5552
    %v5591 = vmul.f32 %v5431, %v5556
    %v5592 = vmul.f32 %v5432, %v5560
    %v5593 = vmul.f32 %v5433, %v5564
    %v5594 = vmul.f32 %v5434, %v5568
    %v5595 = vmul.f32 %v5435, %v5572
    %v5596 = vmul.f32 %v5436, %v5576
    %v5598 = vlaneseq
    %v5599 = vshrl.u32 %v5598, 7
    %v5600 = vsub.s32 0, %v5599
    %v5601 = vrot.slane %v5288, %v5600
    %v5602 = vcombine.high %v5601, %v5601
    %v5604 = vunpack.c.l.s4 1966171168
    %v5605 = vunpack.c.0.s8 %v5604
    %v5606 = vlaneseq
    %v5607 = vshrl.u32 %v5606, 7
    %v5608 = vsub.s32 %v5605, %v5607
    %v5609 = vrot.slane %v5601, %v5608
    %v5611 = vunpack.c.l.s4 1966171168
    %v5612 = vunpack.c.0.s8 %v5611
    %v5613 = vlaneseq
    %v5614 = vshrl.u32 %v5613, 7
    %v5615 = vsub.s32 %v5612, %v5614
    %v5616 = vrot.slane %v5602, %v5615
    %v5617 = vcombine.high %v5609, %v5609
    %v5618 = vcombine.high %v5616, %v5616
    %v5620 = vunpack.c.l.s4 1966171168
    %v5621 = vunpack.c.0.s8 %v5620
    %v5622 = vlaneseq
    %v5623 = vshrl.u32 %v5622, 7
    %v5624 = vsub.s32 %v5621, %v5623
    %v5625 = vrot.slane %v5609, %v5624
    %v5627 = vunpack.c.l.s4 1966171168
    %v5628 = vunpack.c.0.s8 %v5627
    %v5629 = vlaneseq
    %v5630 = vshrl.u32 %v5629, 7
    %v5631 = vsub.s32 %v5628, %v5630
    %v5632 = vrot.slane %v5616, %v5631
    %v5634 = vunpack.c.l.s4 1966171168
    %v5635 = vunpack.c.0.s8 %v5634
    %v5636 = vlaneseq
    %v5637 = vshrl.u32 %v5636, 7
    %v5638 = vsub.s32 %v5635, %v5637
    %v5639 = vrot.slane %v5617, %v5638
    %v5641 = vunpack.c.l.s4 1966171168
    %v5642 = vunpack.c.0.s8 %v5641
    %v5643 = vlaneseq
    %v5644 = vshrl.u32 %v5643, 7
    %v5645 = vsub.s32 %v5642, %v5644
    %v5646 = vrot.slane %v5618, %v5645
    %v5647 = vcombine.high %v5625, %v5625
    %v5648 = vcombine.high %v5632, %v5632
    %v5649 = vcombine.high %v5639, %v5639
    %v5650 = vcombine.high %v5646, %v5646
    %v5659 = vmul.f32 %v5587, %v5625
    %v5660 = vmul.f32 %v5588, %v5639
    %v5661 = vmul.f32 %v5589, %v5647
    %v5662 = vmul.f32 %v5590, %v5649
    %v5663 = vmul.f32 %v5591, %v5632
    %v5664 = vmul.f32 %v5592, %v5646
    %v5665 = vmul.f32 %v5593, %v5648
    %v5666 = vmul.f32 %v5594, %v5650
    %v5667 = vmul.f32 %v5595, %v5625
    %v5668 = vmul.f32 %v5596, %v5639
    %v5670 = vlaneseq
    %v5671 = vshrl.u32 %v5670, 7
    %v5672 = vsub.s32 0, %v5671
    %v5673 = vrot.slane %v5290, %v5672
    %v5674 = vcombine.high %v5673, %v5673
    %v5676 = vunpack.c.l.s4 1966171168
    %v5677 = vunpack.c.0.s8 %v5676
    %v5678 = vlaneseq
    %v5679 = vshrl.u32 %v5678, 7
    %v5680 = vsub.s32 %v5677, %v5679
    %v5681 = vrot.slane %v5673, %v5680
    %v5683 = vunpack.c.l.s4 1966171168
    %v5684 = vunpack.c.0.s8 %v5683
    %v5685 = vlaneseq
    %v5686 = vshrl.u32 %v5685, 7
    %v5687 = vsub.s32 %v5684, %v5686
    %v5688 = vrot.slane %v5674, %v5687
    %v5689 = vcombine.high %v5681, %v5681
    %v5690 = vcombine.high %v5688, %v5688
    %v5692 = vunpack.c.l.s4 1966171168
    %v5693 = vunpack.c.0.s8 %v5692
    %v5694 = vlaneseq
    %v5695 = vshrl.u32 %v5694, 7
    %v5696 = vsub.s32 %v5693, %v5695
    %v5697 = vrot.slane %v5681, %v5696
    %v5699 = vunpack.c.l.s4 1966171168
    %v5700 = vunpack.c.0.s8 %v5699
    %v5701 = vlaneseq
    %v5702 = vshrl.u32 %v5701, 7
    %v5703 = vsub.s32 %v5700, %v5702
    %v5704 = vrot.slane %v5688, %v5703
    %v5706 = vunpack.c.l.s4 1966171168
    %v5707 = vunpack.c.0.s8 %v5706
    %v5708 = vlaneseq
    %v5709 = vshrl.u32 %v5708, 7
    %v5710 = vsub.s32 %v5707, %v5709
    %v5711 = vrot.slane %v5689, %v5710
    %v5713 = vunpack.c.l.s4 1966171168
    %v5714 = vunpack.c.0.s8 %v5713
    %v5715 = vlaneseq
    %v5716 = vshrl.u32 %v5715, 7
    %v5717 = vsub.s32 %v5714, %v5716
    %v5718 = vrot.slane %v5690, %v5717
    %v5719 = vcombine.high %v5697, %v5697
    %v5720 = vcombine.high %v5704, %v5704
    %v5721 = vcombine.high %v5711, %v5711
    %v5722 = vcombine.high %v5718, %v5718
    %v5731 = vadd.f32 %v5659, %v5697
    %v5732 = vadd.f32 %v5660, %v5711
    %v5733 = vadd.f32 %v5661, %v5719
    %v5734 = vadd.f32 %v5662, %v5721
    %v5735 = vadd.f32 %v5663, %v5704
    %v5736 = vadd.f32 %v5664, %v5718
    %v5737 = vadd.f32 %v5665, %v5720
    %v5738 = vadd.f32 %v5666, %v5722
    %v5739 = vadd.f32 %v5667, %v5697
    %v5740 = vadd.f32 %v5668, %v5711
    %s5741 = scalar_lea.vmem %s11, 32
    %v5742 = vld [vmem:[%s5741] sm:$0xff]
    %v5743 = vld [vmem:[%s5741 + $0x8] sm:$0xff]
    %v5744 = vld [vmem:[%s5741 + $0x10] sm:$0xff]
    %v5745 = vld [vmem:[%s5741 + $0x18] sm:$0xff]
    %s5746 = scalar_lea.vmem %s12, 1
    %v5747 = vld [vmem:[%s5746] sm:$0x1]
    %v5749 = vlaneseq
    %v5750 = vshrl.u32 %v5749, 7
    %v5751 = vsub.s32 0, %v5750
    %v5752 = vrot.slane %v5747, %v5751
    %v5764 = vcombine.low %v5731, %v5732
    %v5765 = vcombine.low %v5733, %v5734
    %v5766 = vcombine.low %v5735, %v5736
    %v5767 = vcombine.low %v5737, %v5738
    %v5769 = vunpack.c.l.s4 1966171168
    %v5770 = vunpack.c.0.s8 %v5769
    %v5771 = vlaneseq
    %v5772 = vshrl.u32 %v5771, 7
    %v5773 = vsub.s32 %v5770, %v5772
    %v5774 = vrot.slane %v5764, %v5773
    %v5776 = vunpack.c.l.s4 1966171168
    %v5777 = vunpack.c.0.s8 %v5776
    %v5778 = vlaneseq
    %v5779 = vshrl.u32 %v5778, 7
    %v5780 = vsub.s32 %v5777, %v5779
    %v5781 = vrot.slane %v5765, %v5780
    %v5783 = vunpack.c.l.s4 1966171168
    %v5784 = vunpack.c.0.s8 %v5783
    %v5785 = vlaneseq
    %v5786 = vshrl.u32 %v5785, 7
    %v5787 = vsub.s32 %v5784, %v5786
    %v5788 = vrot.slane %v5766, %v5787
    %v5790 = vunpack.c.l.s4 1966171168
    %v5791 = vunpack.c.0.s8 %v5790
    %v5792 = vlaneseq
    %v5793 = vshrl.u32 %v5792, 7
    %v5794 = vsub.s32 %v5791, %v5793
    %v5795 = vrot.slane %v5767, %v5794
    %v5796 = vcombine.low %v5774, %v5781
    %v5797 = vcombine.low %v5788, %v5795
    %v5799 = vunpack.c.l.s4 1966171168
    %v5800 = vunpack.c.0.s8 %v5799
    %v5801 = vlaneseq
    %v5802 = vshrl.u32 %v5801, 7
    %v5803 = vsub.s32 %v5800, %v5802
    %v5804 = vrot.slane %v5796, %v5803
    %v5806 = vunpack.c.l.s4 1966171168
    %v5807 = vunpack.c.0.s8 %v5806
    %v5808 = vlaneseq
    %v5809 = vshrl.u32 %v5808, 7
    %v5810 = vsub.s32 %v5807, %v5809
    %v5811 = vrot.slane %v5797, %v5810
    %v5812 = vcombine.low %v5804, %v5811
    %v5813 = vcombine.low %v5739, %v5740
    %v5815 = vunpack.c.l.s4 1966171168
    %v5816 = vunpack.c.0.s8 %v5815
    %v5817 = vlaneseq
    %v5818 = vshrl.u32 %v5817, 7
    %v5819 = vsub.s32 %v5816, %v5818
    %v5820 = vrot.slane %v5813, %v5819
    %v5822 = vunpack.c.l.s4 1966171168
    %v5823 = vunpack.c.0.s8 %v5822
    %v5824 = vlaneseq
    %v5825 = vshrl.u32 %v5824, 7
    %v5826 = vsub.s32 %v5823, %v5825
    %v5827 = vrot.slane %v5820, %v5826
    %v5828 = vsel %vm339, %v5812, 0
    %v5830 = vsel %vm339, %v5827, 0
    %5832 = vmatprep.subr.mxu0 0.0
    %5833 = vmatpush1.msra.mxu0 %v5742
    %5834 = vmatprep.subr.mxu0 0.0
    %5835 = vmatpush1.msra.mxu0 %v5743
    %5836 = vmatprep.subr.mxu0 0.0
    %5837 = vmatpush1.msra.mxu0 %v5744
    %5838 = vmatprep.subr.mxu0 0.0
    %5839 = vmatpush1.msra.mxu0 %v5745
    %5840 = vmatprep.subr.mxu0 0.0
    %5841 = vmatpush1.msra.mxu0 0.0
    %5842 = vmatprep.subr.mxu0 0.0
    %5843 = vmatpush1.msra.mxu0 0.0
    %5844 = vmatprep.subr.mxu0 0.0
    %5845 = vmatpush1.msra.mxu0 0.0
    %5846 = vmatprep.subr.mxu0 0.0
    %5847 = vmatpush1.msra.mxu0 0.0
    %5848 = vmatprep.subr.mxu0 0.0
    %5849 = vmatpush1.msra.mxu0 0.0
    %5850 = vmatprep.subr.mxu0 0.0
    %5851 = vmatpush1.msra.mxu0 0.0
    %5852 = vmatprep.subr.mxu0 0.0
    %5853 = vmatpush1.msra.mxu0 0.0
    %5854 = vmatprep.subr.mxu0 0.0
    %5855 = vmatpush1.msra.mxu0 0.0
    %5856 = vmatprep.subr.mxu0 0.0
    %5857 = vmatpush1.msra.mxu0 0.0
    %5858 = vmatprep.subr.mxu0 0.0
    %5859 = vmatpush1.msra.mxu0 0.0
    %5860 = vmatprep.subr.mxu0 0.0
    %5861 = vmatpush1.msra.mxu0 0.0
    %5862 = vmatprep.subr.mxu0 0.0
    %5863 = vmatpush1.msra.mxu0 0.0
    %5864 = vmatprep.subr.mxu0 0.0
    %5865 = vmatpush1.msra.mxu0 0.0
    %5866 = vmatprep.subr.mxu0 0.0
    %5867 = vmatpush1.msra.mxu0 0.0
    %5868 = vmatprep.subr.mxu0 0.0
    %5869 = vmatpush1.msra.mxu0 0.0
    %5870 = vmatprep.subr.mxu0 0.0
    %5871 = vmatpush1.msra.mxu0 0.0
    %5872 = vmatprep.subr.mxu0 0.0
    %5873 = vmatpush1.msra.mxu0 0.0
    %5874 = vmatprep.subr.mxu0 0.0
    %5875 = vmatpush1.msra.mxu0 0.0
    %5876 = vmatprep.subr.mxu0 0.0
    %5877 = vmatpush1.msra.mxu0 0.0
    %5878 = vmatprep.subr.mxu0 0.0
    %5879 = vmatpush1.msra.mxu0 0.0
    %5880 = vmatprep.subr.mxu0 0.0
    %5881 = vmatpush1.msra.mxu0 0.0
    %5882 = vmatprep.subr.mxu0 0.0
    %5883 = vmatpush1.msra.mxu0 0.0
    %5884 = vmatprep.subr.mxu0 0.0
    %5885 = vmatpush1.msra.mxu0 0.0
    %5886 = vmatprep.subr.mxu0 0.0
    %5887 = vmatpush1.msra.mxu0 0.0
    %5888 = vmatprep.subr.mxu0 0.0
    %5889 = vmatpush1.msra.mxu0 0.0
    %5890 = vmatprep.subr.mxu0 0.0
    %5891 = vmatpush1.msra.mxu0 0.0
    %5892 = vmatprep.subr.mxu0 0.0
    %5893 = vmatpush1.msra.mxu0 0.0
    %5894 = vmatprep.subr.mxu0 0.0
    %5895 = vmatpush1.msra.mxu0 0.0
    %5896 = vmatprep.mubr.f32.mxu0 0.0
    %5897 = vmatmul.mubr.f32.gmra.mrb[0].mxu0 %v5828
    %v5898 = vpop.f32.mrb[0].mxu0
    %v5899 = vadd.f32 %v5752, %v5898
    %v5900 = vpop.f32.mrb[0].mxu0
    %5901 = vmatprep.mubr.f32.mxu0 0.0
    %5902 = vmatmul.mubr.f32.gmra.mrb[0].mxu0 %v5830
    %v5903 = vpop.f32.mrb[0].mxu0
    %v5904 = vadd.f32 %v5752, %v5903
    %v5905 = vpop.f32.mrb[0].mxu0
    %5906 = vdwg.mxu0
    %v5907 = vmul.f32 %v5899, 0.5
    %v5908 = vmul.f32 %v5904, 0.5
    %v5909 = vmul.f32 %v5899, 0.70710677
    %v5910 = vmul.f32 %v5904, 0.70710677
    %vm5911 = vcmp.ge.f32.partialorder %v5909, 0.0
    %vm5912 = vcmp.ge.f32.partialorder %v5910, 0.0
    %v5913 = vsel %vm5911, 1.0, -1.0
    %v5914 = vsel %vm5912, 1.0, -1.0
    %v5915 = vand.u32 2147483647, %v5909
    %v5916 = vand.u32 2147483647, %v5910
    %v5917 = vmul.f32 %v5915, 0.3275911
    %v5918 = vmul.f32 %v5916, 0.3275911
    %v5919 = vadd.f32 %v5917, 1.0
    %v5920 = vadd.f32 %v5918, 1.0
    %v5921 = vrcp.pop %v5919
    %v5922 = vmul.f32 1.0, %v5921
    %v5923 = vrcp.pop %v5920
    %v5924 = vmul.f32 1.0, %v5923
    %v5925 = vmul.f32 %v5922, 1.0614054
    %v5926 = vmul.f32 %v5924, 1.0614054
    %v5927 = vadd.f32 %v5925, -1.4531521
    %v5928 = vadd.f32 %v5926, -1.4531521
    %v5929 = vmul.f32 %v5927, %v5922
    %v5930 = vmul.f32 %v5928, %v5924
    %v5931 = vadd.f32 %v5929, 1.4214138
    %v5932 = vadd.f32 %v5930, 1.4214138
    %v5933 = vmul.f32 %v5931, %v5922
    %v5934 = vmul.f32 %v5932, %v5924
    %v5935 = vadd.f32 %v5933, -0.28449672
    %v5936 = vadd.f32 %v5934, -0.28449672
    %v5937 = vmul.f32 %v5935, %v5922
    %v5938 = vmul.f32 %v5936, %v5924
    %v5939 = vadd.f32 %v5937, 0.2548296
    %v5940 = vadd.f32 %v5938, 0.2548296
    %v5941 = vmul.f32 %v5939, %v5922
    %v5942 = vmul.f32 %v5940, %v5924
    %v5943 = vsub.f32 0.0, %v5915
    %v5944 = vsub.f32 0.0, %v5916
    %v5945 = vmul.f32 %v5943, %v5915
    %v5946 = vmul.f32 %v5944, %v5916
    %v5947 = vmul.f32 %v5945, 1.442695
    %v5948 = vpow.pop %v5947
    %v5949 = vmul.f32 %v5946, 1.442695
    %v5950 = vpow.pop %v5949
    %v5951 = vmul.f32 %v5941, %v5948
    %v5952 = vmul.f32 %v5942, %v5950
    %v5953 = vsub.f32 1.0, %v5951
    %v5954 = vsub.f32 1.0, %v5952
    %v5955 = vmul.f32 %v5913, %v5953
    %v5956 = vmul.f32 %v5914, %v5954
    %v5957 = vadd.f32 %v5955, 1.0
    %v5958 = vadd.f32 %v5956, 1.0
    %v5959 = vmul.f32 %v5907, %v5957
    %v5960 = vmul.f32 %v5908, %v5958
    %s5961 = scalar_lea.vmem %s13, 128
    %v5962 = vld [vmem:[%s5961] sm:$0xff]
    %v5963 = vld [vmem:[%s5961 + $0x8] sm:$0xff]
    %v5964 = vld [vmem:[%s5961 + $0x10] sm:$0xff]
    %v5965 = vld [vmem:[%s5961 + $0x18] sm:$0xff]
    %v5966 = vld [vmem:[%s5961 + $0x20] sm:$0xff]
    %v5967 = vld [vmem:[%s5961 + $0x28] sm:$0xff]
    %v5968 = vld [vmem:[%s5961 + $0x30] sm:$0xff]
    %v5969 = vld [vmem:[%s5961 + $0x38] sm:$0xff]
    %v5970 = vld [vmem:[%s5961 + $0x40] sm:$0xff]
    %v5971 = vld [vmem:[%s5961 + $0x48] sm:$0xff]
    %v5972 = vld [vmem:[%s5961 + $0x50] sm:$0xff]
    %v5973 = vld [vmem:[%s5961 + $0x58] sm:$0xff]
    %v5974 = vld [vmem:[%s5961 + $0x60] sm:$0xff]
    %v5975 = vld [vmem:[%s5961 + $0x68] sm:$0xff]
    %v5976 = vld [vmem:[%s5961 + $0x70] sm:$0xff]
    %v5977 = vld [vmem:[%s5961 + $0x78] sm:$0xff]
    %5978 = vmatprep.subr.mxu0 0.0
    %5979 = vmatpush1.msra.mxu0 %v5962
    %5980 = vmatprep.subr.mxu0 0.0
    %5981 = vmatpush1.msra.mxu0 %v5963
    %5982 = vmatprep.subr.mxu0 0.0
    %5983 = vmatpush1.msra.mxu0 %v5964
    %5984 = vmatprep.subr.mxu0 0.0
    %5985 = vmatpush1.msra.mxu0 %v5965
    %5986 = vmatprep.subr.mxu0 0.0
    %5987 = vmatpush1.msra.mxu0 %v5966
    %5988 = vmatprep.subr.mxu0 0.0
    %5989 = vmatpush1.msra.mxu0 %v5967
    %5990 = vmatprep.subr.mxu0 0.0
    %5991 = vmatpush1.msra.mxu0 %v5968
    %5992 = vmatprep.subr.mxu0 0.0
    %5993 = vmatpush1.msra.mxu0 %v5969
    %5994 = vmatprep.subr.mxu0 0.0
    %5995 = vmatpush1.msra.mxu0 %v5970
    %5996 = vmatprep.subr.mxu0 0.0
    %5997 = vmatpush1.msra.mxu0 %v5971
    %5998 = vmatprep.subr.mxu0 0.0
    %5999 = vmatpush1.msra.mxu0 %v5972
    %6000 = vmatprep.subr.mxu0 0.0
    %6001 = vmatpush1.msra.mxu0 %v5973
    %6002 = vmatprep.subr.mxu0 0.0
    %6003 = vmatpush1.msra.mxu0 %v5974
    %6004 = vmatprep.subr.mxu0 0.0
    %6005 = vmatpush1.msra.mxu0 %v5975
    %6006 = vmatprep.subr.mxu0 0.0
    %6007 = vmatpush1.msra.mxu0 %v5976
    %6008 = vmatprep.subr.mxu0 0.0
    %6009 = vmatpush1.msra.mxu0 %v5977
    %6010 = vmatprep.subr.mxu0 0.0
    %6011 = vmatpush1.msra.mxu0 0.0
    %6012 = vmatprep.subr.mxu0 0.0
    %6013 = vmatpush1.msra.mxu0 0.0
    %6014 = vmatprep.subr.mxu0 0.0
    %6015 = vmatpush1.msra.mxu0 0.0
    %6016 = vmatprep.subr.mxu0 0.0
    %6017 = vmatpush1.msra.mxu0 0.0
    %6018 = vmatprep.subr.mxu0 0.0
    %6019 = vmatpush1.msra.mxu0 0.0
    %6020 = vmatprep.subr.mxu0 0.0
    %6021 = vmatpush1.msra.mxu0 0.0
    %6022 = vmatprep.subr.mxu0 0.0
    %6023 = vmatpush1.msra.mxu0 0.0
    %6024 = vmatprep.subr.mxu0 0.0
    %6025 = vmatpush1.msra.mxu0 0.0
    %6026 = vmatprep.subr.mxu0 0.0
    %6027 = vmatpush1.msra.mxu0 0.0
    %6028 = vmatprep.subr.mxu0 0.0
    %6029 = vmatpush1.msra.mxu0 0.0
    %6030 = vmatprep.subr.mxu0 0.0
    %6031 = vmatpush1.msra.mxu0 0.0
    %6032 = vmatprep.subr.mxu0 0.0
    %6033 = vmatpush1.msra.mxu0 0.0
    %6034 = vmatprep.subr.mxu0 0.0
    %6035 = vmatpush1.msra.mxu0 0.0
    %6036 = vmatprep.subr.mxu0 0.0
    %6037 = vmatpush1.msra.mxu0 0.0
    %6038 = vmatprep.subr.mxu0 0.0
    %6039 = vmatpush1.msra.mxu0 0.0
    %6040 = vmatprep.subr.mxu0 0.0
    %6041 = vmatpush1.msra.mxu0 0.0
    %6042 = vmatprep.mubr.f32.mxu0 0.0
    %6043 = vmatmul.mubr.f32.gmra.mrb[0].mxu0 %v5959
    %v6044 = vpop.f32.mrb[0].mxu0
    %v6045 = vadd.f32 0.0, %v6044
    %v6046 = vpop.f32.mrb[0].mxu0
    %6047 = vmatprep.mubr.f32.mxu0 0.0
    %6048 = vmatmul.mubr.f32.gmra.mrb[0].mxu0 %v5960
    %v6049 = vpop.f32.mrb[0].mxu0
    %v6050 = vpop.f32.mrb[0].mxu0
    %6051 = vdwg.mxu0
    %v6053 = vcombine.high %v6045, %v6045
    %v6055 = vunpack.c.l.s4 1966171168
    %v6056 = vunpack.c.0.s8 %v6055
    %v6057 = vlaneseq
    %v6058 = vshrl.u32 %v6057, 7
    %v6059 = vsub.s32 %v6056, %v6058
    %v6060 = vrot.slane %v6045, %v6059
    %v6062 = vunpack.c.l.s4 1966171168
    %v6063 = vunpack.c.0.s8 %v6062
    %v6064 = vlaneseq
    %v6065 = vshrl.u32 %v6064, 7
    %v6066 = vsub.s32 %v6063, %v6065
    %v6067 = vrot.slane %v6053, %v6066
    %v6068 = vcombine.high %v6067, %v6067
    %v6070 = vunpack.c.l.s4 1966171168
    %v6071 = vunpack.c.0.s8 %v6070
    %v6072 = vlaneseq
    %v6073 = vshrl.u32 %v6072, 7
    %v6074 = vsub.s32 %v6071, %v6073
    %v6075 = vrot.slane %v6060, %v6074
    %v6077 = vunpack.c.l.s4 1966171168
    %v6078 = vunpack.c.0.s8 %v6077
    %v6079 = vlaneseq
    %v6080 = vshrl.u32 %v6079, 7
    %v6081 = vsub.s32 %v6078, %v6080
    %v6082 = vrot.slane %v6068, %v6081
    %v6085 = vadd.f32 %v5277, %v6075
    %v6086 = vadd.f32 %v5282, %v6082
    %s6087 = scalar_lea.vmem %s14, 1
    %v6088 = vld [vmem:[%s6087] sm:$0x1]
    %v6090 = vlaneseq
    %v6091 = vshrl.u32 %v6090, 7
    %v6092 = vsub.s32 0, %v6091
    %v6093 = vrot.slane %v6088, %v6092
    %v6094 = vcombine.high %v6093, %v6093
    %v6096 = vunpack.c.l.s4 1966171168
    %v6097 = vunpack.c.0.s8 %v6096
    %v6098 = vlaneseq
    %v6099 = vshrl.u32 %v6098, 7
    %v6100 = vsub.s32 %v6097, %v6099
    %v6101 = vrot.slane %v6093, %v6100
    %v6103 = vunpack.c.l.s4 1966171168
    %v6104 = vunpack.c.0.s8 %v6103
    %v6105 = vlaneseq
    %v6106 = vshrl.u32 %v6105, 7
    %v6107 = vsub.s32 %v6104, %v6106
    %v6108 = vrot.slane %v6094, %v6107
    %v6109 = vcombine.high %v6108, %v6108
    %v6111 = vunpack.c.l.s4 1966171168
    %v6112 = vunpack.c.0.s8 %v6111
    %v6113 = vlaneseq
    %v6114 = vshrl.u32 %v6113, 7
    %v6115 = vsub.s32 %v6112, %v6114
    %v6116 = vrot.slane %v6101, %v6115
    %v6118 = vunpack.c.l.s4 1966171168
    %v6119 = vunpack.c.0.s8 %v6118
    %v6120 = vlaneseq
    %v6121 = vshrl.u32 %v6120, 7
    %v6122 = vsub.s32 %v6119, %v6121
    %v6123 = vrot.slane %v6109, %v6122
    %v6126 = vadd.f32 %v6085, %v6116
    %v6127 = vadd.f32 %v6086, %v6123
    %v6128 = vld [vmem:[%s15] sm:$0x1]
    %v6129 = vld [vmem:[%s16] sm:$0x1]
    %v6132 = vcombine.low %v6126, %v6127
    %v6134 = vunpack.c.l.s4 1966171168
    %v6135 = vunpack.c.0.s8 %v6134
    %v6136 = vlaneseq
    %v6137 = vshrl.u32 %v6136, 7
    %v6138 = vsub.s32 %v6135, %v6137
    %v6139 = vrot.slane %v6132, %v6138
    %v6141 = vunpack.c.l.s4 1966171168
    %v6142 = vunpack.c.0.s8 %v6141
    %v6143 = vlaneseq
    %v6144 = vshrl.u32 %v6143, 7
    %v6145 = vsub.s32 %v6142, %v6144
    %v6146 = vrot.slane %v6139, %v6145
    %v6148 = vsel %vm343, %v6146, 0.0
    %6149 = vadd.xlane.f32.xlu0 %v6148
    %v6150 = vpop.xlane.xlu0 %6149
    %v6151 = vmul.f32 %v6150, %v347
    %v6153 = vlaneseq
    %v6154 = vshrl.u32 %v6153, 7
    %v6155 = vsub.s32 0, %v6154
    %v6156 = vrot.slane %v6151, %v6155
    %v6157 = vlaneseq
    %v6158 = vshrl.u32 %v6157, 7
    %v6159 = vsub.s32 1, %v6158
    %v6160 = vrot.slane %v6151, %v6159
    %v6163 = vsub.f32 %v6126, %v6156
    %v6164 = vsub.f32 %v6127, %v6160
    %v6165 = vmul.f32 %v6163, %v6163
    %v6166 = vmul.f32 %v6164, %v6164
    %v6169 = vcombine.low %v6165, %v6166
    %v6171 = vunpack.c.l.s4 1966171168
    %v6172 = vunpack.c.0.s8 %v6171
    %v6173 = vlaneseq
    %v6174 = vshrl.u32 %v6173, 7
    %v6175 = vsub.s32 %v6172, %v6174
    %v6176 = vrot.slane %v6169, %v6175
    %v6178 = vunpack.c.l.s4 1966171168
    %v6179 = vunpack.c.0.s8 %v6178
    %v6180 = vlaneseq
    %v6181 = vshrl.u32 %v6180, 7
    %v6182 = vsub.s32 %v6179, %v6181
    %v6183 = vrot.slane %v6176, %v6182
    %v6185 = vsel %vm343, %v6183, 0.0
    %6186 = vadd.xlane.f32.xlu0 %v6185
    %v6187 = vpop.xlane.xlu0 %6186
    %v6188 = vmul.f32 %v6187, %v347
    %v6189 = vadd.f32 %v6188, 1e-06
    %v6190 = vrsqrt.pop %v6189
    %v6192 = vlaneseq
    %v6193 = vshrl.u32 %v6192, 7
    %v6194 = vsub.s32 0, %v6193
    %v6195 = vrot.slane %v6190, %v6194
    %v6196 = vlaneseq
    %v6197 = vshrl.u32 %v6196, 7
    %v6198 = vsub.s32 1, %v6197
    %v6199 = vrot.slane %v6190, %v6198
    %v6202 = vmul.f32 %v6163, %v6195
    %v6203 = vmul.f32 %v6164, %v6199
    %v6205 = vlaneseq
    %v6206 = vshrl.u32 %v6205, 7
    %v6207 = vsub.s32 0, %v6206
    %v6208 = vrot.slane %v6128, %v6207
    %v6210 = vunpack.c.l.s4 1966171168
    %v6211 = vunpack.c.0.s8 %v6210
    %v6212 = vlaneseq
    %v6213 = vshrl.u32 %v6212, 7
    %v6214 = vsub.s32 %v6211, %v6213
    %v6215 = vrot.slane %v6208, %v6214
    %v6216 = vcombine.high %v6215, %v6215
    %v6218 = vunpack.c.l.s4 1966171168
    %v6219 = vunpack.c.0.s8 %v6218
    %v6220 = vlaneseq
    %v6221 = vshrl.u32 %v6220, 7
    %v6222 = vsub.s32 %v6219, %v6221
    %v6223 = vrot.slane %v6215, %v6222
    %v6225 = vunpack.c.l.s4 1966171168
    %v6226 = vunpack.c.0.s8 %v6225
    %v6227 = vlaneseq
    %v6228 = vshrl.u32 %v6227, 7
    %v6229 = vsub.s32 %v6226, %v6228
    %v6230 = vrot.slane %v6216, %v6229
    %v6233 = vmul.f32 %v6202, %v6223
    %v6234 = vmul.f32 %v6203, %v6230
    %v6236 = vlaneseq
    %v6237 = vshrl.u32 %v6236, 7
    %v6238 = vsub.s32 0, %v6237
    %v6239 = vrot.slane %v6129, %v6238
    %v6241 = vunpack.c.l.s4 1966171168
    %v6242 = vunpack.c.0.s8 %v6241
    %v6243 = vlaneseq
    %v6244 = vshrl.u32 %v6243, 7
    %v6245 = vsub.s32 %v6242, %v6244
    %v6246 = vrot.slane %v6239, %v6245
    %v6247 = vcombine.high %v6246, %v6246
    %v6249 = vunpack.c.l.s4 1966171168
    %v6250 = vunpack.c.0.s8 %v6249
    %v6251 = vlaneseq
    %v6252 = vshrl.u32 %v6251, 7
    %v6253 = vsub.s32 %v6250, %v6252
    %v6254 = vrot.slane %v6246, %v6253
    %v6256 = vunpack.c.l.s4 1966171168
    %v6257 = vunpack.c.0.s8 %v6256
    %v6258 = vlaneseq
    %v6259 = vshrl.u32 %v6258, 7
    %v6260 = vsub.s32 %v6257, %v6259
    %v6261 = vrot.slane %v6247, %v6260
    %v6264 = vadd.f32 %v6233, %v6254
    %v6265 = vadd.f32 %v6234, %v6261
    %v6268 = vcombine.low %v6264, %v6265
    %v6270 = vunpack.c.l.s4 1966171168
    %v6271 = vunpack.c.0.s8 %v6270
    %v6272 = vlaneseq
    %v6273 = vshrl.u32 %v6272, 7
    %v6274 = vsub.s32 %v6271, %v6273
    %v6275 = vrot.slane %v6268, %v6274
    %v6277 = vunpack.c.l.s4 1966171168
    %v6278 = vunpack.c.0.s8 %v6277
    %v6279 = vlaneseq
    %v6280 = vshrl.u32 %v6279, 7
    %v6281 = vsub.s32 %v6278, %v6280
    %v6282 = vrot.slane %v6275, %v6281
    %6284 = vst.msk [vmem:[#allocation3] sm:$0x3] %vm343, %v6282
    // Predicated region
    $region70: #{network_forward.1} parent=1 // pred_check
      _
    $region71: #{network_forward.1} parent=1 // pred_check_branch
      %6286 = sbr.rel (0) target = $region73
    $region72: #{network_forward.1} parent=1 // pred_region
      %s6288 = ssub.s32 32, 32
      %6289 = vsyncadd [#allocation4], %s6288
      %s6291 = sshll.u32 [#allocation3], 4
      %s6292 = int_to_ptr.vmem [resolvable:$true] %s6291
      %6294 = dma.vmem_to_hbm [thread:$0]  %s6292, 32, %s17, [#allocation4]
    $region73: #{network_forward.1} parent=1 // pred_fallthru
      _
    // Predicated region
    $region74: #{network_forward.1} parent=1 // pred_check
      _
    $region75: #{network_forward.1} parent=1 // pred_check_branch
      %6296 = sbr.rel (0) target = $region77
    $region76: #{network_forward.1} parent=1 // pred_region
      %6297 = dma.done [#allocation4], 32
    $region77: #{network_forward.1} parent=1 // pred_fallthru
      _
    %6298 = vsyncpa [#allocation4], 1

</llo_original>
